<compile_context>
chip_gen: v7x
topology: tpu7x:2x2x1
jax: 0.10.0
libtpu: 0.0.40
codegen_flags: <defaults>
</compile_context>

<pallas_src>
import jax
import jax.numpy as jnp
from jax.experimental import pallas as pl
from jax.experimental.pallas import tpu as pltpu
from typing import NamedTuple


_VMEM_SOFT_CAP = 48 * 1024 * 1024        # stay well inside v7x's 64 MiB physical VMEM
_WEIGHT_BUDGET_BYTES = 16 * 1024 * 1024  # K-tile fc1 once resident weights exceed this


def _round_up(x: int, m: int) -> int:
    return ((x + m - 1) // m) * m


# ---------------------------------------------------------------------------
# Kernels
# ---------------------------------------------------------------------------
def _mlp_kernel_fused(x_ref, w1_ref, b1_ref, w2_ref, b2_ref, o_ref):
    """Whole MLP for one batch tile; weights fully VMEM-resident."""
    xb = x_ref[...].astype(w1_ref.dtype)            # cast to bf16 in-kernel (VPU, free)
    h = jnp.dot(xb, w1_ref[...], preferred_element_type=jnp.float32)
    h = jnp.maximum(h + b1_ref[...], 0.0)           # bias add + ReLU in f32
    out = jnp.dot(h.astype(w2_ref.dtype), w2_ref[...],
                  preferred_element_type=jnp.float32)
    o_ref[...] = (out + b2_ref[...]).astype(o_ref.dtype)


def _mlp_kernel_ktiled(x_ref, w1_ref, b1_ref, w2_ref, b2_ref, o_ref, h_acc):
    """fc1 reduced over a K (= input-feature) grid axis into an f32 scratch."""
    k = pl.program_id(1)

    @pl.when(k == 0)
    def _():
        h_acc[...] = jnp.zeros_like(h_acc)

    xb = x_ref[...].astype(w1_ref.dtype)
    h_acc[...] += jnp.dot(xb, w1_ref[...], preferred_element_type=jnp.float32)

    @pl.when(k == pl.num_programs(1) - 1)
    def _():
        h = jnp.maximum(h_acc[...] + b1_ref[...], 0.0)
        out = jnp.dot(h.astype(w2_ref.dtype), w2_ref[...],
                      preferred_element_type=jnp.float32)
        o_ref[...] = (out + b2_ref[...]).astype(o_ref.dtype)


# ---------------------------------------------------------------------------
# Parameter prep (runs ONCE, outside the per-call hot path)
# ---------------------------------------------------------------------------
class MLPParams(NamedTuple):
    w1: jax.Array          # (In, Hid)    bf16, pre-transposed (in, out)
    b1: jax.Array          # (1, Hid)     f32
    w2: jax.Array          # (Hid, Out_p) bf16, Out lane-padded to multiple of 128
    b2: jax.Array          # (1, Out_p)   f32 (zeros in padded columns)
    out_features: int      # original Out (static python int)


def prepare_params(w1_t, b1, w2_t, b2, *, compute_dtype=jnp.bfloat16):
    """Pad/cast the weights once so mlp_forward does no per-call weight work."""
    In, Hid = w1_t.shape
    Hid2, Out = w2_t.shape
    assert Hid == Hid2 and b1.shape == (Hid,) and b2.shape == (Out,)
    Out_p = _round_up(Out, 128)
    if Out_p != Out:
        w2_t = jnp.pad(w2_t, ((0, 0), (0, Out_p - Out)))
        b2 = jnp.pad(b2, (0, Out_p - Out))
    return MLPParams(
        w1=jnp.asarray(w1_t, compute_dtype),
        b1=jnp.asarray(b1, jnp.float32).reshape(1, Hid),
        w2=jnp.asarray(w2_t, compute_dtype),
        b2=jnp.asarray(b2, jnp.float32).reshape(1, Out_p),
        out_features=int(Out),
    )


# ---------------------------------------------------------------------------
# Forward wrapper
# ---------------------------------------------------------------------------
def mlp_forward(x, params: MLPParams, *, tm=512, k_tile=None,
                out_dtype=None, keep_padding=False):
    """Fused MLP forward: relu(x @ W1 + b1) @ W2 + b2 (PyTorch Linear semantics)."""
    w1, b1, w2, b2, Out = params
    In, Hid = w1.shape
    Out_p = w2.shape[1]
    comp_isz = jnp.dtype(w1.dtype).itemsize

    orig_lead = x.shape[:-1]
    assert x.shape[-1] == In, f"expected last dim {In}, got {x.shape}"
    x2 = x.reshape(-1, In)
    B = x2.shape[0]
    out_dtype = x.dtype if out_dtype is None else out_dtype
    out_isz = jnp.dtype(out_dtype).itemsize
    x_isz = jnp.dtype(x2.dtype).itemsize

    # ---- K (input-feature) tiling: only when resident weights are large ----
    w_bytes = (In * Hid + Hid * Out_p) * comp_isz
    if k_tile is None:
        k_tile = In
        if w_bytes > _WEIGHT_BUDGET_BYTES:
            for cand in (4096, 2048, 1024, 512, 256, 128):
                if cand < In and In % cand == 0:
                    k_tile = cand
                    break
    assert In % k_tile == 0 and (k_tile == In or k_tile % 128 == 0), \
        "k_tile must divide In and be a multiple of 128 (or equal In)"
    nk = In // k_tile
    # TODO(synk): also tile Hid / Out_p for fc2 if that weight alone outgrows VMEM.

    # ---- batch tiling ----
    # >= 2 grid steps whenever possible (keeps both v7x TensorCores busy on the
    # "parallel" batch axis); tiles rounded to 16 rows (bf16 (16,128) tile).
    tm = _round_up(max(int(tm), 16), 16)
    if B > 16:
        tm = min(tm, _round_up(-(-B // 2), 16))
    tm = min(tm, _round_up(B, 16))

    def vmem_est(tm_):
        return (2 * tm_ * k_tile * x_isz                        # x tiles (double-buffered)
                + 2 * tm_ * Out_p * out_isz                     # out tiles
                + 2 * (k_tile * Hid + Hid * Out_p) * comp_isz   # weights (worst case 2x)
                + 4 * (Hid + Out_p) * 4                         # biases
                + (tm_ * Hid * 4 if nk > 1 else 0))             # f32 accumulator scratch

    while vmem_est(tm) > _VMEM_SOFT_CAP and tm > 16:
        tm = max(16, _round_up(tm // 2, 16))

    B_p = _round_up(B, tm)
    if B_p != B:
        x2 = jnp.pad(x2, ((0, B_p - B), (0, 0)))

    vmem_limit = int(min(max(32 * 1024 * 1024, vmem_est(tm) * 5 // 4),
                         64 * 1024 * 1024))

    flops = 2 * B_p * (In * Hid + Hid * Out_p)
    bytes_accessed = (B_p * In * x_isz
                      + (In * Hid + Hid * Out_p) * comp_isz
                      + (Hid + Out_p) * 4
                      + B_p * Out_p * out_isz)

    def build(single_buffer):
        # Resident (grid-invariant) operands: single-buffer them when supported.
        res_kw = ({"pipeline_mode": pl.Buffered(1)}
                  if (single_buffer and hasattr(pl, "Buffered")) else {})
        if nk == 1:
            kernel = _mlp_kernel_fused
            grid = (B_p // tm,)
            in_specs = [
                pl.BlockSpec((tm, In),     lambda i: (i, 0)),            # x row tile
                pl.BlockSpec((In, Hid),    lambda i: (0, 0), **res_kw),  # W1 resident
                pl.BlockSpec((1, Hid),     lambda i: (0, 0), **res_kw),  # b1
                pl.BlockSpec((Hid, Out_p), lambda i: (0, 0), **res_kw),  # W2 resident
                pl.BlockSpec((1, Out_p),   lambda i: (0, 0), **res_kw),  # b2
            ]
            out_specs = pl.BlockSpec((tm, Out_p), lambda i: (i, 0))
            scratch = []
            dims = ("parallel",)
        else:
            kernel = _mlp_kernel_ktiled
            grid = (B_p // tm, nk)
            in_specs = [
                pl.BlockSpec((tm, k_tile),   lambda i, k: (i, k)),            # x K-slice
                pl.BlockSpec((k_tile, Hid),  lambda i, k: (k, 0)),            # W1 streams over K
                pl.BlockSpec((1, Hid),       lambda i, k: (0, 0), **res_kw),  # b1
                pl.BlockSpec((Hid, Out_p),   lambda i, k: (0, 0), **res_kw),  # W2 resident
                pl.BlockSpec((1, Out_p),     lambda i, k: (0, 0), **res_kw),  # b2
            ]
            out_specs = pl.BlockSpec((tm, Out_p), lambda i, k: (i, 0))
            scratch = [pltpu.VMEM((tm, Hid), jnp.float32)]
            dims = ("parallel", "arbitrary")
        return pl.pallas_call(
            kernel,
            out_shape=jax.ShapeDtypeStruct((B_p, Out_p), out_dtype),
            grid_spec=pltpu.PrefetchScalarGridSpec(
                num_scalar_prefetch=0,
                grid=grid,
                in_specs=in_specs,
                out_specs=out_specs,
                scratch_shapes=scratch,
            ),
            compiler_params=pltpu.CompilerParams(
                dimension_semantics=dims,
                vmem_limit_bytes=vmem_limit,
            ),
            cost_estimate=pl.CostEstimate(
                flops=flops, transcendentals=0, bytes_accessed=bytes_accessed),
        )

    try:
        out = build(True)(x2, w1, b1, w2, b2)
    except Exception:
        # pipeline_mode=pl.Buffered(1) unsupported on this jax version -> plain specs.
        out = build(False)(x2, w1, b1, w2, b2)

    if keep_padding:
        return out                      # (B_p, Out_p), padded rows/cols are garbage/zero
    out = out[:B, :Out]
    return out.reshape(*orig_lead, Out)


# ---------------------------------------------------------------------------
# Init mimicking nn.Linear's U(-1/sqrt(fan_in), 1/sqrt(fan_in))
# ---------------------------------------------------------------------------
def init_params(key, input_size, hidden_size, output_size, dtype=jnp.float32):
    k1, k2, k3, k4 = jax.random.split(key, 4)
    lim1 = 1.0 / (input_size ** 0.5)
    lim2 = 1.0 / (hidden_size ** 0.5)
    # PyTorch stores weight as (out, in); we keep the transposed (in, out) layout.
    w1_t = jax.random.uniform(k1, (input_size, hidden_size), dtype, -lim1, lim1)
    b1 = jax.random.uniform(k2, (hidden_size,), dtype, -lim1, lim1)
    w2_t = jax.random.uniform(k3, (hidden_size, output_size), dtype, -lim2, lim2)
    b2 = jax.random.uniform(k4, (output_size,), dtype, -lim2, lim2)
    return w1_t, b1, w2_t, b2


if __name__ == "__main__":
    input_size, hidden_size, output_size = 512, 512, 1000

    key = jax.random.PRNGKey(0)
    kx1, kx2, kp = jax.random.split(key, 3)
    w1_t, b1, w2_t, b2 = init_params(kp, input_size, hidden_size, output_size)
    params = prepare_params(w1_t, b1, w2_t, b2)   # one-time pad + bf16 cast

    def ref_fn(x):
        # Pure-JAX reference with matching numerics (bf16 operands, f32 accum).
        h = jnp.dot(x.astype(jnp.bfloat16), w1_t.astype(jnp.bfloat16),
                    preferred_element_type=jnp.float32) + b1
        h = jnp.maximum(h, 0.0)
        return jnp.dot(h.astype(jnp.bfloat16), w2_t.astype(jnp.bfloat16),
                       preferred_element_type=jnp.float32) + b2

    # 1) small batch: tile clamps to 16 rows, single grid step, fused kernel,
    #    output columns padded 1000 -> 1024 and sliced back.
    x_small = jax.random.normal(kx1, (8, input_size), jnp.float32)
    out_small = jax.block_until_ready(mlp_forward(x_small, params))
    assert out_small.shape == (8, output_size)
    assert jnp.allclose(out_small, ref_fn(x_small), atol=2e-2, rtol=2e-2)

    # 2) larger batch: two 256-row "parallel" tiles (both v7x TCs get work).
    x_big = jax.random.normal(kx2, (512, input_size), jnp.float32)
    out_big = jax.block_until_ready(mlp_forward(x_big, params))
    assert out_big.shape == (512, output_size)
    assert jnp.allclose(out_big, ref_fn(x_big), atol=2e-2, rtol=2e-2)

    # 3) force the K-tiled (reduction-grid) path that kicks in for large In.
    out_kt = jax.block_until_ready(mlp_forward(x_big, params, k_tile=256))
    assert out_kt.shape == (512, output_size)
    assert jnp.allclose(out_kt, ref_fn(x_big), atol=2e-2, rtol=2e-2)

    print("KERNEL_OK")
</pallas_src>

<mosaic_0001>
module attributes {stable_mosaic.version = 11 : i64} {
  func.func @_mlp_kernel_fused(%arg0: i32, %arg1: memref<16x512xf32, #tpu.memory_space<vmem>>, %arg2: memref<512x512xbf16, #tpu.memory_space<vmem>>, %arg3: memref<1x512xf32, #tpu.memory_space<vmem>>, %arg4: memref<512x1024xbf16, #tpu.memory_space<vmem>>, %arg5: memref<1x1024xf32, #tpu.memory_space<vmem>>, %arg6: memref<16x1024xf32, #tpu.memory_space<vmem>>) attributes {dimension_semantics = [#tpu.dimension_semantics<parallel>], iteration_bounds = array<i64: 1>, scalar_prefetch = 0 : i64, scratch_operands = 0 : i64, tpu.core_type = #tpu.core_type<tc>, window_params = [{transform_indices = @transform_0, window_bounds = array<i64: 16, 512>}, {pipeline_mode = #tpu.pipeline_mode<synchronous>, transform_indices = @transform_1, window_bounds = array<i64: 512, 512>}, {pipeline_mode = #tpu.pipeline_mode<synchronous>, transform_indices = @transform_2, window_bounds = array<i64: 1, 512>}, {pipeline_mode = #tpu.pipeline_mode<synchronous>, transform_indices = @transform_3, window_bounds = array<i64: 512, 1024>}, {pipeline_mode = #tpu.pipeline_mode<synchronous>, transform_indices = @transform_4, window_bounds = array<i64: 1, 1024>}, {transform_indices = @transform_5, window_bounds = array<i64: 16, 1024>}]} {
    %c0 = arith.constant 0 : index
    %c0_0 = arith.constant 0 : index
    %0 = vector.load %arg1[%c0, %c0_0] : memref<16x512xf32, #tpu.memory_space<vmem>>, vector<16x512xf32>
    %1 = arith.truncf %0 : vector<16x512xf32> to vector<16x512xbf16>
    %c0_1 = arith.constant 0 : index
    %c0_2 = arith.constant 0 : index
    %2 = vector.load %arg2[%c0_1, %c0_2] : memref<512x512xbf16, #tpu.memory_space<vmem>>, vector<512x512xbf16>
    %cst = arith.constant dense<0.000000e+00> : vector<16x512xf32>
    %3 = tpu.matmul %1, %2, %cst {dimension_numbers = #tpu.dot_dimension_numbers<[1], [0], [0], [1], [0, 0, 1, 1], [], []>} : vector<16x512xbf16>, vector<512x512xbf16>, vector<16x512xf32> -> vector<16x512xf32>
    %c0_3 = arith.constant 0 : index
    %c0_4 = arith.constant 0 : index
    %4 = vector.load %arg3[%c0_3, %c0_4] : memref<1x512xf32, #tpu.memory_space<vmem>>, vector<1x512xf32>
    %5 = vector.broadcast %4 : vector<1x512xf32> to vector<16x512xf32>
    %6 = arith.addf %3, %5 : vector<16x512xf32>
    %cst_5 = arith.constant 0.000000e+00 : f32
    %7 = vector.broadcast %cst_5 : f32 to vector<16x512xf32>
    %8 = arith.maximumf %6, %7 : vector<16x512xf32>
    %9 = arith.truncf %8 : vector<16x512xf32> to vector<16x512xbf16>
    %c0_6 = arith.constant 0 : index
    %c0_7 = arith.constant 0 : index
    %10 = vector.load %arg4[%c0_6, %c0_7] : memref<512x1024xbf16, #tpu.memory_space<vmem>>, vector<512x1024xbf16>
    %cst_8 = arith.constant dense<0.000000e+00> : vector<16x1024xf32>
    %11 = tpu.matmul %9, %10, %cst_8 {dimension_numbers = #tpu.dot_dimension_numbers<[1], [0], [0], [1], [0, 0, 1, 1], [], []>} : vector<16x512xbf16>, vector<512x1024xbf16>, vector<16x1024xf32> -> vector<16x1024xf32>
    %c0_9 = arith.constant 0 : index
    %c0_10 = arith.constant 0 : index
    %12 = vector.load %arg5[%c0_9, %c0_10] : memref<1x1024xf32, #tpu.memory_space<vmem>>, vector<1x1024xf32>
    %13 = vector.broadcast %12 : vector<1x1024xf32> to vector<16x1024xf32>
    %14 = arith.addf %11, %13 : vector<16x1024xf32>
    %c0_11 = arith.constant 0 : index
    %c0_12 = arith.constant 0 : index
    %15 = vector.load %arg6[%c0_11, %c0_12] : memref<16x1024xf32, #tpu.memory_space<vmem>>, vector<16x1024xf32>
    tpu.vector_store %arg6[%c0_11, %c0_12], %14 {strides = array<i32>} : memref<16x1024xf32, #tpu.memory_space<vmem>>, vector<16x1024xf32>,
    return
  }
  func.func @transform_0(%arg0: i32) -> (i32, i32) {
    %c0_i32 = arith.constant 0 : i32
    %c0_i32_0 = arith.constant 0 : i32
    return %arg0, %c0_i32 : i32, i32
  }
  func.func @transform_1(%arg0: i32) -> (i32, i32) {
    %c0_i32 = arith.constant 0 : i32
    %c0_i32_0 = arith.constant 0 : i32
    %c0_i32_1 = arith.constant 0 : i32
    return %c0_i32, %c0_i32_0 : i32, i32
  }
  func.func @transform_2(%arg0: i32) -> (i32, i32) {
    %c0_i32 = arith.constant 0 : i32
    %c0_i32_0 = arith.constant 0 : i32
    %c0_i32_1 = arith.constant 0 : i32
    return %c0_i32, %c0_i32_0 : i32, i32
  }
  func.func @transform_3(%arg0: i32) -> (i32, i32) {
    %c0_i32 = arith.constant 0 : i32
    %c0_i32_0 = arith.constant 0 : i32
    %c0_i32_1 = arith.constant 0 : i32
    return %c0_i32, %c0_i32_0 : i32, i32
  }
  func.func @transform_4(%arg0: i32) -> (i32, i32) {
    %c0_i32 = arith.constant 0 : i32
    %c0_i32_0 = arith.constant 0 : i32
    %c0_i32_1 = arith.constant 0 : i32
    return %c0_i32, %c0_i32_0 : i32, i32
  }
  func.func @transform_5(%arg0: i32) -> (i32, i32) {
    %c0_i32 = arith.constant 0 : i32
    %c0_i32_0 = arith.constant 0 : i32
    return %arg0, %c0_i32 : i32, i32
  }
}

module attributes {stable_mosaic.version = 11 : i64} {
  func.func @_mlp_kernel_fused(%arg0: i32, %arg1: memref<16x512xf32, #tpu.memory_space<vmem>>, %arg2: memref<512x512xbf16, #tpu.memory_space<vmem>>, %arg3: memref<1x512xf32, #tpu.memory_space<vmem>>, %arg4: memref<512x1024xbf16, #tpu.memory_space<vmem>>, %arg5: memref<1x1024xf32, #tpu.memory_space<vmem>>, %arg6: memref<16x1024xf32, #tpu.memory_space<vmem>>) attributes {dimension_semantics = [#tpu.dimension_semantics<parallel>], iteration_bounds = array<i64: 1>, scalar_prefetch = 0 : i64, scratch_operands = 0 : i64, tpu.core_type = #tpu.core_type<tc>, window_params = [{transform_indices = @transform_0, window_bounds = array<i64: 16, 512>}, {pipeline_mode = #tpu.pipeline_mode<synchronous>, transform_indices = @transform_1, window_bounds = array<i64: 512, 512>}, {pipeline_mode = #tpu.pipeline_mode<synchronous>, transform_indices = @transform_2, window_bounds = array<i64: 1, 512>}, {pipeline_mode = #tpu.pipeline_mode<synchronous>, transform_indices = @transform_3, window_bounds = array<i64: 512, 1024>}, {pipeline_mode = #tpu.pipeline_mode<synchronous>, transform_indices = @transform_4, window_bounds = array<i64: 1, 1024>}, {transform_indices = @transform_5, window_bounds = array<i64: 16, 1024>}]} {
    %c0 = arith.constant 0 : index
    %c0_0 = arith.constant 0 : index
    %0 = vector.load %arg1[%c0, %c0_0] : memref<16x512xf32, #tpu.memory_space<vmem>>, vector<16x512xf32>
    %1 = arith.truncf %0 : vector<16x512xf32> to vector<16x512xbf16>
    %c0_1 = arith.constant 0 : index
    %c0_2 = arith.constant 0 : index
    %2 = vector.load %arg2[%c0_1, %c0_2] : memref<512x512xbf16, #tpu.memory_space<vmem>>, vector<512x512xbf16>
    %cst = arith.constant dense<0.000000e+00> : vector<16x512xf32>
    %3 = tpu.matmul %1, %2, %cst {dimension_numbers = #tpu.dot_dimension_numbers<[1], [0], [0], [1], [0, 0, 1, 1], [], []>} : vector<16x512xbf16>, vector<512x512xbf16>, vector<16x512xf32> -> vector<16x512xf32>
    %c0_3 = arith.constant 0 : index
    %c0_4 = arith.constant 0 : index
    %4 = vector.load %arg3[%c0_3, %c0_4] : memref<1x512xf32, #tpu.memory_space<vmem>>, vector<1x512xf32>
    %5 = vector.broadcast %4 : vector<1x512xf32> to vector<16x512xf32>
    %6 = arith.addf %3, %5 : vector<16x512xf32>
    %cst_5 = arith.constant 0.000000e+00 : f32
    %7 = vector.broadcast %cst_5 : f32 to vector<16x512xf32>
    %8 = arith.maximumf %6, %7 : vector<16x512xf32>
    %9 = arith.truncf %8 : vector<16x512xf32> to vector<16x512xbf16>
    %c0_6 = arith.constant 0 : index
    %c0_7 = arith.constant 0 : index
    %10 = vector.load %arg4[%c0_6, %c0_7] : memref<512x1024xbf16, #tpu.memory_space<vmem>>, vector<512x1024xbf16>
    %cst_8 = arith.constant dense<0.000000e+00> : vector<16x1024xf32>
    %11 = tpu.matmul %9, %10, %cst_8 {dimension_numbers = #tpu.dot_dimension_numbers<[1], [0], [0], [1], [0, 0, 1, 1], [], []>} : vector<16x512xbf16>, vector<512x1024xbf16>, vector<16x1024xf32> -> vector<16x1024xf32>
    %c0_9 = arith.constant 0 : index
    %c0_10 = arith.constant 0 : index
    %12 = vector.load %arg5[%c0_9, %c0_10] : memref<1x1024xf32, #tpu.memory_space<vmem>>, vector<1x1024xf32>
    %13 = vector.broadcast %12 : vector<1x1024xf32> to vector<16x1024xf32>
    %14 = arith.addf %11, %13 : vector<16x1024xf32>
    %c0_11 = arith.constant 0 : index
    %c0_12 = arith.constant 0 : index
    %15 = vector.load %arg6[%c0_11, %c0_12] : memref<16x1024xf32, #tpu.memory_space<vmem>>, vector<16x1024xf32>
    tpu.vector_store %arg6[%c0_11, %c0_12], %14 {strides = array<i32>} : memref<16x1024xf32, #tpu.memory_space<vmem>>, vector<16x1024xf32>,
    return
  }
  func.func @transform_0(%arg0: i32) -> (i32, i32) {
    %c0_i32 = arith.constant 0 : i32
    %c0_i32_0 = arith.constant 0 : i32
    return %arg0, %c0_i32 : i32, i32
  }
  func.func @transform_1(%arg0: i32) -> (i32, i32) {
    %c0_i32 = arith.constant 0 : i32
    %c0_i32_0 = arith.constant 0 : i32
    %c0_i32_1 = arith.constant 0 : i32
    return %c0_i32, %c0_i32_0 : i32, i32
  }
  func.func @transform_2(%arg0: i32) -> (i32, i32) {
    %c0_i32 = arith.constant 0 : i32
    %c0_i32_0 = arith.constant 0 : i32
    %c0_i32_1 = arith.constant 0 : i32
    return %c0_i32, %c0_i32_0 : i32, i32
  }
  func.func @transform_3(%arg0: i32) -> (i32, i32) {
    %c0_i32 = arith.constant 0 : i32
    %c0_i32_0 = arith.constant 0 : i32
    %c0_i32_1 = arith.constant 0 : i32
    return %c0_i32, %c0_i32_0 : i32, i32
  }
  func.func @transform_4(%arg0: i32) -> (i32, i32) {
    %c0_i32 = arith.constant 0 : i32
    %c0_i32_0 = arith.constant 0 : i32
    %c0_i32_1 = arith.constant 0 : i32
    return %c0_i32, %c0_i32_0 : i32, i32
  }
  func.func @transform_5(%arg0: i32) -> (i32, i32) {
    %c0_i32 = arith.constant 0 : i32
    %c0_i32_0 = arith.constant 0 : i32
    return %arg0, %c0_i32 : i32, i32
  }
}

</mosaic_0001>

<llo_original>
// kernel: tpu_custom_call.1
$region0: #{tpu_custom_call.1}
  #allocation0 [shape = 'u32[]', space=smem, size = 0x4, offset = 0x4, fixed_abs, tag = 'smem constant byte address 0x4 - core index']
  #allocation1 [shape = 'u32[144,128]{1,0:T(1,128)}', space=vmem, size = 0x12000, scoped, tag = 'internal scratch']
  %s0 = inlined_call_operand.hbm [shape: f32[16,512], index: 0, kind: input, shape index: {}]
  %s1 = inlined_call_operand.hbm [shape: bf16[512,512], index: 1, kind: input, shape index: {}]
  %s2 = inlined_call_operand.vmem [shape: f32[1,512], index: 2, kind: input, shape index: {}]
  %s3 = inlined_call_operand.hbm [shape: bf16[512,1024], index: 3, kind: input, shape index: {}]
  %s4 = inlined_call_operand.vmem [shape: f32[1,1024], index: 4, kind: input, shape index: {}]
  %s5 = inlined_call_operand.hbm [shape: f32[16,1024], index: 5, kind: output, shape index: {}]
  %s6 = sld [smem:[#allocation0]]
  $region42: #{tpu_custom_call.1} parent=0
    _
  %s8 = ssub.s32 1, %s6
  %s9 = scalar_select 0, %s8, %s6
  $region1: #{tpu_custom_call.1} parent=0
    #allocation2 [shape = 'u8[32768]{0}', space=vmem, size = 0x8000, scoped, tag = 'input window, operand 0, single buffered']
    #allocation3 [shape = 's32[1]{0}', space=sflag, size = 0x4, scoped, tag = 'scoped memory for tpu_custom_call.1']
    #allocation4 [shape = 's32[1]{0}', space=sflag, size = 0x4, scoped, tag = 'scoped memory for tpu_custom_call.1']
    #allocation5 [shape = 'u8[524288]{0}', space=vmem, size = 0x80000, scoped, tag = 'input window, operand 1, single buffered']
    #allocation6 [shape = 's32[1]{0}', space=sflag, size = 0x4, scoped, tag = 'scoped memory for tpu_custom_call.1']
    #allocation7 [shape = 'u8[1048576]{0}', space=vmem, size = 0x100000, scoped, tag = 'input window, operand 3, single buffered']
    #allocation8 [shape = 'u8[65536]{0}', space=vmem, size = 0x10000, scoped, tag = 'output window, operand 0, single buffered']
    %10 = vsyncpa [#allocation3], 0
    %11 = vsyncpa [#allocation6], 0
    %12 = vsyncpa [#allocation4], 0
    // Predicated region
    $region2: #{tpu_custom_call.1} parent=1 // pred_check
      _
    $region3: #{tpu_custom_call.1} parent=1 // pred_check_branch
      %14 = sbr.rel (0) target = $region5
    $region4: #{tpu_custom_call.1} parent=1 // pred_region
      %s16 = ssub.s32 1024, 1024
      %17 = vsyncadd [#allocation3], %s16
      %s18 = sshll.u32 [#allocation2], 4
      %s19 = int_to_ptr.vmem [resolvable:$true] %s18
      %24 = dma.hbm_to_vmem [thread:$0]  %s0, 1024, %s19, [#allocation3], 512, 512, 32
    $region5: #{tpu_custom_call.1} parent=1 // pred_fallthru
      _
    // Predicated region
    $region6: #{tpu_custom_call.1} parent=1 // pred_check
      _
    $region7: #{tpu_custom_call.1} parent=1 // pred_check_branch
      %26 = sbr.rel (0) target = $region9
    $region8: #{tpu_custom_call.1} parent=1 // pred_region
      %s28 = ssub.s32 16384, 16384
      %29 = vsyncadd [#allocation6], %s28
      %s30 = sshll.u32 [#allocation5], 4
      %s31 = int_to_ptr.vmem [resolvable:$true] %s30
      %36 = dma.hbm_to_vmem [thread:$0]  %s1, 16384, %s31, [#allocation6], 256, 256, 16
    $region9: #{tpu_custom_call.1} parent=1 // pred_fallthru
      _
    // Predicated region
    $region10: #{tpu_custom_call.1} parent=1 // pred_check
      _
    $region11: #{tpu_custom_call.1} parent=1 // pred_check_branch
      %38 = sbr.rel (0) target = $region13
    $region12: #{tpu_custom_call.1} parent=1 // pred_region
      _
    $region13: #{tpu_custom_call.1} parent=1 // pred_fallthru
      _
    // Predicated region
    $region14: #{tpu_custom_call.1} parent=1 // pred_check
      _
    $region15: #{tpu_custom_call.1} parent=1 // pred_check_branch
      %40 = sbr.rel (0) target = $region17
    $region16: #{tpu_custom_call.1} parent=1 // pred_region
      %s42 = ssub.s32 32768, 32768
      %43 = vsyncadd [#allocation6], %s42
      %s44 = sshll.u32 [#allocation7], 4
      %s45 = int_to_ptr.vmem [resolvable:$true] %s44
      %50 = dma.hbm_to_vmem [thread:$0]  %s3, 32768, %s45, [#allocation6], 512, 512, 32
    $region17: #{tpu_custom_call.1} parent=1 // pred_fallthru
      _
    // Predicated region
    $region18: #{tpu_custom_call.1} parent=1 // pred_check
      _
    $region19: #{tpu_custom_call.1} parent=1 // pred_check_branch
      %52 = sbr.rel (0) target = $region21
    $region20: #{tpu_custom_call.1} parent=1 // pred_region
      _
    $region21: #{tpu_custom_call.1} parent=1 // pred_fallthru
      _
    // Predicated region
    $region22: #{tpu_custom_call.1} parent=1 // pred_check
      _
    $region23: #{tpu_custom_call.1} parent=1 // pred_check_branch
      %54 = sbr.rel (0) target = $region25
    $region24: #{tpu_custom_call.1} parent=1 // pred_region
      %55 = dma.done [#allocation3], 1024
    $region25: #{tpu_custom_call.1} parent=1 // pred_fallthru
      _
    // Predicated region
    $region26: #{tpu_custom_call.1} parent=1 // pred_check
      _
    $region27: #{tpu_custom_call.1} parent=1 // pred_check_branch
      %57 = sbr.rel (0) target = $region29
    $region28: #{tpu_custom_call.1} parent=1 // pred_region
      %58 = dma.done [#allocation6], 16384
    $region29: #{tpu_custom_call.1} parent=1 // pred_fallthru
      _
    // Predicated region
    $region30: #{tpu_custom_call.1} parent=1 // pred_check
      _
    $region31: #{tpu_custom_call.1} parent=1 // pred_check_branch
      %60 = sbr.rel (0) target = $region33
    $region32: #{tpu_custom_call.1} parent=1 // pred_region
      %61 = dma.done [#allocation6], 32768
    $region33: #{tpu_custom_call.1} parent=1 // pred_fallthru
      _
    %v62 = vld [vmem:[#allocation2] sm:$0xff]
    %v63 = vld [vmem:[#allocation2 + $0x8] sm:$0xff]
    %v64 = vld [vmem:[#allocation2 + $0x10] sm:$0xff]
    %v65 = vld [vmem:[#allocation2 + $0x18] sm:$0xff]
    %v66 = vld [vmem:[#allocation2 + $0x20] sm:$0xff]
    %v67 = vld [vmem:[#allocation2 + $0x28] sm:$0xff]
    %v68 = vld [vmem:[#allocation2 + $0x30] sm:$0xff]
    %v69 = vld [vmem:[#allocation2 + $0x38] sm:$0xff]
    %v70 = vpack.c.bf16 %v66, %v62
    %v71 = vpack.c.bf16 %v67, %v63
    %v72 = vpack.c.bf16 %v68, %v64
    %v73 = vpack.c.bf16 %v69, %v65
    %v74 = vld [vmem:[#allocation5] sm:$0xff]
    %v75 = vld [vmem:[#allocation5 + $0x8] sm:$0xff]
    %v76 = vld [vmem:[#allocation5 + $0x10] sm:$0xff]
    %v77 = vld [vmem:[#allocation5 + $0x18] sm:$0xff]
    %v78 = vld [vmem:[#allocation5 + $0x20] sm:$0xff]
    %v79 = vld [vmem:[#allocation5 + $0x28] sm:$0xff]
    %v80 = vld [vmem:[#allocation5 + $0x30] sm:$0xff]
    %v81 = vld [vmem:[#allocation5 + $0x38] sm:$0xff]
    %v82 = vld [vmem:[#allocation5 + $0x40] sm:$0xff]
    %v83 = vld [vmem:[#allocation5 + $0x48] sm:$0xff]
    %v84 = vld [vmem:[#allocation5 + $0x50] sm:$0xff]
    %v85 = vld [vmem:[#allocation5 + $0x58] sm:$0xff]
    %v86 = vld [vmem:[#allocation5 + $0x60] sm:$0xff]
    %v87 = vld [vmem:[#allocation5 + $0x68] sm:$0xff]
    %v88 = vld [vmem:[#allocation5 + $0x70] sm:$0xff]
    %v89 = vld [vmem:[#allocation5 + $0x78] sm:$0xff]
    %v90 = vld [vmem:[#allocation5 + $0x80] sm:$0xff]
    %v91 = vld [vmem:[#allocation5 + $0x88] sm:$0xff]
    %v92 = vld [vmem:[#allocation5 + $0x90] sm:$0xff]
    %v93 = vld [vmem:[#allocation5 + $0x98] sm:$0xff]
    %v94 = vld [vmem:[#allocation5 + $0xa0] sm:$0xff]
    %v95 = vld [vmem:[#allocation5 + $0xa8] sm:$0xff]
    %v96 = vld [vmem:[#allocation5 + $0xb0] sm:$0xff]
    %v97 = vld [vmem:[#allocation5 + $0xb8] sm:$0xff]
    %v98 = vld [vmem:[#allocation5 + $0xc0] sm:$0xff]
    %v99 = vld [vmem:[#allocation5 + $0xc8] sm:$0xff]
    %v100 = vld [vmem:[#allocation5 + $0xd0] sm:$0xff]
    %v101 = vld [vmem:[#allocation5 + $0xd8] sm:$0xff]
    %v102 = vld [vmem:[#allocation5 + $0xe0] sm:$0xff]
    %v103 = vld [vmem:[#allocation5 + $0xe8] sm:$0xff]
    %v104 = vld [vmem:[#allocation5 + $0xf0] sm:$0xff]
    %v105 = vld [vmem:[#allocation5 + $0xf8] sm:$0xff]
    %v106 = vld [vmem:[#allocation5 + $0x100] sm:$0xff]
    %v107 = vld [vmem:[#allocation5 + $0x108] sm:$0xff]
    %v108 = vld [vmem:[#allocation5 + $0x110] sm:$0xff]
    %v109 = vld [vmem:[#allocation5 + $0x118] sm:$0xff]
    %v110 = vld [vmem:[#allocation5 + $0x120] sm:$0xff]
    %v111 = vld [vmem:[#allocation5 + $0x128] sm:$0xff]
    %v112 = vld [vmem:[#allocation5 + $0x130] sm:$0xff]
    %v113 = vld [vmem:[#allocation5 + $0x138] sm:$0xff]
    %v114 = vld [vmem:[#allocation5 + $0x140] sm:$0xff]
    %v115 = vld [vmem:[#allocation5 + $0x148] sm:$0xff]
    %v116 = vld [vmem:[#allocation5 + $0x150] sm:$0xff]
    %v117 = vld [vmem:[#allocation5 + $0x158] sm:$0xff]
    %v118 = vld [vmem:[#allocation5 + $0x160] sm:$0xff]
    %v119 = vld [vmem:[#allocation5 + $0x168] sm:$0xff]
    %v120 = vld [vmem:[#allocation5 + $0x170] sm:$0xff]
    %v121 = vld [vmem:[#allocation5 + $0x178] sm:$0xff]
    %v122 = vld [vmem:[#allocation5 + $0x180] sm:$0xff]
    %v123 = vld [vmem:[#allocation5 + $0x188] sm:$0xff]
    %v124 = vld [vmem:[#allocation5 + $0x190] sm:$0xff]
    %v125 = vld [vmem:[#allocation5 + $0x198] sm:$0xff]
    %v126 = vld [vmem:[#allocation5 + $0x1a0] sm:$0xff]
    %v127 = vld [vmem:[#allocation5 + $0x1a8] sm:$0xff]
    %v128 = vld [vmem:[#allocation5 + $0x1b0] sm:$0xff]
    %v129 = vld [vmem:[#allocation5 + $0x1b8] sm:$0xff]
    %v130 = vld [vmem:[#allocation5 + $0x1c0] sm:$0xff]
    %v131 = vld [vmem:[#allocation5 + $0x1c8] sm:$0xff]
    %v132 = vld [vmem:[#allocation5 + $0x1d0] sm:$0xff]
    %v133 = vld [vmem:[#allocation5 + $0x1d8] sm:$0xff]
    %v134 = vld [vmem:[#allocation5 + $0x1e0] sm:$0xff]
    %v135 = vld [vmem:[#allocation5 + $0x1e8] sm:$0xff]
    %v136 = vld [vmem:[#allocation5 + $0x1f0] sm:$0xff]
    %v137 = vld [vmem:[#allocation5 + $0x1f8] sm:$0xff]
    %v138 = vld [vmem:[#allocation5 + $0x200] sm:$0xff]
    %v139 = vld [vmem:[#allocation5 + $0x208] sm:$0xff]
    %v140 = vld [vmem:[#allocation5 + $0x210] sm:$0xff]
    %v141 = vld [vmem:[#allocation5 + $0x218] sm:$0xff]
    %v142 = vld [vmem:[#allocation5 + $0x220] sm:$0xff]
    %v143 = vld [vmem:[#allocation5 + $0x228] sm:$0xff]
    %v144 = vld [vmem:[#allocation5 + $0x230] sm:$0xff]
    %v145 = vld [vmem:[#allocation5 + $0x238] sm:$0xff]
    %v146 = vld [vmem:[#allocation5 + $0x240] sm:$0xff]
    %v147 = vld [vmem:[#allocation5 + $0x248] sm:$0xff]
    %v148 = vld [vmem:[#allocation5 + $0x250] sm:$0xff]
    %v149 = vld [vmem:[#allocation5 + $0x258] sm:$0xff]
    %v150 = vld [vmem:[#allocation5 + $0x260] sm:$0xff]
    %v151 = vld [vmem:[#allocation5 + $0x268] sm:$0xff]
    %v152 = vld [vmem:[#allocation5 + $0x270] sm:$0xff]
    %v153 = vld [vmem:[#allocation5 + $0x278] sm:$0xff]
    %v154 = vld [vmem:[#allocation5 + $0x280] sm:$0xff]
    %v155 = vld [vmem:[#allocation5 + $0x288] sm:$0xff]
    %v156 = vld [vmem:[#allocation5 + $0x290] sm:$0xff]
    %v157 = vld [vmem:[#allocation5 + $0x298] sm:$0xff]
    %v158 = vld [vmem:[#allocation5 + $0x2a0] sm:$0xff]
    %v159 = vld [vmem:[#allocation5 + $0x2a8] sm:$0xff]
    %v160 = vld [vmem:[#allocation5 + $0x2b0] sm:$0xff]
    %v161 = vld [vmem:[#allocation5 + $0x2b8] sm:$0xff]
    %v162 = vld [vmem:[#allocation5 + $0x2c0] sm:$0xff]
    %v163 = vld [vmem:[#allocation5 + $0x2c8] sm:$0xff]
    %v164 = vld [vmem:[#allocation5 + $0x2d0] sm:$0xff]
    %v165 = vld [vmem:[#allocation5 + $0x2d8] sm:$0xff]
    %v166 = vld [vmem:[#allocation5 + $0x2e0] sm:$0xff]
    %v167 = vld [vmem:[#allocation5 + $0x2e8] sm:$0xff]
    %v168 = vld [vmem:[#allocation5 + $0x2f0] sm:$0xff]
    %v169 = vld [vmem:[#allocation5 + $0x2f8] sm:$0xff]
    %v170 = vld [vmem:[#allocation5 + $0x300] sm:$0xff]
    %v171 = vld [vmem:[#allocation5 + $0x308] sm:$0xff]
    %v172 = vld [vmem:[#allocation5 + $0x310] sm:$0xff]
    %v173 = vld [vmem:[#allocation5 + $0x318] sm:$0xff]
    %v174 = vld [vmem:[#allocation5 + $0x320] sm:$0xff]
    %v175 = vld [vmem:[#allocation5 + $0x328] sm:$0xff]
    %v176 = vld [vmem:[#allocation5 + $0x330] sm:$0xff]
    %v177 = vld [vmem:[#allocation5 + $0x338] sm:$0xff]
    %v178 = vld [vmem:[#allocation5 + $0x340] sm:$0xff]
    %v179 = vld [vmem:[#allocation5 + $0x348] sm:$0xff]
    %v180 = vld [vmem:[#allocation5 + $0x350] sm:$0xff]
    %v181 = vld [vmem:[#allocation5 + $0x358] sm:$0xff]
    %v182 = vld [vmem:[#allocation5 + $0x360] sm:$0xff]
    %v183 = vld [vmem:[#allocation5 + $0x368] sm:$0xff]
    %v184 = vld [vmem:[#allocation5 + $0x370] sm:$0xff]
    %v185 = vld [vmem:[#allocation5 + $0x378] sm:$0xff]
    %v186 = vld [vmem:[#allocation5 + $0x380] sm:$0xff]
    %v187 = vld [vmem:[#allocation5 + $0x388] sm:$0xff]
    %v188 = vld [vmem:[#allocation5 + $0x390] sm:$0xff]
    %v189 = vld [vmem:[#allocation5 + $0x398] sm:$0xff]
    %v190 = vld [vmem:[#allocation5 + $0x3a0] sm:$0xff]
    %v191 = vld [vmem:[#allocation5 + $0x3a8] sm:$0xff]
    %v192 = vld [vmem:[#allocation5 + $0x3b0] sm:$0xff]
    %v193 = vld [vmem:[#allocation5 + $0x3b8] sm:$0xff]
    %v194 = vld [vmem:[#allocation5 + $0x3c0] sm:$0xff]
    %v195 = vld [vmem:[#allocation5 + $0x3c8] sm:$0xff]
    %v196 = vld [vmem:[#allocation5 + $0x3d0] sm:$0xff]
    %v197 = vld [vmem:[#allocation5 + $0x3d8] sm:$0xff]
    %v198 = vld [vmem:[#allocation5 + $0x3e0] sm:$0xff]
    %v199 = vld [vmem:[#allocation5 + $0x3e8] sm:$0xff]
    %v200 = vld [vmem:[#allocation5 + $0x3f0] sm:$0xff]
    %v201 = vld [vmem:[#allocation5 + $0x3f8] sm:$0xff]
    %v202 = vld [vmem:[%s2] sm:$0xf]
    %v204 = vlaneseq
    %v205 = vshrl.u32 %v204, 7
    %v206 = vsub.s32 0, %v205
    %v207 = vrot.slane %v202, %v206
    %v208 = vlaneseq
    %v209 = vshrl.u32 %v208, 7
    %v210 = vsub.s32 1, %v209
    %v211 = vrot.slane %v202, %v210
    %v212 = vlaneseq
    %v213 = vshrl.u32 %v212, 7
    %v214 = vsub.s32 2, %v213
    %v215 = vrot.slane %v202, %v214
    %v216 = vlaneseq
    %v217 = vshrl.u32 %v216, 7
    %v218 = vsub.s32 3, %v217
    %v219 = vrot.slane %v202, %v218
    %v352 = vunpack.c.l.b16 %v74
    %v353 = vunpack.c.h.b16 %v74
    %v354 = vunpack.c.l.b16 %v75
    %v355 = vunpack.c.h.b16 %v75
    %v356 = vunpack.c.l.b16 %v76
    %v357 = vunpack.c.h.b16 %v76
    %v358 = vunpack.c.l.b16 %v77
    %v359 = vunpack.c.h.b16 %v77
    %v360 = vunpack.c.l.b16 %v78
    %v361 = vunpack.c.h.b16 %v78
    %v362 = vunpack.c.l.b16 %v79
    %v363 = vunpack.c.h.b16 %v79
    %v364 = vunpack.c.l.b16 %v80
    %v365 = vunpack.c.h.b16 %v80
    %v366 = vunpack.c.l.b16 %v81
    %v367 = vunpack.c.h.b16 %v81
    %v368 = vunpack.c.l.b16 %v82
    %v369 = vunpack.c.h.b16 %v82
    %v370 = vunpack.c.l.b16 %v83
    %v371 = vunpack.c.h.b16 %v83
    %v372 = vunpack.c.l.b16 %v84
    %v373 = vunpack.c.h.b16 %v84
    %v374 = vunpack.c.l.b16 %v85
    %v375 = vunpack.c.h.b16 %v85
    %v376 = vunpack.c.l.b16 %v86
    %v377 = vunpack.c.h.b16 %v86
    %v378 = vunpack.c.l.b16 %v87
    %v379 = vunpack.c.h.b16 %v87
    %v380 = vunpack.c.l.b16 %v88
    %v381 = vunpack.c.h.b16 %v88
    %v382 = vunpack.c.l.b16 %v89
    %v383 = vunpack.c.h.b16 %v89
    %v384 = vunpack.c.l.b16 %v90
    %v385 = vunpack.c.h.b16 %v90
    %v386 = vunpack.c.l.b16 %v91
    %v387 = vunpack.c.h.b16 %v91
    %v388 = vunpack.c.l.b16 %v92
    %v389 = vunpack.c.h.b16 %v92
    %v390 = vunpack.c.l.b16 %v93
    %v391 = vunpack.c.h.b16 %v93
    %v392 = vunpack.c.l.b16 %v94
    %v393 = vunpack.c.h.b16 %v94
    %v394 = vunpack.c.l.b16 %v95
    %v395 = vunpack.c.h.b16 %v95
    %v396 = vunpack.c.l.b16 %v96
    %v397 = vunpack.c.h.b16 %v96
    %v398 = vunpack.c.l.b16 %v97
    %v399 = vunpack.c.h.b16 %v97
    %v400 = vunpack.c.l.b16 %v98
    %v401 = vunpack.c.h.b16 %v98
    %v402 = vunpack.c.l.b16 %v99
    %v403 = vunpack.c.h.b16 %v99
    %v404 = vunpack.c.l.b16 %v100
    %v405 = vunpack.c.h.b16 %v100
    %v406 = vunpack.c.l.b16 %v101
    %v407 = vunpack.c.h.b16 %v101
    %v408 = vunpack.c.l.b16 %v102
    %v409 = vunpack.c.h.b16 %v102
    %v410 = vunpack.c.l.b16 %v103
    %v411 = vunpack.c.h.b16 %v103
    %v412 = vunpack.c.l.b16 %v104
    %v413 = vunpack.c.h.b16 %v104
    %v414 = vunpack.c.l.b16 %v105
    %v415 = vunpack.c.h.b16 %v105
    %v416 = vunpack.c.l.b16 %v106
    %v417 = vunpack.c.h.b16 %v106
    %v418 = vunpack.c.l.b16 %v107
    %v419 = vunpack.c.h.b16 %v107
    %v420 = vunpack.c.l.b16 %v108
    %v421 = vunpack.c.h.b16 %v108
    %v422 = vunpack.c.l.b16 %v109
    %v423 = vunpack.c.h.b16 %v109
    %v424 = vunpack.c.l.b16 %v110
    %v425 = vunpack.c.h.b16 %v110
    %v426 = vunpack.c.l.b16 %v111
    %v427 = vunpack.c.h.b16 %v111
    %v428 = vunpack.c.l.b16 %v112
    %v429 = vunpack.c.h.b16 %v112
    %v430 = vunpack.c.l.b16 %v113
    %v431 = vunpack.c.h.b16 %v113
    %v432 = vunpack.c.l.b16 %v114
    %v433 = vunpack.c.h.b16 %v114
    %v434 = vunpack.c.l.b16 %v115
    %v435 = vunpack.c.h.b16 %v115
    %v436 = vunpack.c.l.b16 %v116
    %v437 = vunpack.c.h.b16 %v116
    %v438 = vunpack.c.l.b16 %v117
    %v439 = vunpack.c.h.b16 %v117
    %v440 = vunpack.c.l.b16 %v118
    %v441 = vunpack.c.h.b16 %v118
    %v442 = vunpack.c.l.b16 %v119
    %v443 = vunpack.c.h.b16 %v119
    %v444 = vunpack.c.l.b16 %v120
    %v445 = vunpack.c.h.b16 %v120
    %v446 = vunpack.c.l.b16 %v121
    %v447 = vunpack.c.h.b16 %v121
    %v448 = vunpack.c.l.b16 %v122
    %v449 = vunpack.c.h.b16 %v122
    %v450 = vunpack.c.l.b16 %v123
    %v451 = vunpack.c.h.b16 %v123
    %v452 = vunpack.c.l.b16 %v124
    %v453 = vunpack.c.h.b16 %v124
    %v454 = vunpack.c.l.b16 %v125
    %v455 = vunpack.c.h.b16 %v125
    %v456 = vunpack.c.l.b16 %v126
    %v457 = vunpack.c.h.b16 %v126
    %v458 = vunpack.c.l.b16 %v127
    %v459 = vunpack.c.h.b16 %v127
    %v460 = vunpack.c.l.b16 %v128
    %v461 = vunpack.c.h.b16 %v128
    %v462 = vunpack.c.l.b16 %v129
    %v463 = vunpack.c.h.b16 %v129
    %v464 = vunpack.c.l.b16 %v130
    %v465 = vunpack.c.h.b16 %v130
    %v466 = vunpack.c.l.b16 %v131
    %v467 = vunpack.c.h.b16 %v131
    %v468 = vunpack.c.l.b16 %v132
    %v469 = vunpack.c.h.b16 %v132
    %v470 = vunpack.c.l.b16 %v133
    %v471 = vunpack.c.h.b16 %v133
    %v472 = vunpack.c.l.b16 %v134
    %v473 = vunpack.c.h.b16 %v134
    %v474 = vunpack.c.l.b16 %v135
    %v475 = vunpack.c.h.b16 %v135
    %v476 = vunpack.c.l.b16 %v136
    %v477 = vunpack.c.h.b16 %v136
    %v478 = vunpack.c.l.b16 %v137
    %v479 = vunpack.c.h.b16 %v137
    %v480 = vunpack.c.l.b16 %v138
    %v481 = vunpack.c.h.b16 %v138
    %v482 = vunpack.c.l.b16 %v139
    %v483 = vunpack.c.h.b16 %v139
    %v484 = vunpack.c.l.b16 %v140
    %v485 = vunpack.c.h.b16 %v140
    %v486 = vunpack.c.l.b16 %v141
    %v487 = vunpack.c.h.b16 %v141
    %v488 = vunpack.c.l.b16 %v142
    %v489 = vunpack.c.h.b16 %v142
    %v490 = vunpack.c.l.b16 %v143
    %v491 = vunpack.c.h.b16 %v143
    %v492 = vunpack.c.l.b16 %v144
    %v493 = vunpack.c.h.b16 %v144
    %v494 = vunpack.c.l.b16 %v145
    %v495 = vunpack.c.h.b16 %v145
    %v496 = vunpack.c.l.b16 %v146
    %v497 = vunpack.c.h.b16 %v146
    %v498 = vunpack.c.l.b16 %v147
    %v499 = vunpack.c.h.b16 %v147
    %v500 = vunpack.c.l.b16 %v148
    %v501 = vunpack.c.h.b16 %v148
    %v502 = vunpack.c.l.b16 %v149
    %v503 = vunpack.c.h.b16 %v149
    %v504 = vunpack.c.l.b16 %v150
    %v505 = vunpack.c.h.b16 %v150
    %v506 = vunpack.c.l.b16 %v151
    %v507 = vunpack.c.h.b16 %v151
    %v508 = vunpack.c.l.b16 %v152
    %v509 = vunpack.c.h.b16 %v152
    %v510 = vunpack.c.l.b16 %v153
    %v511 = vunpack.c.h.b16 %v153
    %v512 = vunpack.c.l.b16 %v154
    %v513 = vunpack.c.h.b16 %v154
    %v514 = vunpack.c.l.b16 %v155
    %v515 = vunpack.c.h.b16 %v155
    %v516 = vunpack.c.l.b16 %v156
    %v517 = vunpack.c.h.b16 %v156
    %v518 = vunpack.c.l.b16 %v157
    %v519 = vunpack.c.h.b16 %v157
    %v520 = vunpack.c.l.b16 %v158
    %v521 = vunpack.c.h.b16 %v158
    %v522 = vunpack.c.l.b16 %v159
    %v523 = vunpack.c.h.b16 %v159
    %v524 = vunpack.c.l.b16 %v160
    %v525 = vunpack.c.h.b16 %v160
    %v526 = vunpack.c.l.b16 %v161
    %v527 = vunpack.c.h.b16 %v161
    %v528 = vunpack.c.l.b16 %v162
    %v529 = vunpack.c.h.b16 %v162
    %v530 = vunpack.c.l.b16 %v163
    %v531 = vunpack.c.h.b16 %v163
    %v532 = vunpack.c.l.b16 %v164
    %v533 = vunpack.c.h.b16 %v164
    %v534 = vunpack.c.l.b16 %v165
    %v535 = vunpack.c.h.b16 %v165
    %v536 = vunpack.c.l.b16 %v166
    %v537 = vunpack.c.h.b16 %v166
    %v538 = vunpack.c.l.b16 %v167
    %v539 = vunpack.c.h.b16 %v167
    %v540 = vunpack.c.l.b16 %v168
    %v541 = vunpack.c.h.b16 %v168
    %v542 = vunpack.c.l.b16 %v169
    %v543 = vunpack.c.h.b16 %v169
    %v544 = vunpack.c.l.b16 %v170
    %v545 = vunpack.c.h.b16 %v170
    %v546 = vunpack.c.l.b16 %v171
    %v547 = vunpack.c.h.b16 %v171
    %v548 = vunpack.c.l.b16 %v172
    %v549 = vunpack.c.h.b16 %v172
    %v550 = vunpack.c.l.b16 %v173
    %v551 = vunpack.c.h.b16 %v173
    %v552 = vunpack.c.l.b16 %v174
    %v553 = vunpack.c.h.b16 %v174
    %v554 = vunpack.c.l.b16 %v175
    %v555 = vunpack.c.h.b16 %v175
    %v556 = vunpack.c.l.b16 %v176
    %v557 = vunpack.c.h.b16 %v176
    %v558 = vunpack.c.l.b16 %v177
    %v559 = vunpack.c.h.b16 %v177
    %v560 = vunpack.c.l.b16 %v178
    %v561 = vunpack.c.h.b16 %v178
    %v562 = vunpack.c.l.b16 %v179
    %v563 = vunpack.c.h.b16 %v179
    %v564 = vunpack.c.l.b16 %v180
    %v565 = vunpack.c.h.b16 %v180
    %v566 = vunpack.c.l.b16 %v181
    %v567 = vunpack.c.h.b16 %v181
    %v568 = vunpack.c.l.b16 %v182
    %v569 = vunpack.c.h.b16 %v182
    %v570 = vunpack.c.l.b16 %v183
    %v571 = vunpack.c.h.b16 %v183
    %v572 = vunpack.c.l.b16 %v184
    %v573 = vunpack.c.h.b16 %v184
    %v574 = vunpack.c.l.b16 %v185
    %v575 = vunpack.c.h.b16 %v185
    %v576 = vunpack.c.l.b16 %v186
    %v577 = vunpack.c.h.b16 %v186
    %v578 = vunpack.c.l.b16 %v187
    %v579 = vunpack.c.h.b16 %v187
    %v580 = vunpack.c.l.b16 %v188
    %v581 = vunpack.c.h.b16 %v188
    %v582 = vunpack.c.l.b16 %v189
    %v583 = vunpack.c.h.b16 %v189
    %v584 = vunpack.c.l.b16 %v190
    %v585 = vunpack.c.h.b16 %v190
    %v586 = vunpack.c.l.b16 %v191
    %v587 = vunpack.c.h.b16 %v191
    %v588 = vunpack.c.l.b16 %v192
    %v589 = vunpack.c.h.b16 %v192
    %v590 = vunpack.c.l.b16 %v193
    %v591 = vunpack.c.h.b16 %v193
    %v592 = vunpack.c.l.b16 %v194
    %v593 = vunpack.c.h.b16 %v194
    %v594 = vunpack.c.l.b16 %v195
    %v595 = vunpack.c.h.b16 %v195
    %v596 = vunpack.c.l.b16 %v196
    %v597 = vunpack.c.h.b16 %v196
    %v598 = vunpack.c.l.b16 %v197
    %v599 = vunpack.c.h.b16 %v197
    %v600 = vunpack.c.l.b16 %v198
    %v601 = vunpack.c.h.b16 %v198
    %v602 = vunpack.c.l.b16 %v199
    %v603 = vunpack.c.h.b16 %v199
    %v604 = vunpack.c.l.b16 %v200
    %v605 = vunpack.c.h.b16 %v200
    %v606 = vunpack.c.l.b16 %v201
    %v607 = vunpack.c.h.b16 %v201
    %v608 = vpack.c.b16 %v356, %v352
    %v609 = vpack.c.b16 %v357, %v353
    %v610 = vpack.c.b16 %v358, %v354
    %v611 = vpack.c.b16 %v359, %v355
    %v612 = vpack.c.b16 %v364, %v360
    %v613 = vpack.c.b16 %v365, %v361
    %v614 = vpack.c.b16 %v366, %v362
    %v615 = vpack.c.b16 %v367, %v363
    %v616 = vpack.c.b16 %v372, %v368
    %v617 = vpack.c.b16 %v373, %v369
    %v618 = vpack.c.b16 %v374, %v370
    %v619 = vpack.c.b16 %v375, %v371
    %v620 = vpack.c.b16 %v380, %v376
    %v621 = vpack.c.b16 %v381, %v377
    %v622 = vpack.c.b16 %v382, %v378
    %v623 = vpack.c.b16 %v383, %v379
    %v624 = vpack.c.b16 %v388, %v384
    %v625 = vpack.c.b16 %v389, %v385
    %v626 = vpack.c.b16 %v390, %v386
    %v627 = vpack.c.b16 %v391, %v387
    %v628 = vpack.c.b16 %v396, %v392
    %v629 = vpack.c.b16 %v397, %v393
    %v630 = vpack.c.b16 %v398, %v394
    %v631 = vpack.c.b16 %v399, %v395
    %v632 = vpack.c.b16 %v404, %v400
    %v633 = vpack.c.b16 %v405, %v401
    %v634 = vpack.c.b16 %v406, %v402
    %v635 = vpack.c.b16 %v407, %v403
    %v636 = vpack.c.b16 %v412, %v408
    %v637 = vpack.c.b16 %v413, %v409
    %v638 = vpack.c.b16 %v414, %v410
    %v639 = vpack.c.b16 %v415, %v411
    %v640 = vpack.c.b16 %v420, %v416
    %v641 = vpack.c.b16 %v421, %v417
    %v642 = vpack.c.b16 %v422, %v418
    %v643 = vpack.c.b16 %v423, %v419
    %v644 = vpack.c.b16 %v428, %v424
    %v645 = vpack.c.b16 %v429, %v425
    %v646 = vpack.c.b16 %v430, %v426
    %v647 = vpack.c.b16 %v431, %v427
    %v648 = vpack.c.b16 %v436, %v432
    %v649 = vpack.c.b16 %v437, %v433
    %v650 = vpack.c.b16 %v438, %v434
    %v651 = vpack.c.b16 %v439, %v435
    %v652 = vpack.c.b16 %v444, %v440
    %v653 = vpack.c.b16 %v445, %v441
    %v654 = vpack.c.b16 %v446, %v442
    %v655 = vpack.c.b16 %v447, %v443
    %v656 = vpack.c.b16 %v452, %v448
    %v657 = vpack.c.b16 %v453, %v449
    %v658 = vpack.c.b16 %v454, %v450
    %v659 = vpack.c.b16 %v455, %v451
    %v660 = vpack.c.b16 %v460, %v456
    %v661 = vpack.c.b16 %v461, %v457
    %v662 = vpack.c.b16 %v462, %v458
    %v663 = vpack.c.b16 %v463, %v459
    %v664 = vpack.c.b16 %v468, %v464
    %v665 = vpack.c.b16 %v469, %v465
    %v666 = vpack.c.b16 %v470, %v466
    %v667 = vpack.c.b16 %v471, %v467
    %v668 = vpack.c.b16 %v476, %v472
    %v669 = vpack.c.b16 %v477, %v473
    %v670 = vpack.c.b16 %v478, %v474
    %v671 = vpack.c.b16 %v479, %v475
    %v672 = vpack.c.b16 %v484, %v480
    %v673 = vpack.c.b16 %v485, %v481
    %v674 = vpack.c.b16 %v486, %v482
    %v675 = vpack.c.b16 %v487, %v483
    %v676 = vpack.c.b16 %v492, %v488
    %v677 = vpack.c.b16 %v493, %v489
    %v678 = vpack.c.b16 %v494, %v490
    %v679 = vpack.c.b16 %v495, %v491
    %v680 = vpack.c.b16 %v500, %v496
    %v681 = vpack.c.b16 %v501, %v497
    %v682 = vpack.c.b16 %v502, %v498
    %v683 = vpack.c.b16 %v503, %v499
    %v684 = vpack.c.b16 %v508, %v504
    %v685 = vpack.c.b16 %v509, %v505
    %v686 = vpack.c.b16 %v510, %v506
    %v687 = vpack.c.b16 %v511, %v507
    %v688 = vpack.c.b16 %v516, %v512
    %v689 = vpack.c.b16 %v517, %v513
    %v690 = vpack.c.b16 %v518, %v514
    %v691 = vpack.c.b16 %v519, %v515
    %v692 = vpack.c.b16 %v524, %v520
    %v693 = vpack.c.b16 %v525, %v521
    %v694 = vpack.c.b16 %v526, %v522
    %v695 = vpack.c.b16 %v527, %v523
    %v696 = vpack.c.b16 %v532, %v528
    %v697 = vpack.c.b16 %v533, %v529
    %v698 = vpack.c.b16 %v534, %v530
    %v699 = vpack.c.b16 %v535, %v531
    %v700 = vpack.c.b16 %v540, %v536
    %v701 = vpack.c.b16 %v541, %v537
    %v702 = vpack.c.b16 %v542, %v538
    %v703 = vpack.c.b16 %v543, %v539
    %v704 = vpack.c.b16 %v548, %v544
    %v705 = vpack.c.b16 %v549, %v545
    %v706 = vpack.c.b16 %v550, %v546
    %v707 = vpack.c.b16 %v551, %v547
    %v708 = vpack.c.b16 %v556, %v552
    %v709 = vpack.c.b16 %v557, %v553
    %v710 = vpack.c.b16 %v558, %v554
    %v711 = vpack.c.b16 %v559, %v555
    %v712 = vpack.c.b16 %v564, %v560
    %v713 = vpack.c.b16 %v565, %v561
    %v714 = vpack.c.b16 %v566, %v562
    %v715 = vpack.c.b16 %v567, %v563
    %v716 = vpack.c.b16 %v572, %v568
    %v717 = vpack.c.b16 %v573, %v569
    %v718 = vpack.c.b16 %v574, %v570
    %v719 = vpack.c.b16 %v575, %v571
    %v720 = vpack.c.b16 %v580, %v576
    %v721 = vpack.c.b16 %v581, %v577
    %v722 = vpack.c.b16 %v582, %v578
    %v723 = vpack.c.b16 %v583, %v579
    %v724 = vpack.c.b16 %v588, %v584
    %v725 = vpack.c.b16 %v589, %v585
    %v726 = vpack.c.b16 %v590, %v586
    %v727 = vpack.c.b16 %v591, %v587
    %v728 = vpack.c.b16 %v596, %v592
    %v729 = vpack.c.b16 %v597, %v593
    %v730 = vpack.c.b16 %v598, %v594
    %v731 = vpack.c.b16 %v599, %v595
    %v732 = vpack.c.b16 %v604, %v600
    %v733 = vpack.c.b16 %v605, %v601
    %v734 = vpack.c.b16 %v606, %v602
    %v735 = vpack.c.b16 %v607, %v603
    %864 = vmatprep.subr.bf16.mxu0 %v609
    %865 = vmatpush1.bf16.msra.mxu0 %v608
    %866 = vmatprep.subr.bf16.mxu0 %v613
    %867 = vmatpush1.bf16.msra.mxu0 %v612
    %868 = vmatprep.subr.bf16.mxu0 %v617
    %869 = vmatpush1.bf16.msra.mxu0 %v616
    %870 = vmatprep.subr.bf16.mxu0 %v621
    %871 = vmatpush1.bf16.msra.mxu0 %v620
    %872 = vmatprep.subr.bf16.mxu0 %v625
    %873 = vmatpush1.bf16.msra.mxu0 %v624
    %874 = vmatprep.subr.bf16.mxu0 %v629
    %875 = vmatpush1.bf16.msra.mxu0 %v628
    %876 = vmatprep.subr.bf16.mxu0 %v633
    %877 = vmatpush1.bf16.msra.mxu0 %v632
    %878 = vmatprep.subr.bf16.mxu0 %v637
    %879 = vmatpush1.bf16.msra.mxu0 %v636
    %880 = vmatprep.subr.bf16.mxu0 %v641
    %881 = vmatpush1.bf16.msra.mxu0 %v640
    %882 = vmatprep.subr.bf16.mxu0 %v645
    %883 = vmatpush1.bf16.msra.mxu0 %v644
    %884 = vmatprep.subr.bf16.mxu0 %v649
    %885 = vmatpush1.bf16.msra.mxu0 %v648
    %886 = vmatprep.subr.bf16.mxu0 %v653
    %887 = vmatpush1.bf16.msra.mxu0 %v652
    %888 = vmatprep.subr.bf16.mxu0 %v657
    %889 = vmatpush1.bf16.msra.mxu0 %v656
    %890 = vmatprep.subr.bf16.mxu0 %v661
    %891 = vmatpush1.bf16.msra.mxu0 %v660
    %892 = vmatprep.subr.bf16.mxu0 %v665
    %893 = vmatpush1.bf16.msra.mxu0 %v664
    %894 = vmatprep.subr.bf16.mxu0 %v669
    %895 = vmatpush1.bf16.msra.mxu0 %v668
    %896 = vmatprep.mubr.bf16.mxu0 %v71
    %897 = vmatmul.mubr.bf16.gmra.mrb[0].mxu0 %v70
    %v898 = vpop.f32.mrb[0].mxu0
    %v899 = vadd.f32 %v207, %v898
    %v900 = vpop.f32.mrb[0].mxu0
    %v901 = vadd.f32 %v211, %v900
    %v902 = vpop.f32.mrb[0].mxu0
    %v903 = vadd.f32 %v207, %v902
    %v904 = vpop.f32.mrb[0].mxu0
    %v905 = vadd.f32 %v211, %v904
    %906 = vdwg.mxu0
    %907 = vmatprep.subr.bf16.mxu0 %v673
    %908 = vmatpush1.bf16.msra.mxu0 %v672
    %909 = vmatprep.subr.bf16.mxu0 %v677
    %910 = vmatpush1.bf16.msra.mxu0 %v676
    %911 = vmatprep.subr.bf16.mxu0 %v681
    %912 = vmatpush1.bf16.msra.mxu0 %v680
    %913 = vmatprep.subr.bf16.mxu0 %v685
    %914 = vmatpush1.bf16.msra.mxu0 %v684
    %915 = vmatprep.subr.bf16.mxu0 %v689
    %916 = vmatpush1.bf16.msra.mxu0 %v688
    %917 = vmatprep.subr.bf16.mxu0 %v693
    %918 = vmatpush1.bf16.msra.mxu0 %v692
    %919 = vmatprep.subr.bf16.mxu0 %v697
    %920 = vmatpush1.bf16.msra.mxu0 %v696
    %921 = vmatprep.subr.bf16.mxu0 %v701
    %922 = vmatpush1.bf16.msra.mxu0 %v700
    %923 = vmatprep.subr.bf16.mxu0 %v705
    %924 = vmatpush1.bf16.msra.mxu0 %v704
    %925 = vmatprep.subr.bf16.mxu0 %v709
    %926 = vmatpush1.bf16.msra.mxu0 %v708
    %927 = vmatprep.subr.bf16.mxu0 %v713
    %928 = vmatpush1.bf16.msra.mxu0 %v712
    %929 = vmatprep.subr.bf16.mxu0 %v717
    %930 = vmatpush1.bf16.msra.mxu0 %v716
    %931 = vmatprep.subr.bf16.mxu0 %v721
    %932 = vmatpush1.bf16.msra.mxu0 %v720
    %933 = vmatprep.subr.bf16.mxu0 %v725
    %934 = vmatpush1.bf16.msra.mxu0 %v724
    %935 = vmatprep.subr.bf16.mxu0 %v729
    %936 = vmatpush1.bf16.msra.mxu0 %v728
    %937 = vmatprep.subr.bf16.mxu0 %v733
    %938 = vmatpush1.bf16.msra.mxu0 %v732
    %939 = vmatprep.mubr.bf16.mxu0 %v73
    %940 = vmatmul.mubr.bf16.gmra.mrb[0].mxu0 %v72
    %v941 = vpop.f32.mrb[0].mxu0
    %v942 = vadd.f32 %v899, %v941
    %v943 = vpop.f32.mrb[0].mxu0
    %v944 = vadd.f32 %v901, %v943
    %v945 = vpop.f32.mrb[0].mxu0
    %v946 = vadd.f32 %v903, %v945
    %v947 = vpop.f32.mrb[0].mxu0
    %v948 = vadd.f32 %v905, %v947
    %949 = vdwg.mxu0
    %950 = vmatprep.subr.bf16.mxu0 %v611
    %951 = vmatpush1.bf16.msra.mxu0 %v610
    %952 = vmatprep.subr.bf16.mxu0 %v615
    %953 = vmatpush1.bf16.msra.mxu0 %v614
    %954 = vmatprep.subr.bf16.mxu0 %v619
    %955 = vmatpush1.bf16.msra.mxu0 %v618
    %956 = vmatprep.subr.bf16.mxu0 %v623
    %957 = vmatpush1.bf16.msra.mxu0 %v622
    %958 = vmatprep.subr.bf16.mxu0 %v627
    %959 = vmatpush1.bf16.msra.mxu0 %v626
    %960 = vmatprep.subr.bf16.mxu0 %v631
    %961 = vmatpush1.bf16.msra.mxu0 %v630
    %962 = vmatprep.subr.bf16.mxu0 %v635
    %963 = vmatpush1.bf16.msra.mxu0 %v634
    %964 = vmatprep.subr.bf16.mxu0 %v639
    %965 = vmatpush1.bf16.msra.mxu0 %v638
    %966 = vmatprep.subr.bf16.mxu0 %v643
    %967 = vmatpush1.bf16.msra.mxu0 %v642
    %968 = vmatprep.subr.bf16.mxu0 %v647
    %969 = vmatpush1.bf16.msra.mxu0 %v646
    %970 = vmatprep.subr.bf16.mxu0 %v651
    %971 = vmatpush1.bf16.msra.mxu0 %v650
    %972 = vmatprep.subr.bf16.mxu0 %v655
    %973 = vmatpush1.bf16.msra.mxu0 %v654
    %974 = vmatprep.subr.bf16.mxu0 %v659
    %975 = vmatpush1.bf16.msra.mxu0 %v658
    %976 = vmatprep.subr.bf16.mxu0 %v663
    %977 = vmatpush1.bf16.msra.mxu0 %v662
    %978 = vmatprep.subr.bf16.mxu0 %v667
    %979 = vmatpush1.bf16.msra.mxu0 %v666
    %980 = vmatprep.subr.bf16.mxu0 %v671
    %981 = vmatpush1.bf16.msra.mxu0 %v670
    %982 = vmatprep.mubr.bf16.mxu0 %v71
    %983 = vmatmul.mubr.bf16.gmra.mrb[0].mxu0 %v70
    %v984 = vpop.f32.mrb[0].mxu0
    %v985 = vadd.f32 %v215, %v984
    %v986 = vpop.f32.mrb[0].mxu0
    %v987 = vadd.f32 %v219, %v986
    %v988 = vpop.f32.mrb[0].mxu0
    %v989 = vadd.f32 %v215, %v988
    %v990 = vpop.f32.mrb[0].mxu0
    %v991 = vadd.f32 %v219, %v990
    %992 = vdwg.mxu0
    %993 = vmatprep.subr.bf16.mxu0 %v675
    %994 = vmatpush1.bf16.msra.mxu0 %v674
    %995 = vmatprep.subr.bf16.mxu0 %v679
    %996 = vmatpush1.bf16.msra.mxu0 %v678
    %997 = vmatprep.subr.bf16.mxu0 %v683
    %998 = vmatpush1.bf16.msra.mxu0 %v682
    %999 = vmatprep.subr.bf16.mxu0 %v687
    %1000 = vmatpush1.bf16.msra.mxu0 %v686
    %1001 = vmatprep.subr.bf16.mxu0 %v691
    %1002 = vmatpush1.bf16.msra.mxu0 %v690
    %1003 = vmatprep.subr.bf16.mxu0 %v695
    %1004 = vmatpush1.bf16.msra.mxu0 %v694
    %1005 = vmatprep.subr.bf16.mxu0 %v699
    %1006 = vmatpush1.bf16.msra.mxu0 %v698
    %1007 = vmatprep.subr.bf16.mxu0 %v703
    %1008 = vmatpush1.bf16.msra.mxu0 %v702
    %1009 = vmatprep.subr.bf16.mxu0 %v707
    %1010 = vmatpush1.bf16.msra.mxu0 %v706
    %1011 = vmatprep.subr.bf16.mxu0 %v711
    %1012 = vmatpush1.bf16.msra.mxu0 %v710
    %1013 = vmatprep.subr.bf16.mxu0 %v715
    %1014 = vmatpush1.bf16.msra.mxu0 %v714
    %1015 = vmatprep.subr.bf16.mxu0 %v719
    %1016 = vmatpush1.bf16.msra.mxu0 %v718
    %1017 = vmatprep.subr.bf16.mxu0 %v723
    %1018 = vmatpush1.bf16.msra.mxu0 %v722
    %1019 = vmatprep.subr.bf16.mxu0 %v727
    %1020 = vmatpush1.bf16.msra.mxu0 %v726
    %1021 = vmatprep.subr.bf16.mxu0 %v731
    %1022 = vmatpush1.bf16.msra.mxu0 %v730
    %1023 = vmatprep.subr.bf16.mxu0 %v735
    %1024 = vmatpush1.bf16.msra.mxu0 %v734
    %1025 = vmatprep.mubr.bf16.mxu0 %v73
    %1026 = vmatmul.mubr.bf16.gmra.mrb[0].mxu0 %v72
    %v1027 = vpop.f32.mrb[0].mxu0
    %v1028 = vadd.f32 %v985, %v1027
    %v1029 = vpop.f32.mrb[0].mxu0
    %v1030 = vadd.f32 %v987, %v1029
    %v1031 = vpop.f32.mrb[0].mxu0
    %v1032 = vadd.f32 %v989, %v1031
    %v1033 = vpop.f32.mrb[0].mxu0
    %v1034 = vadd.f32 %v991, %v1033
    %1035 = vdwg.mxu0
    %v1036 = vmax.f32 %v942, 0.0
    %v1037 = vmax.f32 %v944, 0.0
    %v1038 = vmax.f32 %v1028, 0.0
    %v1039 = vmax.f32 %v1030, 0.0
    %v1040 = vmax.f32 %v946, 0.0
    %v1041 = vmax.f32 %v948, 0.0
    %v1042 = vmax.f32 %v1032, 0.0
    %v1043 = vmax.f32 %v1034, 0.0
    %v1044 = vpack.c.bf16 %v1040, %v1036
    %v1045 = vpack.c.bf16 %v1041, %v1037
    %v1046 = vpack.c.bf16 %v1042, %v1038
    %v1047 = vpack.c.bf16 %v1043, %v1039
    %v1048 = vld [vmem:[#allocation7] sm:$0xff]
    %v1049 = vld [vmem:[#allocation7 + $0x8] sm:$0xff]
    %v1050 = vld [vmem:[#allocation7 + $0x10] sm:$0xff]
    %v1051 = vld [vmem:[#allocation7 + $0x18] sm:$0xff]
    %v1052 = vld [vmem:[#allocation7 + $0x20] sm:$0xff]
    %v1053 = vld [vmem:[#allocation7 + $0x28] sm:$0xff]
    %v1054 = vld [vmem:[#allocation7 + $0x30] sm:$0xff]
    %v1055 = vld [vmem:[#allocation7 + $0x38] sm:$0xff]
    %v1056 = vld [vmem:[#allocation7 + $0x40] sm:$0xff]
    %v1057 = vld [vmem:[#allocation7 + $0x48] sm:$0xff]
    %v1058 = vld [vmem:[#allocation7 + $0x50] sm:$0xff]
    %v1059 = vld [vmem:[#allocation7 + $0x58] sm:$0xff]
    %v1060 = vld [vmem:[#allocation7 + $0x60] sm:$0xff]
    %v1061 = vld [vmem:[#allocation7 + $0x68] sm:$0xff]
    %v1062 = vld [vmem:[#allocation7 + $0x70] sm:$0xff]
    %v1063 = vld [vmem:[#allocation7 + $0x78] sm:$0xff]
    %v1064 = vld [vmem:[#allocation7 + $0x80] sm:$0xff]
    %v1065 = vld [vmem:[#allocation7 + $0x88] sm:$0xff]
    %v1066 = vld [vmem:[#allocation7 + $0x90] sm:$0xff]
    %v1067 = vld [vmem:[#allocation7 + $0x98] sm:$0xff]
    %v1068 = vld [vmem:[#allocation7 + $0xa0] sm:$0xff]
    %v1069 = vld [vmem:[#allocation7 + $0xa8] sm:$0xff]
    %v1070 = vld [vmem:[#allocation7 + $0xb0] sm:$0xff]
    %v1071 = vld [vmem:[#allocation7 + $0xb8] sm:$0xff]
    %v1072 = vld [vmem:[#allocation7 + $0xc0] sm:$0xff]
    %v1073 = vld [vmem:[#allocation7 + $0xc8] sm:$0xff]
    %v1074 = vld [vmem:[#allocation7 + $0xd0] sm:$0xff]
    %v1075 = vld [vmem:[#allocation7 + $0xd8] sm:$0xff]
    %v1076 = vld [vmem:[#allocation7 + $0xe0] sm:$0xff]
    %v1077 = vld [vmem:[#allocation7 + $0xe8] sm:$0xff]
    %v1078 = vld [vmem:[#allocation7 + $0xf0] sm:$0xff]
    %v1079 = vld [vmem:[#allocation7 + $0xf8] sm:$0xff]
    %v1080 = vld [vmem:[#allocation7 + $0x100] sm:$0xff]
    %v1081 = vld [vmem:[#allocation7 + $0x108] sm:$0xff]
    %v1082 = vld [vmem:[#allocation7 + $0x110] sm:$0xff]
    %v1083 = vld [vmem:[#allocation7 + $0x118] sm:$0xff]
    %v1084 = vld [vmem:[#allocation7 + $0x120] sm:$0xff]
    %v1085 = vld [vmem:[#allocation7 + $0x128] sm:$0xff]
    %v1086 = vld [vmem:[#allocation7 + $0x130] sm:$0xff]
    %v1087 = vld [vmem:[#allocation7 + $0x138] sm:$0xff]
    %v1088 = vld [vmem:[#allocation7 + $0x140] sm:$0xff]
    %v1089 = vld [vmem:[#allocation7 + $0x148] sm:$0xff]
    %v1090 = vld [vmem:[#allocation7 + $0x150] sm:$0xff]
    %v1091 = vld [vmem:[#allocation7 + $0x158] sm:$0xff]
    %v1092 = vld [vmem:[#allocation7 + $0x160] sm:$0xff]
    %v1093 = vld [vmem:[#allocation7 + $0x168] sm:$0xff]
    %v1094 = vld [vmem:[#allocation7 + $0x170] sm:$0xff]
    %v1095 = vld [vmem:[#allocation7 + $0x178] sm:$0xff]
    %v1096 = vld [vmem:[#allocation7 + $0x180] sm:$0xff]
    %v1097 = vld [vmem:[#allocation7 + $0x188] sm:$0xff]
    %v1098 = vld [vmem:[#allocation7 + $0x190] sm:$0xff]
    %v1099 = vld [vmem:[#allocation7 + $0x198] sm:$0xff]
    %v1100 = vld [vmem:[#allocation7 + $0x1a0] sm:$0xff]
    %v1101 = vld [vmem:[#allocation7 + $0x1a8] sm:$0xff]
    %v1102 = vld [vmem:[#allocation7 + $0x1b0] sm:$0xff]
    %v1103 = vld [vmem:[#allocation7 + $0x1b8] sm:$0xff]
    %v1104 = vld [vmem:[#allocation7 + $0x1c0] sm:$0xff]
    %v1105 = vld [vmem:[#allocation7 + $0x1c8] sm:$0xff]
    %v1106 = vld [vmem:[#allocation7 + $0x1d0] sm:$0xff]
    %v1107 = vld [vmem:[#allocation7 + $0x1d8] sm:$0xff]
    %v1108 = vld [vmem:[#allocation7 + $0x1e0] sm:$0xff]
    %v1109 = vld [vmem:[#allocation7 + $0x1e8] sm:$0xff]
    %v1110 = vld [vmem:[#allocation7 + $0x1f0] sm:$0xff]
    %v1111 = vld [vmem:[#allocation7 + $0x1f8] sm:$0xff]
    %v1112 = vld [vmem:[#allocation7 + $0x200] sm:$0xff]
    %v1113 = vld [vmem:[#allocation7 + $0x208] sm:$0xff]
    %v1114 = vld [vmem:[#allocation7 + $0x210] sm:$0xff]
    %v1115 = vld [vmem:[#allocation7 + $0x218] sm:$0xff]
    %v1116 = vld [vmem:[#allocation7 + $0x220] sm:$0xff]
    %v1117 = vld [vmem:[#allocation7 + $0x228] sm:$0xff]
    %v1118 = vld [vmem:[#allocation7 + $0x230] sm:$0xff]
    %v1119 = vld [vmem:[#allocation7 + $0x238] sm:$0xff]
    %v1120 = vld [vmem:[#allocation7 + $0x240] sm:$0xff]
    %v1121 = vld [vmem:[#allocation7 + $0x248] sm:$0xff]
    %v1122 = vld [vmem:[#allocation7 + $0x250] sm:$0xff]
    %v1123 = vld [vmem:[#allocation7 + $0x258] sm:$0xff]
    %v1124 = vld [vmem:[#allocation7 + $0x260] sm:$0xff]
    %v1125 = vld [vmem:[#allocation7 + $0x268] sm:$0xff]
    %v1126 = vld [vmem:[#allocation7 + $0x270] sm:$0xff]
    %v1127 = vld [vmem:[#allocation7 + $0x278] sm:$0xff]
    %v1128 = vld [vmem:[#allocation7 + $0x280] sm:$0xff]
    %v1129 = vld [vmem:[#allocation7 + $0x288] sm:$0xff]
    %v1130 = vld [vmem:[#allocation7 + $0x290] sm:$0xff]
    %v1131 = vld [vmem:[#allocation7 + $0x298] sm:$0xff]
    %v1132 = vld [vmem:[#allocation7 + $0x2a0] sm:$0xff]
    %v1133 = vld [vmem:[#allocation7 + $0x2a8] sm:$0xff]
    %v1134 = vld [vmem:[#allocation7 + $0x2b0] sm:$0xff]
    %v1135 = vld [vmem:[#allocation7 + $0x2b8] sm:$0xff]
    %v1136 = vld [vmem:[#allocation7 + $0x2c0] sm:$0xff]
    %v1137 = vld [vmem:[#allocation7 + $0x2c8] sm:$0xff]
    %v1138 = vld [vmem:[#allocation7 + $0x2d0] sm:$0xff]
    %v1139 = vld [vmem:[#allocation7 + $0x2d8] sm:$0xff]
    %v1140 = vld [vmem:[#allocation7 + $0x2e0] sm:$0xff]
    %v1141 = vld [vmem:[#allocation7 + $0x2e8] sm:$0xff]
    %v1142 = vld [vmem:[#allocation7 + $0x2f0] sm:$0xff]
    %v1143 = vld [vmem:[#allocation7 + $0x2f8] sm:$0xff]
    %v1144 = vld [vmem:[#allocation7 + $0x300] sm:$0xff]
    %v1145 = vld [vmem:[#allocation7 + $0x308] sm:$0xff]
    %v1146 = vld [vmem:[#allocation7 + $0x310] sm:$0xff]
    %v1147 = vld [vmem:[#allocation7 + $0x318] sm:$0xff]
    %v1148 = vld [vmem:[#allocation7 + $0x320] sm:$0xff]
    %v1149 = vld [vmem:[#allocation7 + $0x328] sm:$0xff]
    %v1150 = vld [vmem:[#allocation7 + $0x330] sm:$0xff]
    %v1151 = vld [vmem:[#allocation7 + $0x338] sm:$0xff]
    %v1152 = vld [vmem:[#allocation7 + $0x340] sm:$0xff]
    %v1153 = vld [vmem:[#allocation7 + $0x348] sm:$0xff]
    %v1154 = vld [vmem:[#allocation7 + $0x350] sm:$0xff]
    %v1155 = vld [vmem:[#allocation7 + $0x358] sm:$0xff]
    %v1156 = vld [vmem:[#allocation7 + $0x360] sm:$0xff]
    %v1157 = vld [vmem:[#allocation7 + $0x368] sm:$0xff]
    %v1158 = vld [vmem:[#allocation7 + $0x370] sm:$0xff]
    %v1159 = vld [vmem:[#allocation7 + $0x378] sm:$0xff]
    %v1160 = vld [vmem:[#allocation7 + $0x380] sm:$0xff]
    %v1161 = vld [vmem:[#allocation7 + $0x388] sm:$0xff]
    %v1162 = vld [vmem:[#allocation7 + $0x390] sm:$0xff]
    %v1163 = vld [vmem:[#allocation7 + $0x398] sm:$0xff]
    %v1164 = vld [vmem:[#allocation7 + $0x3a0] sm:$0xff]
    %v1165 = vld [vmem:[#allocation7 + $0x3a8] sm:$0xff]
    %v1166 = vld [vmem:[#allocation7 + $0x3b0] sm:$0xff]
    %v1167 = vld [vmem:[#allocation7 + $0x3b8] sm:$0xff]
    %v1168 = vld [vmem:[#allocation7 + $0x3c0] sm:$0xff]
    %v1169 = vld [vmem:[#allocation7 + $0x3c8] sm:$0xff]
    %v1170 = vld [vmem:[#allocation7 + $0x3d0] sm:$0xff]
    %v1171 = vld [vmem:[#allocation7 + $0x3d8] sm:$0xff]
    %v1172 = vld [vmem:[#allocation7 + $0x3e0] sm:$0xff]
    %v1173 = vld [vmem:[#allocation7 + $0x3e8] sm:$0xff]
    %v1174 = vld [vmem:[#allocation7 + $0x3f0] sm:$0xff]
    %v1175 = vld [vmem:[#allocation7 + $0x3f8] sm:$0xff]
    %v1176 = vld [vmem:[#allocation7 + $0x400] sm:$0xff]
    %v1177 = vld [vmem:[#allocation7 + $0x408] sm:$0xff]
    %v1178 = vld [vmem:[#allocation7 + $0x410] sm:$0xff]
    %v1179 = vld [vmem:[#allocation7 + $0x418] sm:$0xff]
    %v1180 = vld [vmem:[#allocation7 + $0x420] sm:$0xff]
    %v1181 = vld [vmem:[#allocation7 + $0x428] sm:$0xff]
    %v1182 = vld [vmem:[#allocation7 + $0x430] sm:$0xff]
    %v1183 = vld [vmem:[#allocation7 + $0x438] sm:$0xff]
    %v1184 = vld [vmem:[#allocation7 + $0x440] sm:$0xff]
    %v1185 = vld [vmem:[#allocation7 + $0x448] sm:$0xff]
    %v1186 = vld [vmem:[#allocation7 + $0x450] sm:$0xff]
    %v1187 = vld [vmem:[#allocation7 + $0x458] sm:$0xff]
    %v1188 = vld [vmem:[#allocation7 + $0x460] sm:$0xff]
    %v1189 = vld [vmem:[#allocation7 + $0x468] sm:$0xff]
    %v1190 = vld [vmem:[#allocation7 + $0x470] sm:$0xff]
    %v1191 = vld [vmem:[#allocation7 + $0x478] sm:$0xff]
    %v1192 = vld [vmem:[#allocation7 + $0x480] sm:$0xff]
    %v1193 = vld [vmem:[#allocation7 + $0x488] sm:$0xff]
    %v1194 = vld [vmem:[#allocation7 + $0x490] sm:$0xff]
    %v1195 = vld [vmem:[#allocation7 + $0x498] sm:$0xff]
    %v1196 = vld [vmem:[#allocation7 + $0x4a0] sm:$0xff]
    %v1197 = vld [vmem:[#allocation7 + $0x4a8] sm:$0xff]
    %v1198 = vld [vmem:[#allocation7 + $0x4b0] sm:$0xff]
    %v1199 = vld [vmem:[#allocation7 + $0x4b8] sm:$0xff]
    %v1200 = vld [vmem:[#allocation7 + $0x4c0] sm:$0xff]
    %v1201 = vld [vmem:[#allocation7 + $0x4c8] sm:$0xff]
    %v1202 = vld [vmem:[#allocation7 + $0x4d0] sm:$0xff]
    %v1203 = vld [vmem:[#allocation7 + $0x4d8] sm:$0xff]
    %v1204 = vld [vmem:[#allocation7 + $0x4e0] sm:$0xff]
    %v1205 = vld [vmem:[#allocation7 + $0x4e8] sm:$0xff]
    %v1206 = vld [vmem:[#allocation7 + $0x4f0] sm:$0xff]
    %v1207 = vld [vmem:[#allocation7 + $0x4f8] sm:$0xff]
    %v1208 = vld [vmem:[#allocation7 + $0x500] sm:$0xff]
    %v1209 = vld [vmem:[#allocation7 + $0x508] sm:$0xff]
    %v1210 = vld [vmem:[#allocation7 + $0x510] sm:$0xff]
    %v1211 = vld [vmem:[#allocation7 + $0x518] sm:$0xff]
    %v1212 = vld [vmem:[#allocation7 + $0x520] sm:$0xff]
    %v1213 = vld [vmem:[#allocation7 + $0x528] sm:$0xff]
    %v1214 = vld [vmem:[#allocation7 + $0x530] sm:$0xff]
    %v1215 = vld [vmem:[#allocation7 + $0x538] sm:$0xff]
    %v1216 = vld [vmem:[#allocation7 + $0x540] sm:$0xff]
    %v1217 = vld [vmem:[#allocation7 + $0x548] sm:$0xff]
    %v1218 = vld [vmem:[#allocation7 + $0x550] sm:$0xff]
    %v1219 = vld [vmem:[#allocation7 + $0x558] sm:$0xff]
    %v1220 = vld [vmem:[#allocation7 + $0x560] sm:$0xff]
    %v1221 = vld [vmem:[#allocation7 + $0x568] sm:$0xff]
    %v1222 = vld [vmem:[#allocation7 + $0x570] sm:$0xff]
    %v1223 = vld [vmem:[#allocation7 + $0x578] sm:$0xff]
    %v1224 = vld [vmem:[#allocation7 + $0x580] sm:$0xff]
    %v1225 = vld [vmem:[#allocation7 + $0x588] sm:$0xff]
    %v1226 = vld [vmem:[#allocation7 + $0x590] sm:$0xff]
    %v1227 = vld [vmem:[#allocation7 + $0x598] sm:$0xff]
    %v1228 = vld [vmem:[#allocation7 + $0x5a0] sm:$0xff]
    %v1229 = vld [vmem:[#allocation7 + $0x5a8] sm:$0xff]
    %v1230 = vld [vmem:[#allocation7 + $0x5b0] sm:$0xff]
    %v1231 = vld [vmem:[#allocation7 + $0x5b8] sm:$0xff]
    %v1232 = vld [vmem:[#allocation7 + $0x5c0] sm:$0xff]
    %v1233 = vld [vmem:[#allocation7 + $0x5c8] sm:$0xff]
    %v1234 = vld [vmem:[#allocation7 + $0x5d0] sm:$0xff]
    %v1235 = vld [vmem:[#allocation7 + $0x5d8] sm:$0xff]
    %v1236 = vld [vmem:[#allocation7 + $0x5e0] sm:$0xff]
    %v1237 = vld [vmem:[#allocation7 + $0x5e8] sm:$0xff]
    %v1238 = vld [vmem:[#allocation7 + $0x5f0] sm:$0xff]
    %v1239 = vld [vmem:[#allocation7 + $0x5f8] sm:$0xff]
    %v1240 = vld [vmem:[#allocation7 + $0x600] sm:$0xff]
    %v1241 = vld [vmem:[#allocation7 + $0x608] sm:$0xff]
    %v1242 = vld [vmem:[#allocation7 + $0x610] sm:$0xff]
    %v1243 = vld [vmem:[#allocation7 + $0x618] sm:$0xff]
    %v1244 = vld [vmem:[#allocation7 + $0x620] sm:$0xff]
    %v1245 = vld [vmem:[#allocation7 + $0x628] sm:$0xff]
    %v1246 = vld [vmem:[#allocation7 + $0x630] sm:$0xff]
    %v1247 = vld [vmem:[#allocation7 + $0x638] sm:$0xff]
    %v1248 = vld [vmem:[#allocation7 + $0x640] sm:$0xff]
    %v1249 = vld [vmem:[#allocation7 + $0x648] sm:$0xff]
    %v1250 = vld [vmem:[#allocation7 + $0x650] sm:$0xff]
    %v1251 = vld [vmem:[#allocation7 + $0x658] sm:$0xff]
    %v1252 = vld [vmem:[#allocation7 + $0x660] sm:$0xff]
    %v1253 = vld [vmem:[#allocation7 + $0x668] sm:$0xff]
    %v1254 = vld [vmem:[#allocation7 + $0x670] sm:$0xff]
    %v1255 = vld [vmem:[#allocation7 + $0x678] sm:$0xff]
    %v1256 = vld [vmem:[#allocation7 + $0x680] sm:$0xff]
    %v1257 = vld [vmem:[#allocation7 + $0x688] sm:$0xff]
    %v1258 = vld [vmem:[#allocation7 + $0x690] sm:$0xff]
    %v1259 = vld [vmem:[#allocation7 + $0x698] sm:$0xff]
    %v1260 = vld [vmem:[#allocation7 + $0x6a0] sm:$0xff]
    %v1261 = vld [vmem:[#allocation7 + $0x6a8] sm:$0xff]
    %v1262 = vld [vmem:[#allocation7 + $0x6b0] sm:$0xff]
    %v1263 = vld [vmem:[#allocation7 + $0x6b8] sm:$0xff]
    %v1264 = vld [vmem:[#allocation7 + $0x6c0] sm:$0xff]
    %v1265 = vld [vmem:[#allocation7 + $0x6c8] sm:$0xff]
    %v1266 = vld [vmem:[#allocation7 + $0x6d0] sm:$0xff]
    %v1267 = vld [vmem:[#allocation7 + $0x6d8] sm:$0xff]
    %v1268 = vld [vmem:[#allocation7 + $0x6e0] sm:$0xff]
    %v1269 = vld [vmem:[#allocation7 + $0x6e8] sm:$0xff]
    %v1270 = vld [vmem:[#allocation7 + $0x6f0] sm:$0xff]
    %v1271 = vld [vmem:[#allocation7 + $0x6f8] sm:$0xff]
    %v1272 = vld [vmem:[#allocation7 + $0x700] sm:$0xff]
    %v1273 = vld [vmem:[#allocation7 + $0x708] sm:$0xff]
    %v1274 = vld [vmem:[#allocation7 + $0x710] sm:$0xff]
    %v1275 = vld [vmem:[#allocation7 + $0x718] sm:$0xff]
    %v1276 = vld [vmem:[#allocation7 + $0x720] sm:$0xff]
    %v1277 = vld [vmem:[#allocation7 + $0x728] sm:$0xff]
    %v1278 = vld [vmem:[#allocation7 + $0x730] sm:$0xff]
    %v1279 = vld [vmem:[#allocation7 + $0x738] sm:$0xff]
    %v1280 = vld [vmem:[#allocation7 + $0x740] sm:$0xff]
    %v1281 = vld [vmem:[#allocation7 + $0x748] sm:$0xff]
    %v1282 = vld [vmem:[#allocation7 + $0x750] sm:$0xff]
    %v1283 = vld [vmem:[#allocation7 + $0x758] sm:$0xff]
    %v1284 = vld [vmem:[#allocation7 + $0x760] sm:$0xff]
    %v1285 = vld [vmem:[#allocation7 + $0x768] sm:$0xff]
    %v1286 = vld [vmem:[#allocation7 + $0x770] sm:$0xff]
    %v1287 = vld [vmem:[#allocation7 + $0x778] sm:$0xff]
    %v1288 = vld [vmem:[#allocation7 + $0x780] sm:$0xff]
    %v1289 = vld [vmem:[#allocation7 + $0x788] sm:$0xff]
    %v1290 = vld [vmem:[#allocation7 + $0x790] sm:$0xff]
    %v1291 = vld [vmem:[#allocation7 + $0x798] sm:$0xff]
    %v1292 = vld [vmem:[#allocation7 + $0x7a0] sm:$0xff]
    %v1293 = vld [vmem:[#allocation7 + $0x7a8] sm:$0xff]
    %v1294 = vld [vmem:[#allocation7 + $0x7b0] sm:$0xff]
    %v1295 = vld [vmem:[#allocation7 + $0x7b8] sm:$0xff]
    %v1296 = vld [vmem:[#allocation7 + $0x7c0] sm:$0xff]
    %v1297 = vld [vmem:[#allocation7 + $0x7c8] sm:$0xff]
    %v1298 = vld [vmem:[#allocation7 + $0x7d0] sm:$0xff]
    %v1299 = vld [vmem:[#allocation7 + $0x7d8] sm:$0xff]
    %v1300 = vld [vmem:[#allocation7 + $0x7e0] sm:$0xff]
    %v1301 = vld [vmem:[#allocation7 + $0x7e8] sm:$0xff]
    %v1302 = vld [vmem:[#allocation7 + $0x7f0] sm:$0xff]
    %v1303 = vld [vmem:[#allocation7 + $0x7f8] sm:$0xff]
    %v1304 = vld [vmem:[%s4] sm:$0xff]
    %v1306 = vlaneseq
    %v1307 = vshrl.u32 %v1306, 7
    %v1308 = vsub.s32 0, %v1307
    %v1309 = vrot.slane %v1304, %v1308
    %v1310 = vlaneseq
    %v1311 = vshrl.u32 %v1310, 7
    %v1312 = vsub.s32 1, %v1311
    %v1313 = vrot.slane %v1304, %v1312
    %v1314 = vlaneseq
    %v1315 = vshrl.u32 %v1314, 7
    %v1316 = vsub.s32 2, %v1315
    %v1317 = vrot.slane %v1304, %v1316
    %v1318 = vlaneseq
    %v1319 = vshrl.u32 %v1318, 7
    %v1320 = vsub.s32 3, %v1319
    %v1321 = vrot.slane %v1304, %v1320
    %v1322 = vlaneseq
    %v1323 = vshrl.u32 %v1322, 7
    %v1324 = vsub.s32 4, %v1323
    %v1325 = vrot.slane %v1304, %v1324
    %v1326 = vlaneseq
    %v1327 = vshrl.u32 %v1326, 7
    %v1328 = vsub.s32 5, %v1327
    %v1329 = vrot.slane %v1304, %v1328
    %v1330 = vlaneseq
    %v1331 = vshrl.u32 %v1330, 7
    %v1332 = vsub.s32 6, %v1331
    %v1333 = vrot.slane %v1304, %v1332
    %v1334 = vlaneseq
    %v1335 = vshrl.u32 %v1334, 7
    %v1336 = vsub.s32 7, %v1335
    %v1337 = vrot.slane %v1304, %v1336
    %v1602 = vunpack.c.l.b16 %v1048
    %v1603 = vunpack.c.h.b16 %v1048
    %v1604 = vunpack.c.l.b16 %v1049
    %v1605 = vunpack.c.h.b16 %v1049
    %v1606 = vunpack.c.l.b16 %v1050
    %v1607 = vunpack.c.h.b16 %v1050
    %v1608 = vunpack.c.l.b16 %v1051
    %v1609 = vunpack.c.h.b16 %v1051
    %v1610 = vunpack.c.l.b16 %v1052
    %v1611 = vunpack.c.h.b16 %v1052
    %v1612 = vunpack.c.l.b16 %v1053
    %v1613 = vunpack.c.h.b16 %v1053
    %v1614 = vunpack.c.l.b16 %v1054
    %v1615 = vunpack.c.h.b16 %v1054
    %v1616 = vunpack.c.l.b16 %v1055
    %v1617 = vunpack.c.h.b16 %v1055
    %v1618 = vunpack.c.l.b16 %v1056
    %v1619 = vunpack.c.h.b16 %v1056
    %v1620 = vunpack.c.l.b16 %v1057
    %v1621 = vunpack.c.h.b16 %v1057
    %v1622 = vunpack.c.l.b16 %v1058
    %v1623 = vunpack.c.h.b16 %v1058
    %v1624 = vunpack.c.l.b16 %v1059
    %v1625 = vunpack.c.h.b16 %v1059
    %v1626 = vunpack.c.l.b16 %v1060
    %v1627 = vunpack.c.h.b16 %v1060
    %v1628 = vunpack.c.l.b16 %v1061
    %v1629 = vunpack.c.h.b16 %v1061
    %v1630 = vunpack.c.l.b16 %v1062
    %v1631 = vunpack.c.h.b16 %v1062
    %v1632 = vunpack.c.l.b16 %v1063
    %v1633 = vunpack.c.h.b16 %v1063
    %v1634 = vunpack.c.l.b16 %v1064
    %v1635 = vunpack.c.h.b16 %v1064
    %v1636 = vunpack.c.l.b16 %v1065
    %v1637 = vunpack.c.h.b16 %v1065
    %v1638 = vunpack.c.l.b16 %v1066
    %v1639 = vunpack.c.h.b16 %v1066
    %v1640 = vunpack.c.l.b16 %v1067
    %v1641 = vunpack.c.h.b16 %v1067
    %v1642 = vunpack.c.l.b16 %v1068
    %v1643 = vunpack.c.h.b16 %v1068
    %v1644 = vunpack.c.l.b16 %v1069
    %v1645 = vunpack.c.h.b16 %v1069
    %v1646 = vunpack.c.l.b16 %v1070
    %v1647 = vunpack.c.h.b16 %v1070
    %v1648 = vunpack.c.l.b16 %v1071
    %v1649 = vunpack.c.h.b16 %v1071
    %v1650 = vunpack.c.l.b16 %v1072
    %v1651 = vunpack.c.h.b16 %v1072
    %v1652 = vunpack.c.l.b16 %v1073
    %v1653 = vunpack.c.h.b16 %v1073
    %v1654 = vunpack.c.l.b16 %v1074
    %v1655 = vunpack.c.h.b16 %v1074
    %v1656 = vunpack.c.l.b16 %v1075
    %v1657 = vunpack.c.h.b16 %v1075
    %v1658 = vunpack.c.l.b16 %v1076
    %v1659 = vunpack.c.h.b16 %v1076
    %v1660 = vunpack.c.l.b16 %v1077
    %v1661 = vunpack.c.h.b16 %v1077
    %v1662 = vunpack.c.l.b16 %v1078
    %v1663 = vunpack.c.h.b16 %v1078
    %v1664 = vunpack.c.l.b16 %v1079
    %v1665 = vunpack.c.h.b16 %v1079
    %v1666 = vunpack.c.l.b16 %v1080
    %v1667 = vunpack.c.h.b16 %v1080
    %v1668 = vunpack.c.l.b16 %v1081
    %v1669 = vunpack.c.h.b16 %v1081
    %v1670 = vunpack.c.l.b16 %v1082
    %v1671 = vunpack.c.h.b16 %v1082
    %v1672 = vunpack.c.l.b16 %v1083
    %v1673 = vunpack.c.h.b16 %v1083
    %v1674 = vunpack.c.l.b16 %v1084
    %v1675 = vunpack.c.h.b16 %v1084
    %v1676 = vunpack.c.l.b16 %v1085
    %v1677 = vunpack.c.h.b16 %v1085
    %v1678 = vunpack.c.l.b16 %v1086
    %v1679 = vunpack.c.h.b16 %v1086
    %v1680 = vunpack.c.l.b16 %v1087
    %v1681 = vunpack.c.h.b16 %v1087
    %v1682 = vunpack.c.l.b16 %v1088
    %v1683 = vunpack.c.h.b16 %v1088
    %v1684 = vunpack.c.l.b16 %v1089
    %v1685 = vunpack.c.h.b16 %v1089
    %v1686 = vunpack.c.l.b16 %v1090
    %v1687 = vunpack.c.h.b16 %v1090
    %v1688 = vunpack.c.l.b16 %v1091
    %v1689 = vunpack.c.h.b16 %v1091
    %v1690 = vunpack.c.l.b16 %v1092
    %v1691 = vunpack.c.h.b16 %v1092
    %v1692 = vunpack.c.l.b16 %v1093
    %v1693 = vunpack.c.h.b16 %v1093
    %v1694 = vunpack.c.l.b16 %v1094
    %v1695 = vunpack.c.h.b16 %v1094
    %v1696 = vunpack.c.l.b16 %v1095
    %v1697 = vunpack.c.h.b16 %v1095
    %v1698 = vunpack.c.l.b16 %v1096
    %v1699 = vunpack.c.h.b16 %v1096
    %v1700 = vunpack.c.l.b16 %v1097
    %v1701 = vunpack.c.h.b16 %v1097
    %v1702 = vunpack.c.l.b16 %v1098
    %v1703 = vunpack.c.h.b16 %v1098
    %v1704 = vunpack.c.l.b16 %v1099
    %v1705 = vunpack.c.h.b16 %v1099
    %v1706 = vunpack.c.l.b16 %v1100
    %v1707 = vunpack.c.h.b16 %v1100
    %v1708 = vunpack.c.l.b16 %v1101
    %v1709 = vunpack.c.h.b16 %v1101
    %v1710 = vunpack.c.l.b16 %v1102
    %v1711 = vunpack.c.h.b16 %v1102
    %v1712 = vunpack.c.l.b16 %v1103
    %v1713 = vunpack.c.h.b16 %v1103
    %v1714 = vunpack.c.l.b16 %v1104
    %v1715 = vunpack.c.h.b16 %v1104
    %v1716 = vunpack.c.l.b16 %v1105
    %v1717 = vunpack.c.h.b16 %v1105
    %v1718 = vunpack.c.l.b16 %v1106
    %v1719 = vunpack.c.h.b16 %v1106
    %v1720 = vunpack.c.l.b16 %v1107
    %v1721 = vunpack.c.h.b16 %v1107
    %v1722 = vunpack.c.l.b16 %v1108
    %v1723 = vunpack.c.h.b16 %v1108
    %v1724 = vunpack.c.l.b16 %v1109
    %v1725 = vunpack.c.h.b16 %v1109
    %v1726 = vunpack.c.l.b16 %v1110
    %v1727 = vunpack.c.h.b16 %v1110
    %v1728 = vunpack.c.l.b16 %v1111
    %v1729 = vunpack.c.h.b16 %v1111
    %v1730 = vunpack.c.l.b16 %v1112
    %v1731 = vunpack.c.h.b16 %v1112
    %v1732 = vunpack.c.l.b16 %v1113
    %v1733 = vunpack.c.h.b16 %v1113
    %v1734 = vunpack.c.l.b16 %v1114
    %v1735 = vunpack.c.h.b16 %v1114
    %v1736 = vunpack.c.l.b16 %v1115
    %v1737 = vunpack.c.h.b16 %v1115
    %v1738 = vunpack.c.l.b16 %v1116
    %v1739 = vunpack.c.h.b16 %v1116
    %v1740 = vunpack.c.l.b16 %v1117
    %v1741 = vunpack.c.h.b16 %v1117
    %v1742 = vunpack.c.l.b16 %v1118
    %v1743 = vunpack.c.h.b16 %v1118
    %v1744 = vunpack.c.l.b16 %v1119
    %v1745 = vunpack.c.h.b16 %v1119
    %v1746 = vunpack.c.l.b16 %v1120
    %v1747 = vunpack.c.h.b16 %v1120
    %v1748 = vunpack.c.l.b16 %v1121
    %v1749 = vunpack.c.h.b16 %v1121
    %v1750 = vunpack.c.l.b16 %v1122
    %v1751 = vunpack.c.h.b16 %v1122
    %v1752 = vunpack.c.l.b16 %v1123
    %v1753 = vunpack.c.h.b16 %v1123
    %v1754 = vunpack.c.l.b16 %v1124
    %v1755 = vunpack.c.h.b16 %v1124
    %v1756 = vunpack.c.l.b16 %v1125
    %v1757 = vunpack.c.h.b16 %v1125
    %v1758 = vunpack.c.l.b16 %v1126
    %v1759 = vunpack.c.h.b16 %v1126
    %v1760 = vunpack.c.l.b16 %v1127
    %v1761 = vunpack.c.h.b16 %v1127
    %v1762 = vunpack.c.l.b16 %v1128
    %v1763 = vunpack.c.h.b16 %v1128
    %v1764 = vunpack.c.l.b16 %v1129
    %v1765 = vunpack.c.h.b16 %v1129
    %v1766 = vunpack.c.l.b16 %v1130
    %v1767 = vunpack.c.h.b16 %v1130
    %v1768 = vunpack.c.l.b16 %v1131
    %v1769 = vunpack.c.h.b16 %v1131
    %v1770 = vunpack.c.l.b16 %v1132
    %v1771 = vunpack.c.h.b16 %v1132
    %v1772 = vunpack.c.l.b16 %v1133
    %v1773 = vunpack.c.h.b16 %v1133
    %v1774 = vunpack.c.l.b16 %v1134
    %v1775 = vunpack.c.h.b16 %v1134
    %v1776 = vunpack.c.l.b16 %v1135
    %v1777 = vunpack.c.h.b16 %v1135
    %v1778 = vunpack.c.l.b16 %v1136
    %v1779 = vunpack.c.h.b16 %v1136
    %v1780 = vunpack.c.l.b16 %v1137
    %v1781 = vunpack.c.h.b16 %v1137
    %v1782 = vunpack.c.l.b16 %v1138
    %v1783 = vunpack.c.h.b16 %v1138
    %v1784 = vunpack.c.l.b16 %v1139
    %v1785 = vunpack.c.h.b16 %v1139
    %v1786 = vunpack.c.l.b16 %v1140
    %v1787 = vunpack.c.h.b16 %v1140
    %v1788 = vunpack.c.l.b16 %v1141
    %v1789 = vunpack.c.h.b16 %v1141
    %v1790 = vunpack.c.l.b16 %v1142
    %v1791 = vunpack.c.h.b16 %v1142
    %v1792 = vunpack.c.l.b16 %v1143
    %v1793 = vunpack.c.h.b16 %v1143
    %v1794 = vunpack.c.l.b16 %v1144
    %v1795 = vunpack.c.h.b16 %v1144
    %v1796 = vunpack.c.l.b16 %v1145
    %v1797 = vunpack.c.h.b16 %v1145
    %v1798 = vunpack.c.l.b16 %v1146
    %v1799 = vunpack.c.h.b16 %v1146
    %v1800 = vunpack.c.l.b16 %v1147
    %v1801 = vunpack.c.h.b16 %v1147
    %v1802 = vunpack.c.l.b16 %v1148
    %v1803 = vunpack.c.h.b16 %v1148
    %v1804 = vunpack.c.l.b16 %v1149
    %v1805 = vunpack.c.h.b16 %v1149
    %v1806 = vunpack.c.l.b16 %v1150
    %v1807 = vunpack.c.h.b16 %v1150
    %v1808 = vunpack.c.l.b16 %v1151
    %v1809 = vunpack.c.h.b16 %v1151
    %v1810 = vunpack.c.l.b16 %v1152
    %v1811 = vunpack.c.h.b16 %v1152
    %v1812 = vunpack.c.l.b16 %v1153
    %v1813 = vunpack.c.h.b16 %v1153
    %v1814 = vunpack.c.l.b16 %v1154
    %v1815 = vunpack.c.h.b16 %v1154
    %v1816 = vunpack.c.l.b16 %v1155
    %v1817 = vunpack.c.h.b16 %v1155
    %v1818 = vunpack.c.l.b16 %v1156
    %v1819 = vunpack.c.h.b16 %v1156
    %v1820 = vunpack.c.l.b16 %v1157
    %v1821 = vunpack.c.h.b16 %v1157
    %v1822 = vunpack.c.l.b16 %v1158
    %v1823 = vunpack.c.h.b16 %v1158
    %v1824 = vunpack.c.l.b16 %v1159
    %v1825 = vunpack.c.h.b16 %v1159
    %v1826 = vunpack.c.l.b16 %v1160
    %v1827 = vunpack.c.h.b16 %v1160
    %v1828 = vunpack.c.l.b16 %v1161
    %v1829 = vunpack.c.h.b16 %v1161
    %v1830 = vunpack.c.l.b16 %v1162
    %v1831 = vunpack.c.h.b16 %v1162
    %v1832 = vunpack.c.l.b16 %v1163
    %v1833 = vunpack.c.h.b16 %v1163
    %v1834 = vunpack.c.l.b16 %v1164
    %v1835 = vunpack.c.h.b16 %v1164
    %v1836 = vunpack.c.l.b16 %v1165
    %v1837 = vunpack.c.h.b16 %v1165
    %v1838 = vunpack.c.l.b16 %v1166
    %v1839 = vunpack.c.h.b16 %v1166
    %v1840 = vunpack.c.l.b16 %v1167
    %v1841 = vunpack.c.h.b16 %v1167
    %v1842 = vunpack.c.l.b16 %v1168
    %v1843 = vunpack.c.h.b16 %v1168
    %v1844 = vunpack.c.l.b16 %v1169
    %v1845 = vunpack.c.h.b16 %v1169
    %v1846 = vunpack.c.l.b16 %v1170
    %v1847 = vunpack.c.h.b16 %v1170
    %v1848 = vunpack.c.l.b16 %v1171
    %v1849 = vunpack.c.h.b16 %v1171
    %v1850 = vunpack.c.l.b16 %v1172
    %v1851 = vunpack.c.h.b16 %v1172
    %v1852 = vunpack.c.l.b16 %v1173
    %v1853 = vunpack.c.h.b16 %v1173
    %v1854 = vunpack.c.l.b16 %v1174
    %v1855 = vunpack.c.h.b16 %v1174
    %v1856 = vunpack.c.l.b16 %v1175
    %v1857 = vunpack.c.h.b16 %v1175
    %v1858 = vunpack.c.l.b16 %v1176
    %v1859 = vunpack.c.h.b16 %v1176
    %v1860 = vunpack.c.l.b16 %v1177
    %v1861 = vunpack.c.h.b16 %v1177
    %v1862 = vunpack.c.l.b16 %v1178
    %v1863 = vunpack.c.h.b16 %v1178
    %v1864 = vunpack.c.l.b16 %v1179
    %v1865 = vunpack.c.h.b16 %v1179
    %v1866 = vunpack.c.l.b16 %v1180
    %v1867 = vunpack.c.h.b16 %v1180
    %v1868 = vunpack.c.l.b16 %v1181
    %v1869 = vunpack.c.h.b16 %v1181
    %v1870 = vunpack.c.l.b16 %v1182
    %v1871 = vunpack.c.h.b16 %v1182
    %v1872 = vunpack.c.l.b16 %v1183
    %v1873 = vunpack.c.h.b16 %v1183
    %v1874 = vunpack.c.l.b16 %v1184
    %v1875 = vunpack.c.h.b16 %v1184
    %v1876 = vunpack.c.l.b16 %v1185
    %v1877 = vunpack.c.h.b16 %v1185
    %v1878 = vunpack.c.l.b16 %v1186
    %v1879 = vunpack.c.h.b16 %v1186
    %v1880 = vunpack.c.l.b16 %v1187
    %v1881 = vunpack.c.h.b16 %v1187
    %v1882 = vunpack.c.l.b16 %v1188
    %v1883 = vunpack.c.h.b16 %v1188
    %v1884 = vunpack.c.l.b16 %v1189
    %v1885 = vunpack.c.h.b16 %v1189
    %v1886 = vunpack.c.l.b16 %v1190
    %v1887 = vunpack.c.h.b16 %v1190
    %v1888 = vunpack.c.l.b16 %v1191
    %v1889 = vunpack.c.h.b16 %v1191
    %v1890 = vunpack.c.l.b16 %v1192
    %v1891 = vunpack.c.h.b16 %v1192
    %v1892 = vunpack.c.l.b16 %v1193
    %v1893 = vunpack.c.h.b16 %v1193
    %v1894 = vunpack.c.l.b16 %v1194
    %v1895 = vunpack.c.h.b16 %v1194
    %v1896 = vunpack.c.l.b16 %v1195
    %v1897 = vunpack.c.h.b16 %v1195
    %v1898 = vunpack.c.l.b16 %v1196
    %v1899 = vunpack.c.h.b16 %v1196
    %v1900 = vunpack.c.l.b16 %v1197
    %v1901 = vunpack.c.h.b16 %v1197
    %v1902 = vunpack.c.l.b16 %v1198
    %v1903 = vunpack.c.h.b16 %v1198
    %v1904 = vunpack.c.l.b16 %v1199
    %v1905 = vunpack.c.h.b16 %v1199
    %v1906 = vunpack.c.l.b16 %v1200
    %v1907 = vunpack.c.h.b16 %v1200
    %v1908 = vunpack.c.l.b16 %v1201
    %v1909 = vunpack.c.h.b16 %v1201
    %v1910 = vunpack.c.l.b16 %v1202
    %v1911 = vunpack.c.h.b16 %v1202
    %v1912 = vunpack.c.l.b16 %v1203
    %v1913 = vunpack.c.h.b16 %v1203
    %v1914 = vunpack.c.l.b16 %v1204
    %v1915 = vunpack.c.h.b16 %v1204
    %v1916 = vunpack.c.l.b16 %v1205
    %v1917 = vunpack.c.h.b16 %v1205
    %v1918 = vunpack.c.l.b16 %v1206
    %v1919 = vunpack.c.h.b16 %v1206
    %v1920 = vunpack.c.l.b16 %v1207
    %v1921 = vunpack.c.h.b16 %v1207
    %v1922 = vunpack.c.l.b16 %v1208
    %v1923 = vunpack.c.h.b16 %v1208
    %v1924 = vunpack.c.l.b16 %v1209
    %v1925 = vunpack.c.h.b16 %v1209
    %v1926 = vunpack.c.l.b16 %v1210
    %v1927 = vunpack.c.h.b16 %v1210
    %v1928 = vunpack.c.l.b16 %v1211
    %v1929 = vunpack.c.h.b16 %v1211
    %v1930 = vunpack.c.l.b16 %v1212
    %v1931 = vunpack.c.h.b16 %v1212
    %v1932 = vunpack.c.l.b16 %v1213
    %v1933 = vunpack.c.h.b16 %v1213
    %v1934 = vunpack.c.l.b16 %v1214
    %v1935 = vunpack.c.h.b16 %v1214
    %v1936 = vunpack.c.l.b16 %v1215
    %v1937 = vunpack.c.h.b16 %v1215
    %v1938 = vunpack.c.l.b16 %v1216
    %v1939 = vunpack.c.h.b16 %v1216
    %v1940 = vunpack.c.l.b16 %v1217
    %v1941 = vunpack.c.h.b16 %v1217
    %v1942 = vunpack.c.l.b16 %v1218
    %v1943 = vunpack.c.h.b16 %v1218
    %v1944 = vunpack.c.l.b16 %v1219
    %v1945 = vunpack.c.h.b16 %v1219
    %v1946 = vunpack.c.l.b16 %v1220
    %v1947 = vunpack.c.h.b16 %v1220
    %v1948 = vunpack.c.l.b16 %v1221
    %v1949 = vunpack.c.h.b16 %v1221
    %v1950 = vunpack.c.l.b16 %v1222
    %v1951 = vunpack.c.h.b16 %v1222
    %v1952 = vunpack.c.l.b16 %v1223
    %v1953 = vunpack.c.h.b16 %v1223
    %v1954 = vunpack.c.l.b16 %v1224
    %v1955 = vunpack.c.h.b16 %v1224
    %v1956 = vunpack.c.l.b16 %v1225
    %v1957 = vunpack.c.h.b16 %v1225
    %v1958 = vunpack.c.l.b16 %v1226
    %v1959 = vunpack.c.h.b16 %v1226
    %v1960 = vunpack.c.l.b16 %v1227
    %v1961 = vunpack.c.h.b16 %v1227
    %v1962 = vunpack.c.l.b16 %v1228
    %v1963 = vunpack.c.h.b16 %v1228
    %v1964 = vunpack.c.l.b16 %v1229
    %v1965 = vunpack.c.h.b16 %v1229
    %v1966 = vunpack.c.l.b16 %v1230
    %v1967 = vunpack.c.h.b16 %v1230
    %v1968 = vunpack.c.l.b16 %v1231
    %v1969 = vunpack.c.h.b16 %v1231
    %v1970 = vunpack.c.l.b16 %v1232
    %v1971 = vunpack.c.h.b16 %v1232
    %v1972 = vunpack.c.l.b16 %v1233
    %v1973 = vunpack.c.h.b16 %v1233
    %v1974 = vunpack.c.l.b16 %v1234
    %v1975 = vunpack.c.h.b16 %v1234
    %v1976 = vunpack.c.l.b16 %v1235
    %v1977 = vunpack.c.h.b16 %v1235
    %v1978 = vunpack.c.l.b16 %v1236
    %v1979 = vunpack.c.h.b16 %v1236
    %v1980 = vunpack.c.l.b16 %v1237
    %v1981 = vunpack.c.h.b16 %v1237
    %v1982 = vunpack.c.l.b16 %v1238
    %v1983 = vunpack.c.h.b16 %v1238
    %v1984 = vunpack.c.l.b16 %v1239
    %v1985 = vunpack.c.h.b16 %v1239
    %v1986 = vunpack.c.l.b16 %v1240
    %v1987 = vunpack.c.h.b16 %v1240
    %v1988 = vunpack.c.l.b16 %v1241
    %v1989 = vunpack.c.h.b16 %v1241
    %v1990 = vunpack.c.l.b16 %v1242
    %v1991 = vunpack.c.h.b16 %v1242
    %v1992 = vunpack.c.l.b16 %v1243
    %v1993 = vunpack.c.h.b16 %v1243
    %v1994 = vunpack.c.l.b16 %v1244
    %v1995 = vunpack.c.h.b16 %v1244
    %v1996 = vunpack.c.l.b16 %v1245
    %v1997 = vunpack.c.h.b16 %v1245
    %v1998 = vunpack.c.l.b16 %v1246
    %v1999 = vunpack.c.h.b16 %v1246
    %v2000 = vunpack.c.l.b16 %v1247
    %v2001 = vunpack.c.h.b16 %v1247
    %v2002 = vunpack.c.l.b16 %v1248
    %v2003 = vunpack.c.h.b16 %v1248
    %v2004 = vunpack.c.l.b16 %v1249
    %v2005 = vunpack.c.h.b16 %v1249
    %v2006 = vunpack.c.l.b16 %v1250
    %v2007 = vunpack.c.h.b16 %v1250
    %v2008 = vunpack.c.l.b16 %v1251
    %v2009 = vunpack.c.h.b16 %v1251
    %v2010 = vunpack.c.l.b16 %v1252
    %v2011 = vunpack.c.h.b16 %v1252
    %v2012 = vunpack.c.l.b16 %v1253
    %v2013 = vunpack.c.h.b16 %v1253
    %v2014 = vunpack.c.l.b16 %v1254
    %v2015 = vunpack.c.h.b16 %v1254
    %v2016 = vunpack.c.l.b16 %v1255
    %v2017 = vunpack.c.h.b16 %v1255
    %v2018 = vunpack.c.l.b16 %v1256
    %v2019 = vunpack.c.h.b16 %v1256
    %v2020 = vunpack.c.l.b16 %v1257
    %v2021 = vunpack.c.h.b16 %v1257
    %v2022 = vunpack.c.l.b16 %v1258
    %v2023 = vunpack.c.h.b16 %v1258
    %v2024 = vunpack.c.l.b16 %v1259
    %v2025 = vunpack.c.h.b16 %v1259
    %v2026 = vunpack.c.l.b16 %v1260
    %v2027 = vunpack.c.h.b16 %v1260
    %v2028 = vunpack.c.l.b16 %v1261
    %v2029 = vunpack.c.h.b16 %v1261
    %v2030 = vunpack.c.l.b16 %v1262
    %v2031 = vunpack.c.h.b16 %v1262
    %v2032 = vunpack.c.l.b16 %v1263
    %v2033 = vunpack.c.h.b16 %v1263
    %v2034 = vunpack.c.l.b16 %v1264
    %v2035 = vunpack.c.h.b16 %v1264
    %v2036 = vunpack.c.l.b16 %v1265
    %v2037 = vunpack.c.h.b16 %v1265
    %v2038 = vunpack.c.l.b16 %v1266
    %v2039 = vunpack.c.h.b16 %v1266
    %v2040 = vunpack.c.l.b16 %v1267
    %v2041 = vunpack.c.h.b16 %v1267
    %v2042 = vunpack.c.l.b16 %v1268
    %v2043 = vunpack.c.h.b16 %v1268
    %v2044 = vunpack.c.l.b16 %v1269
    %v2045 = vunpack.c.h.b16 %v1269
    %v2046 = vunpack.c.l.b16 %v1270
    %v2047 = vunpack.c.h.b16 %v1270
    %v2048 = vunpack.c.l.b16 %v1271
    %v2049 = vunpack.c.h.b16 %v1271
    %v2050 = vunpack.c.l.b16 %v1272
    %v2051 = vunpack.c.h.b16 %v1272
    %v2052 = vunpack.c.l.b16 %v1273
    %v2053 = vunpack.c.h.b16 %v1273
    %v2054 = vunpack.c.l.b16 %v1274
    %v2055 = vunpack.c.h.b16 %v1274
    %v2056 = vunpack.c.l.b16 %v1275
    %v2057 = vunpack.c.h.b16 %v1275
    %v2058 = vunpack.c.l.b16 %v1276
    %v2059 = vunpack.c.h.b16 %v1276
    %v2060 = vunpack.c.l.b16 %v1277
    %v2061 = vunpack.c.h.b16 %v1277
    %v2062 = vunpack.c.l.b16 %v1278
    %v2063 = vunpack.c.h.b16 %v1278
    %v2064 = vunpack.c.l.b16 %v1279
    %v2065 = vunpack.c.h.b16 %v1279
    %v2066 = vunpack.c.l.b16 %v1280
    %v2067 = vunpack.c.h.b16 %v1280
    %v2068 = vunpack.c.l.b16 %v1281
    %v2069 = vunpack.c.h.b16 %v1281
    %v2070 = vunpack.c.l.b16 %v1282
    %v2071 = vunpack.c.h.b16 %v1282
    %v2072 = vunpack.c.l.b16 %v1283
    %v2073 = vunpack.c.h.b16 %v1283
    %v2074 = vunpack.c.l.b16 %v1284
    %v2075 = vunpack.c.h.b16 %v1284
    %v2076 = vunpack.c.l.b16 %v1285
    %v2077 = vunpack.c.h.b16 %v1285
    %v2078 = vunpack.c.l.b16 %v1286
    %v2079 = vunpack.c.h.b16 %v1286
    %v2080 = vunpack.c.l.b16 %v1287
    %v2081 = vunpack.c.h.b16 %v1287
    %v2082 = vunpack.c.l.b16 %v1288
    %v2083 = vunpack.c.h.b16 %v1288
    %v2084 = vunpack.c.l.b16 %v1289
    %v2085 = vunpack.c.h.b16 %v1289
    %v2086 = vunpack.c.l.b16 %v1290
    %v2087 = vunpack.c.h.b16 %v1290
    %v2088 = vunpack.c.l.b16 %v1291
    %v2089 = vunpack.c.h.b16 %v1291
    %v2090 = vunpack.c.l.b16 %v1292
    %v2091 = vunpack.c.h.b16 %v1292
    %v2092 = vunpack.c.l.b16 %v1293
    %v2093 = vunpack.c.h.b16 %v1293
    %v2094 = vunpack.c.l.b16 %v1294
    %v2095 = vunpack.c.h.b16 %v1294
    %v2096 = vunpack.c.l.b16 %v1295
    %v2097 = vunpack.c.h.b16 %v1295
    %v2098 = vunpack.c.l.b16 %v1296
    %v2099 = vunpack.c.h.b16 %v1296
    %v2100 = vunpack.c.l.b16 %v1297
    %v2101 = vunpack.c.h.b16 %v1297
    %v2102 = vunpack.c.l.b16 %v1298
    %v2103 = vunpack.c.h.b16 %v1298
    %v2104 = vunpack.c.l.b16 %v1299
    %v2105 = vunpack.c.h.b16 %v1299
    %v2106 = vunpack.c.l.b16 %v1300
    %v2107 = vunpack.c.h.b16 %v1300
    %v2108 = vunpack.c.l.b16 %v1301
    %v2109 = vunpack.c.h.b16 %v1301
    %v2110 = vunpack.c.l.b16 %v1302
    %v2111 = vunpack.c.h.b16 %v1302
    %v2112 = vunpack.c.l.b16 %v1303
    %v2113 = vunpack.c.h.b16 %v1303
    %v2114 = vpack.c.b16 %v1610, %v1602
    %v2115 = vpack.c.b16 %v1611, %v1603
    %v2116 = vpack.c.b16 %v1612, %v1604
    %v2117 = vpack.c.b16 %v1613, %v1605
    %v2118 = vpack.c.b16 %v1614, %v1606
    %v2119 = vpack.c.b16 %v1615, %v1607
    %v2120 = vpack.c.b16 %v1616, %v1608
    %v2121 = vpack.c.b16 %v1617, %v1609
    %v2122 = vpack.c.b16 %v1626, %v1618
    %v2123 = vpack.c.b16 %v1627, %v1619
    %v2124 = vpack.c.b16 %v1628, %v1620
    %v2125 = vpack.c.b16 %v1629, %v1621
    %v2126 = vpack.c.b16 %v1630, %v1622
    %v2127 = vpack.c.b16 %v1631, %v1623
    %v2128 = vpack.c.b16 %v1632, %v1624
    %v2129 = vpack.c.b16 %v1633, %v1625
    %v2130 = vpack.c.b16 %v1642, %v1634
    %v2131 = vpack.c.b16 %v1643, %v1635
    %v2132 = vpack.c.b16 %v1644, %v1636
    %v2133 = vpack.c.b16 %v1645, %v1637
    %v2134 = vpack.c.b16 %v1646, %v1638
    %v2135 = vpack.c.b16 %v1647, %v1639
    %v2136 = vpack.c.b16 %v1648, %v1640
    %v2137 = vpack.c.b16 %v1649, %v1641
    %v2138 = vpack.c.b16 %v1658, %v1650
    %v2139 = vpack.c.b16 %v1659, %v1651
    %v2140 = vpack.c.b16 %v1660, %v1652
    %v2141 = vpack.c.b16 %v1661, %v1653
    %v2142 = vpack.c.b16 %v1662, %v1654
    %v2143 = vpack.c.b16 %v1663, %v1655
    %v2144 = vpack.c.b16 %v1664, %v1656
    %v2145 = vpack.c.b16 %v1665, %v1657
    %v2146 = vpack.c.b16 %v1674, %v1666
    %v2147 = vpack.c.b16 %v1675, %v1667
    %v2148 = vpack.c.b16 %v1676, %v1668
    %v2149 = vpack.c.b16 %v1677, %v1669
    %v2150 = vpack.c.b16 %v1678, %v1670
    %v2151 = vpack.c.b16 %v1679, %v1671
    %v2152 = vpack.c.b16 %v1680, %v1672
    %v2153 = vpack.c.b16 %v1681, %v1673
    %v2154 = vpack.c.b16 %v1690, %v1682
    %v2155 = vpack.c.b16 %v1691, %v1683
    %v2156 = vpack.c.b16 %v1692, %v1684
    %v2157 = vpack.c.b16 %v1693, %v1685
    %v2158 = vpack.c.b16 %v1694, %v1686
    %v2159 = vpack.c.b16 %v1695, %v1687
    %v2160 = vpack.c.b16 %v1696, %v1688
    %v2161 = vpack.c.b16 %v1697, %v1689
    %v2162 = vpack.c.b16 %v1706, %v1698
    %v2163 = vpack.c.b16 %v1707, %v1699
    %v2164 = vpack.c.b16 %v1708, %v1700
    %v2165 = vpack.c.b16 %v1709, %v1701
    %v2166 = vpack.c.b16 %v1710, %v1702
    %v2167 = vpack.c.b16 %v1711, %v1703
    %v2168 = vpack.c.b16 %v1712, %v1704
    %v2169 = vpack.c.b16 %v1713, %v1705
    %v2170 = vpack.c.b16 %v1722, %v1714
    %v2171 = vpack.c.b16 %v1723, %v1715
    %v2172 = vpack.c.b16 %v1724, %v1716
    %v2173 = vpack.c.b16 %v1725, %v1717
    %v2174 = vpack.c.b16 %v1726, %v1718
    %v2175 = vpack.c.b16 %v1727, %v1719
    %v2176 = vpack.c.b16 %v1728, %v1720
    %v2177 = vpack.c.b16 %v1729, %v1721
    %v2178 = vpack.c.b16 %v1738, %v1730
    %v2179 = vpack.c.b16 %v1739, %v1731
    %v2180 = vpack.c.b16 %v1740, %v1732
    %v2181 = vpack.c.b16 %v1741, %v1733
    %v2182 = vpack.c.b16 %v1742, %v1734
    %v2183 = vpack.c.b16 %v1743, %v1735
    %v2184 = vpack.c.b16 %v1744, %v1736
    %v2185 = vpack.c.b16 %v1745, %v1737
    %v2186 = vpack.c.b16 %v1754, %v1746
    %v2187 = vpack.c.b16 %v1755, %v1747
    %v2188 = vpack.c.b16 %v1756, %v1748
    %v2189 = vpack.c.b16 %v1757, %v1749
    %v2190 = vpack.c.b16 %v1758, %v1750
    %v2191 = vpack.c.b16 %v1759, %v1751
    %v2192 = vpack.c.b16 %v1760, %v1752
    %v2193 = vpack.c.b16 %v1761, %v1753
    %v2194 = vpack.c.b16 %v1770, %v1762
    %v2195 = vpack.c.b16 %v1771, %v1763
    %v2196 = vpack.c.b16 %v1772, %v1764
    %v2197 = vpack.c.b16 %v1773, %v1765
    %v2198 = vpack.c.b16 %v1774, %v1766
    %v2199 = vpack.c.b16 %v1775, %v1767
    %v2200 = vpack.c.b16 %v1776, %v1768
    %v2201 = vpack.c.b16 %v1777, %v1769
    %v2202 = vpack.c.b16 %v1786, %v1778
    %v2203 = vpack.c.b16 %v1787, %v1779
    %v2204 = vpack.c.b16 %v1788, %v1780
    %v2205 = vpack.c.b16 %v1789, %v1781
    %v2206 = vpack.c.b16 %v1790, %v1782
    %v2207 = vpack.c.b16 %v1791, %v1783
    %v2208 = vpack.c.b16 %v1792, %v1784
    %v2209 = vpack.c.b16 %v1793, %v1785
    %v2210 = vpack.c.b16 %v1802, %v1794
    %v2211 = vpack.c.b16 %v1803, %v1795
    %v2212 = vpack.c.b16 %v1804, %v1796
    %v2213 = vpack.c.b16 %v1805, %v1797
    %v2214 = vpack.c.b16 %v1806, %v1798
    %v2215 = vpack.c.b16 %v1807, %v1799
    %v2216 = vpack.c.b16 %v1808, %v1800
    %v2217 = vpack.c.b16 %v1809, %v1801
    %v2218 = vpack.c.b16 %v1818, %v1810
    %v2219 = vpack.c.b16 %v1819, %v1811
    %v2220 = vpack.c.b16 %v1820, %v1812
    %v2221 = vpack.c.b16 %v1821, %v1813
    %v2222 = vpack.c.b16 %v1822, %v1814
    %v2223 = vpack.c.b16 %v1823, %v1815
    %v2224 = vpack.c.b16 %v1824, %v1816
    %v2225 = vpack.c.b16 %v1825, %v1817
    %v2226 = vpack.c.b16 %v1834, %v1826
    %v2227 = vpack.c.b16 %v1835, %v1827
    %v2228 = vpack.c.b16 %v1836, %v1828
    %v2229 = vpack.c.b16 %v1837, %v1829
    %v2230 = vpack.c.b16 %v1838, %v1830
    %v2231 = vpack.c.b16 %v1839, %v1831
    %v2232 = vpack.c.b16 %v1840, %v1832
    %v2233 = vpack.c.b16 %v1841, %v1833
    %v2234 = vpack.c.b16 %v1850, %v1842
    %v2235 = vpack.c.b16 %v1851, %v1843
    %v2236 = vpack.c.b16 %v1852, %v1844
    %v2237 = vpack.c.b16 %v1853, %v1845
    %v2238 = vpack.c.b16 %v1854, %v1846
    %v2239 = vpack.c.b16 %v1855, %v1847
    %v2240 = vpack.c.b16 %v1856, %v1848
    %v2241 = vpack.c.b16 %v1857, %v1849
    %v2242 = vpack.c.b16 %v1866, %v1858
    %v2243 = vpack.c.b16 %v1867, %v1859
    %v2244 = vpack.c.b16 %v1868, %v1860
    %v2245 = vpack.c.b16 %v1869, %v1861
    %v2246 = vpack.c.b16 %v1870, %v1862
    %v2247 = vpack.c.b16 %v1871, %v1863
    %v2248 = vpack.c.b16 %v1872, %v1864
    %v2249 = vpack.c.b16 %v1873, %v1865
    %v2250 = vpack.c.b16 %v1882, %v1874
    %v2251 = vpack.c.b16 %v1883, %v1875
    %v2252 = vpack.c.b16 %v1884, %v1876
    %v2253 = vpack.c.b16 %v1885, %v1877
    %v2254 = vpack.c.b16 %v1886, %v1878
    %v2255 = vpack.c.b16 %v1887, %v1879
    %v2256 = vpack.c.b16 %v1888, %v1880
    %v2257 = vpack.c.b16 %v1889, %v1881
    %v2258 = vpack.c.b16 %v1898, %v1890
    %v2259 = vpack.c.b16 %v1899, %v1891
    %v2260 = vpack.c.b16 %v1900, %v1892
    %v2261 = vpack.c.b16 %v1901, %v1893
    %v2262 = vpack.c.b16 %v1902, %v1894
    %v2263 = vpack.c.b16 %v1903, %v1895
    %v2264 = vpack.c.b16 %v1904, %v1896
    %v2265 = vpack.c.b16 %v1905, %v1897
    %v2266 = vpack.c.b16 %v1914, %v1906
    %v2267 = vpack.c.b16 %v1915, %v1907
    %v2268 = vpack.c.b16 %v1916, %v1908
    %v2269 = vpack.c.b16 %v1917, %v1909
    %v2270 = vpack.c.b16 %v1918, %v1910
    %v2271 = vpack.c.b16 %v1919, %v1911
    %v2272 = vpack.c.b16 %v1920, %v1912
    %v2273 = vpack.c.b16 %v1921, %v1913
    %v2274 = vpack.c.b16 %v1930, %v1922
    %v2275 = vpack.c.b16 %v1931, %v1923
    %v2276 = vpack.c.b16 %v1932, %v1924
    %v2277 = vpack.c.b16 %v1933, %v1925
    %v2278 = vpack.c.b16 %v1934, %v1926
    %v2279 = vpack.c.b16 %v1935, %v1927
    %v2280 = vpack.c.b16 %v1936, %v1928
    %v2281 = vpack.c.b16 %v1937, %v1929
    %v2282 = vpack.c.b16 %v1946, %v1938
    %v2283 = vpack.c.b16 %v1947, %v1939
    %v2284 = vpack.c.b16 %v1948, %v1940
    %v2285 = vpack.c.b16 %v1949, %v1941
    %v2286 = vpack.c.b16 %v1950, %v1942
    %v2287 = vpack.c.b16 %v1951, %v1943
    %v2288 = vpack.c.b16 %v1952, %v1944
    %v2289 = vpack.c.b16 %v1953, %v1945
    %v2290 = vpack.c.b16 %v1962, %v1954
    %v2291 = vpack.c.b16 %v1963, %v1955
    %v2292 = vpack.c.b16 %v1964, %v1956
    %v2293 = vpack.c.b16 %v1965, %v1957
    %v2294 = vpack.c.b16 %v1966, %v1958
    %v2295 = vpack.c.b16 %v1967, %v1959
    %v2296 = vpack.c.b16 %v1968, %v1960
    %v2297 = vpack.c.b16 %v1969, %v1961
    %v2298 = vpack.c.b16 %v1978, %v1970
    %v2299 = vpack.c.b16 %v1979, %v1971
    %v2300 = vpack.c.b16 %v1980, %v1972
    %v2301 = vpack.c.b16 %v1981, %v1973
    %v2302 = vpack.c.b16 %v1982, %v1974
    %v2303 = vpack.c.b16 %v1983, %v1975
    %v2304 = vpack.c.b16 %v1984, %v1976
    %v2305 = vpack.c.b16 %v1985, %v1977
    %v2306 = vpack.c.b16 %v1994, %v1986
    %v2307 = vpack.c.b16 %v1995, %v1987
    %v2308 = vpack.c.b16 %v1996, %v1988
    %v2309 = vpack.c.b16 %v1997, %v1989
    %v2310 = vpack.c.b16 %v1998, %v1990
    %v2311 = vpack.c.b16 %v1999, %v1991
    %v2312 = vpack.c.b16 %v2000, %v1992
    %v2313 = vpack.c.b16 %v2001, %v1993
    %v2314 = vpack.c.b16 %v2010, %v2002
    %v2315 = vpack.c.b16 %v2011, %v2003
    %v2316 = vpack.c.b16 %v2012, %v2004
    %v2317 = vpack.c.b16 %v2013, %v2005
    %v2318 = vpack.c.b16 %v2014, %v2006
    %v2319 = vpack.c.b16 %v2015, %v2007
    %v2320 = vpack.c.b16 %v2016, %v2008
    %v2321 = vpack.c.b16 %v2017, %v2009
    %v2322 = vpack.c.b16 %v2026, %v2018
    %v2323 = vpack.c.b16 %v2027, %v2019
    %v2324 = vpack.c.b16 %v2028, %v2020
    %v2325 = vpack.c.b16 %v2029, %v2021
    %v2326 = vpack.c.b16 %v2030, %v2022
    %v2327 = vpack.c.b16 %v2031, %v2023
    %v2328 = vpack.c.b16 %v2032, %v2024
    %v2329 = vpack.c.b16 %v2033, %v2025
    %v2330 = vpack.c.b16 %v2042, %v2034
    %v2331 = vpack.c.b16 %v2043, %v2035
    %v2332 = vpack.c.b16 %v2044, %v2036
    %v2333 = vpack.c.b16 %v2045, %v2037
    %v2334 = vpack.c.b16 %v2046, %v2038
    %v2335 = vpack.c.b16 %v2047, %v2039
    %v2336 = vpack.c.b16 %v2048, %v2040
    %v2337 = vpack.c.b16 %v2049, %v2041
    %v2338 = vpack.c.b16 %v2058, %v2050
    %v2339 = vpack.c.b16 %v2059, %v2051
    %v2340 = vpack.c.b16 %v2060, %v2052
    %v2341 = vpack.c.b16 %v2061, %v2053
    %v2342 = vpack.c.b16 %v2062, %v2054
    %v2343 = vpack.c.b16 %v2063, %v2055
    %v2344 = vpack.c.b16 %v2064, %v2056
    %v2345 = vpack.c.b16 %v2065, %v2057
    %v2346 = vpack.c.b16 %v2074, %v2066
    %v2347 = vpack.c.b16 %v2075, %v2067
    %v2348 = vpack.c.b16 %v2076, %v2068
    %v2349 = vpack.c.b16 %v2077, %v2069
    %v2350 = vpack.c.b16 %v2078, %v2070
    %v2351 = vpack.c.b16 %v2079, %v2071
    %v2352 = vpack.c.b16 %v2080, %v2072
    %v2353 = vpack.c.b16 %v2081, %v2073
    %v2354 = vpack.c.b16 %v2090, %v2082
    %v2355 = vpack.c.b16 %v2091, %v2083
    %v2356 = vpack.c.b16 %v2092, %v2084
    %v2357 = vpack.c.b16 %v2093, %v2085
    %v2358 = vpack.c.b16 %v2094, %v2086
    %v2359 = vpack.c.b16 %v2095, %v2087
    %v2360 = vpack.c.b16 %v2096, %v2088
    %v2361 = vpack.c.b16 %v2097, %v2089
    %v2362 = vpack.c.b16 %v2106, %v2098
    %v2363 = vpack.c.b16 %v2107, %v2099
    %v2364 = vpack.c.b16 %v2108, %v2100
    %v2365 = vpack.c.b16 %v2109, %v2101
    %v2366 = vpack.c.b16 %v2110, %v2102
    %v2367 = vpack.c.b16 %v2111, %v2103
    %v2368 = vpack.c.b16 %v2112, %v2104
    %v2369 = vpack.c.b16 %v2113, %v2105
    %2626 = vmatprep.subr.bf16.mxu0 %v2115
    %2627 = vmatpush1.bf16.msra.mxu0 %v2114
    %2628 = vmatprep.subr.bf16.mxu0 %v2123
    %2629 = vmatpush1.bf16.msra.mxu0 %v2122
    %2630 = vmatprep.subr.bf16.mxu0 %v2131
    %2631 = vmatpush1.bf16.msra.mxu0 %v2130
    %2632 = vmatprep.subr.bf16.mxu0 %v2139
    %2633 = vmatpush1.bf16.msra.mxu0 %v2138
    %2634 = vmatprep.subr.bf16.mxu0 %v2147
    %2635 = vmatpush1.bf16.msra.mxu0 %v2146
    %2636 = vmatprep.subr.bf16.mxu0 %v2155
    %2637 = vmatpush1.bf16.msra.mxu0 %v2154
    %2638 = vmatprep.subr.bf16.mxu0 %v2163
    %2639 = vmatpush1.bf16.msra.mxu0 %v2162
    %2640 = vmatprep.subr.bf16.mxu0 %v2171
    %2641 = vmatpush1.bf16.msra.mxu0 %v2170
    %2642 = vmatprep.subr.bf16.mxu0 %v2179
    %2643 = vmatpush1.bf16.msra.mxu0 %v2178
    %2644 = vmatprep.subr.bf16.mxu0 %v2187
    %2645 = vmatpush1.bf16.msra.mxu0 %v2186
    %2646 = vmatprep.subr.bf16.mxu0 %v2195
    %2647 = vmatpush1.bf16.msra.mxu0 %v2194
    %2648 = vmatprep.subr.bf16.mxu0 %v2203
    %2649 = vmatpush1.bf16.msra.mxu0 %v2202
    %2650 = vmatprep.subr.bf16.mxu0 %v2211
    %2651 = vmatpush1.bf16.msra.mxu0 %v2210
    %2652 = vmatprep.subr.bf16.mxu0 %v2219
    %2653 = vmatpush1.bf16.msra.mxu0 %v2218
    %2654 = vmatprep.subr.bf16.mxu0 %v2227
    %2655 = vmatpush1.bf16.msra.mxu0 %v2226
    %2656 = vmatprep.subr.bf16.mxu0 %v2235
    %2657 = vmatpush1.bf16.msra.mxu0 %v2234
    %2658 = vmatprep.mubr.bf16.mxu0 %v1045
    %2659 = vmatmul.mubr.bf16.gmra.mrb[0].mxu0 %v1044
    %v2660 = vpop.f32.mrb[0].mxu0
    %v2661 = vadd.f32 %v1309, %v2660
    %v2662 = vpop.f32.mrb[0].mxu0
    %v2663 = vadd.f32 %v1313, %v2662
    %v2664 = vpop.f32.mrb[0].mxu0
    %v2665 = vadd.f32 %v1309, %v2664
    %v2666 = vpop.f32.mrb[0].mxu0
    %v2667 = vadd.f32 %v1313, %v2666
    %2668 = vdwg.mxu0
    %2669 = vmatprep.subr.bf16.mxu0 %v2243
    %2670 = vmatpush1.bf16.msra.mxu0 %v2242
    %2671 = vmatprep.subr.bf16.mxu0 %v2251
    %2672 = vmatpush1.bf16.msra.mxu0 %v2250
    %2673 = vmatprep.subr.bf16.mxu0 %v2259
    %2674 = vmatpush1.bf16.msra.mxu0 %v2258
    %2675 = vmatprep.subr.bf16.mxu0 %v2267
    %2676 = vmatpush1.bf16.msra.mxu0 %v2266
    %2677 = vmatprep.subr.bf16.mxu0 %v2275
    %2678 = vmatpush1.bf16.msra.mxu0 %v2274
    %2679 = vmatprep.subr.bf16.mxu0 %v2283
    %2680 = vmatpush1.bf16.msra.mxu0 %v2282
    %2681 = vmatprep.subr.bf16.mxu0 %v2291
    %2682 = vmatpush1.bf16.msra.mxu0 %v2290
    %2683 = vmatprep.subr.bf16.mxu0 %v2299
    %2684 = vmatpush1.bf16.msra.mxu0 %v2298
    %2685 = vmatprep.subr.bf16.mxu0 %v2307
    %2686 = vmatpush1.bf16.msra.mxu0 %v2306
    %2687 = vmatprep.subr.bf16.mxu0 %v2315
    %2688 = vmatpush1.bf16.msra.mxu0 %v2314
    %2689 = vmatprep.subr.bf16.mxu0 %v2323
    %2690 = vmatpush1.bf16.msra.mxu0 %v2322
    %2691 = vmatprep.subr.bf16.mxu0 %v2331
    %2692 = vmatpush1.bf16.msra.mxu0 %v2330
    %2693 = vmatprep.subr.bf16.mxu0 %v2339
    %2694 = vmatpush1.bf16.msra.mxu0 %v2338
    %2695 = vmatprep.subr.bf16.mxu0 %v2347
    %2696 = vmatpush1.bf16.msra.mxu0 %v2346
    %2697 = vmatprep.subr.bf16.mxu0 %v2355
    %2698 = vmatpush1.bf16.msra.mxu0 %v2354
    %2699 = vmatprep.subr.bf16.mxu0 %v2363
    %2700 = vmatpush1.bf16.msra.mxu0 %v2362
    %2701 = vmatprep.mubr.bf16.mxu0 %v1047
    %2702 = vmatmul.mubr.bf16.gmra.mrb[0].mxu0 %v1046
    %v2703 = vpop.f32.mrb[0].mxu0
    %v2704 = vadd.f32 %v2661, %v2703
    %v2705 = vpop.f32.mrb[0].mxu0
    %v2706 = vadd.f32 %v2663, %v2705
    %v2707 = vpop.f32.mrb[0].mxu0
    %v2708 = vadd.f32 %v2665, %v2707
    %v2709 = vpop.f32.mrb[0].mxu0
    %v2710 = vadd.f32 %v2667, %v2709
    %2711 = vdwg.mxu0
    %2712 = vmatprep.subr.bf16.mxu0 %v2117
    %2713 = vmatpush1.bf16.msra.mxu0 %v2116
    %2714 = vmatprep.subr.bf16.mxu0 %v2125
    %2715 = vmatpush1.bf16.msra.mxu0 %v2124
    %2716 = vmatprep.subr.bf16.mxu0 %v2133
    %2717 = vmatpush1.bf16.msra.mxu0 %v2132
    %2718 = vmatprep.subr.bf16.mxu0 %v2141
    %2719 = vmatpush1.bf16.msra.mxu0 %v2140
    %2720 = vmatprep.subr.bf16.mxu0 %v2149
    %2721 = vmatpush1.bf16.msra.mxu0 %v2148
    %2722 = vmatprep.subr.bf16.mxu0 %v2157
    %2723 = vmatpush1.bf16.msra.mxu0 %v2156
    %2724 = vmatprep.subr.bf16.mxu0 %v2165
    %2725 = vmatpush1.bf16.msra.mxu0 %v2164
    %2726 = vmatprep.subr.bf16.mxu0 %v2173
    %2727 = vmatpush1.bf16.msra.mxu0 %v2172
    %2728 = vmatprep.subr.bf16.mxu0 %v2181
    %2729 = vmatpush1.bf16.msra.mxu0 %v2180
    %2730 = vmatprep.subr.bf16.mxu0 %v2189
    %2731 = vmatpush1.bf16.msra.mxu0 %v2188
    %2732 = vmatprep.subr.bf16.mxu0 %v2197
    %2733 = vmatpush1.bf16.msra.mxu0 %v2196
    %2734 = vmatprep.subr.bf16.mxu0 %v2205
    %2735 = vmatpush1.bf16.msra.mxu0 %v2204
    %2736 = vmatprep.subr.bf16.mxu0 %v2213
    %2737 = vmatpush1.bf16.msra.mxu0 %v2212
    %2738 = vmatprep.subr.bf16.mxu0 %v2221
    %2739 = vmatpush1.bf16.msra.mxu0 %v2220
    %2740 = vmatprep.subr.bf16.mxu0 %v2229
    %2741 = vmatpush1.bf16.msra.mxu0 %v2228
    %2742 = vmatprep.subr.bf16.mxu0 %v2237
    %2743 = vmatpush1.bf16.msra.mxu0 %v2236
    %2744 = vmatprep.mubr.bf16.mxu0 %v1045
    %2745 = vmatmul.mubr.bf16.gmra.mrb[0].mxu0 %v1044
    %v2746 = vpop.f32.mrb[0].mxu0
    %v2747 = vadd.f32 %v1317, %v2746
    %v2748 = vpop.f32.mrb[0].mxu0
    %v2749 = vadd.f32 %v1321, %v2748
    %v2750 = vpop.f32.mrb[0].mxu0
    %v2751 = vadd.f32 %v1317, %v2750
    %v2752 = vpop.f32.mrb[0].mxu0
    %v2753 = vadd.f32 %v1321, %v2752
    %2754 = vdwg.mxu0
    %2755 = vmatprep.subr.bf16.mxu0 %v2245
    %2756 = vmatpush1.bf16.msra.mxu0 %v2244
    %2757 = vmatprep.subr.bf16.mxu0 %v2253
    %2758 = vmatpush1.bf16.msra.mxu0 %v2252
    %2759 = vmatprep.subr.bf16.mxu0 %v2261
    %2760 = vmatpush1.bf16.msra.mxu0 %v2260
    %2761 = vmatprep.subr.bf16.mxu0 %v2269
    %2762 = vmatpush1.bf16.msra.mxu0 %v2268
    %2763 = vmatprep.subr.bf16.mxu0 %v2277
    %2764 = vmatpush1.bf16.msra.mxu0 %v2276
    %2765 = vmatprep.subr.bf16.mxu0 %v2285
    %2766 = vmatpush1.bf16.msra.mxu0 %v2284
    %2767 = vmatprep.subr.bf16.mxu0 %v2293
    %2768 = vmatpush1.bf16.msra.mxu0 %v2292
    %2769 = vmatprep.subr.bf16.mxu0 %v2301
    %2770 = vmatpush1.bf16.msra.mxu0 %v2300
    %2771 = vmatprep.subr.bf16.mxu0 %v2309
    %2772 = vmatpush1.bf16.msra.mxu0 %v2308
    %2773 = vmatprep.subr.bf16.mxu0 %v2317
    %2774 = vmatpush1.bf16.msra.mxu0 %v2316
    %2775 = vmatprep.subr.bf16.mxu0 %v2325
    %2776 = vmatpush1.bf16.msra.mxu0 %v2324
    %2777 = vmatprep.subr.bf16.mxu0 %v2333
    %2778 = vmatpush1.bf16.msra.mxu0 %v2332
    %2779 = vmatprep.subr.bf16.mxu0 %v2341
    %2780 = vmatpush1.bf16.msra.mxu0 %v2340
    %2781 = vmatprep.subr.bf16.mxu0 %v2349
    %2782 = vmatpush1.bf16.msra.mxu0 %v2348
    %2783 = vmatprep.subr.bf16.mxu0 %v2357
    %2784 = vmatpush1.bf16.msra.mxu0 %v2356
    %2785 = vmatprep.subr.bf16.mxu0 %v2365
    %2786 = vmatpush1.bf16.msra.mxu0 %v2364
    %2787 = vmatprep.mubr.bf16.mxu0 %v1047
    %2788 = vmatmul.mubr.bf16.gmra.mrb[0].mxu0 %v1046
    %v2789 = vpop.f32.mrb[0].mxu0
    %v2790 = vadd.f32 %v2747, %v2789
    %v2791 = vpop.f32.mrb[0].mxu0
    %v2792 = vadd.f32 %v2749, %v2791
    %v2793 = vpop.f32.mrb[0].mxu0
    %v2794 = vadd.f32 %v2751, %v2793
    %v2795 = vpop.f32.mrb[0].mxu0
    %v2796 = vadd.f32 %v2753, %v2795
    %2797 = vdwg.mxu0
    %2798 = vmatprep.subr.bf16.mxu0 %v2119
    %2799 = vmatpush1.bf16.msra.mxu0 %v2118
    %2800 = vmatprep.subr.bf16.mxu0 %v2127
    %2801 = vmatpush1.bf16.msra.mxu0 %v2126
    %2802 = vmatprep.subr.bf16.mxu0 %v2135
    %2803 = vmatpush1.bf16.msra.mxu0 %v2134
    %2804 = vmatprep.subr.bf16.mxu0 %v2143
    %2805 = vmatpush1.bf16.msra.mxu0 %v2142
    %2806 = vmatprep.subr.bf16.mxu0 %v2151
    %2807 = vmatpush1.bf16.msra.mxu0 %v2150
    %2808 = vmatprep.subr.bf16.mxu0 %v2159
    %2809 = vmatpush1.bf16.msra.mxu0 %v2158
    %2810 = vmatprep.subr.bf16.mxu0 %v2167
    %2811 = vmatpush1.bf16.msra.mxu0 %v2166
    %2812 = vmatprep.subr.bf16.mxu0 %v2175
    %2813 = vmatpush1.bf16.msra.mxu0 %v2174
    %2814 = vmatprep.subr.bf16.mxu0 %v2183
    %2815 = vmatpush1.bf16.msra.mxu0 %v2182
    %2816 = vmatprep.subr.bf16.mxu0 %v2191
    %2817 = vmatpush1.bf16.msra.mxu0 %v2190
    %2818 = vmatprep.subr.bf16.mxu0 %v2199
    %2819 = vmatpush1.bf16.msra.mxu0 %v2198
    %2820 = vmatprep.subr.bf16.mxu0 %v2207
    %2821 = vmatpush1.bf16.msra.mxu0 %v2206
    %2822 = vmatprep.subr.bf16.mxu0 %v2215
    %2823 = vmatpush1.bf16.msra.mxu0 %v2214
    %2824 = vmatprep.subr.bf16.mxu0 %v2223
    %2825 = vmatpush1.bf16.msra.mxu0 %v2222
    %2826 = vmatprep.subr.bf16.mxu0 %v2231
    %2827 = vmatpush1.bf16.msra.mxu0 %v2230
    %2828 = vmatprep.subr.bf16.mxu0 %v2239
    %2829 = vmatpush1.bf16.msra.mxu0 %v2238
    %2830 = vmatprep.mubr.bf16.mxu0 %v1045
    %2831 = vmatmul.mubr.bf16.gmra.mrb[0].mxu0 %v1044
    %v2832 = vpop.f32.mrb[0].mxu0
    %v2833 = vadd.f32 %v1325, %v2832
    %v2834 = vpop.f32.mrb[0].mxu0
    %v2835 = vadd.f32 %v1329, %v2834
    %v2836 = vpop.f32.mrb[0].mxu0
    %v2837 = vadd.f32 %v1325, %v2836
    %v2838 = vpop.f32.mrb[0].mxu0
    %v2839 = vadd.f32 %v1329, %v2838
    %2840 = vdwg.mxu0
    %2841 = vmatprep.subr.bf16.mxu0 %v2247
    %2842 = vmatpush1.bf16.msra.mxu0 %v2246
    %2843 = vmatprep.subr.bf16.mxu0 %v2255
    %2844 = vmatpush1.bf16.msra.mxu0 %v2254
    %2845 = vmatprep.subr.bf16.mxu0 %v2263
    %2846 = vmatpush1.bf16.msra.mxu0 %v2262
    %2847 = vmatprep.subr.bf16.mxu0 %v2271
    %2848 = vmatpush1.bf16.msra.mxu0 %v2270
    %2849 = vmatprep.subr.bf16.mxu0 %v2279
    %2850 = vmatpush1.bf16.msra.mxu0 %v2278
    %2851 = vmatprep.subr.bf16.mxu0 %v2287
    %2852 = vmatpush1.bf16.msra.mxu0 %v2286
    %2853 = vmatprep.subr.bf16.mxu0 %v2295
    %2854 = vmatpush1.bf16.msra.mxu0 %v2294
    %2855 = vmatprep.subr.bf16.mxu0 %v2303
    %2856 = vmatpush1.bf16.msra.mxu0 %v2302
    %2857 = vmatprep.subr.bf16.mxu0 %v2311
    %2858 = vmatpush1.bf16.msra.mxu0 %v2310
    %2859 = vmatprep.subr.bf16.mxu0 %v2319
    %2860 = vmatpush1.bf16.msra.mxu0 %v2318
    %2861 = vmatprep.subr.bf16.mxu0 %v2327
    %2862 = vmatpush1.bf16.msra.mxu0 %v2326
    %2863 = vmatprep.subr.bf16.mxu0 %v2335
    %2864 = vmatpush1.bf16.msra.mxu0 %v2334
    %2865 = vmatprep.subr.bf16.mxu0 %v2343
    %2866 = vmatpush1.bf16.msra.mxu0 %v2342
    %2867 = vmatprep.subr.bf16.mxu0 %v2351
    %2868 = vmatpush1.bf16.msra.mxu0 %v2350
    %2869 = vmatprep.subr.bf16.mxu0 %v2359
    %2870 = vmatpush1.bf16.msra.mxu0 %v2358
    %2871 = vmatprep.subr.bf16.mxu0 %v2367
    %2872 = vmatpush1.bf16.msra.mxu0 %v2366
    %2873 = vmatprep.mubr.bf16.mxu0 %v1047
    %2874 = vmatmul.mubr.bf16.gmra.mrb[0].mxu0 %v1046
    %v2875 = vpop.f32.mrb[0].mxu0
    %v2876 = vadd.f32 %v2833, %v2875
    %v2877 = vpop.f32.mrb[0].mxu0
    %v2878 = vadd.f32 %v2835, %v2877
    %v2879 = vpop.f32.mrb[0].mxu0
    %v2880 = vadd.f32 %v2837, %v2879
    %v2881 = vpop.f32.mrb[0].mxu0
    %v2882 = vadd.f32 %v2839, %v2881
    %2883 = vdwg.mxu0
    %2884 = vmatprep.subr.bf16.mxu0 %v2121
    %2885 = vmatpush1.bf16.msra.mxu0 %v2120
    %2886 = vmatprep.subr.bf16.mxu0 %v2129
    %2887 = vmatpush1.bf16.msra.mxu0 %v2128
    %2888 = vmatprep.subr.bf16.mxu0 %v2137
    %2889 = vmatpush1.bf16.msra.mxu0 %v2136
    %2890 = vmatprep.subr.bf16.mxu0 %v2145
    %2891 = vmatpush1.bf16.msra.mxu0 %v2144
    %2892 = vmatprep.subr.bf16.mxu0 %v2153
    %2893 = vmatpush1.bf16.msra.mxu0 %v2152
    %2894 = vmatprep.subr.bf16.mxu0 %v2161
    %2895 = vmatpush1.bf16.msra.mxu0 %v2160
    %2896 = vmatprep.subr.bf16.mxu0 %v2169
    %2897 = vmatpush1.bf16.msra.mxu0 %v2168
    %2898 = vmatprep.subr.bf16.mxu0 %v2177
    %2899 = vmatpush1.bf16.msra.mxu0 %v2176
    %2900 = vmatprep.subr.bf16.mxu0 %v2185
    %2901 = vmatpush1.bf16.msra.mxu0 %v2184
    %2902 = vmatprep.subr.bf16.mxu0 %v2193
    %2903 = vmatpush1.bf16.msra.mxu0 %v2192
    %2904 = vmatprep.subr.bf16.mxu0 %v2201
    %2905 = vmatpush1.bf16.msra.mxu0 %v2200
    %2906 = vmatprep.subr.bf16.mxu0 %v2209
    %2907 = vmatpush1.bf16.msra.mxu0 %v2208
    %2908 = vmatprep.subr.bf16.mxu0 %v2217
    %2909 = vmatpush1.bf16.msra.mxu0 %v2216
    %2910 = vmatprep.subr.bf16.mxu0 %v2225
    %2911 = vmatpush1.bf16.msra.mxu0 %v2224
    %2912 = vmatprep.subr.bf16.mxu0 %v2233
    %2913 = vmatpush1.bf16.msra.mxu0 %v2232
    %2914 = vmatprep.subr.bf16.mxu0 %v2241
    %2915 = vmatpush1.bf16.msra.mxu0 %v2240
    %2916 = vmatprep.mubr.bf16.mxu0 %v1045
    %2917 = vmatmul.mubr.bf16.gmra.mrb[0].mxu0 %v1044
    %v2918 = vpop.f32.mrb[0].mxu0
    %v2919 = vadd.f32 %v1333, %v2918
    %v2920 = vpop.f32.mrb[0].mxu0
    %v2921 = vadd.f32 %v1337, %v2920
    %v2922 = vpop.f32.mrb[0].mxu0
    %v2923 = vadd.f32 %v1333, %v2922
    %v2924 = vpop.f32.mrb[0].mxu0
    %v2925 = vadd.f32 %v1337, %v2924
    %2926 = vdwg.mxu0
    %2927 = vmatprep.subr.bf16.mxu0 %v2249
    %2928 = vmatpush1.bf16.msra.mxu0 %v2248
    %2929 = vmatprep.subr.bf16.mxu0 %v2257
    %2930 = vmatpush1.bf16.msra.mxu0 %v2256
    %2931 = vmatprep.subr.bf16.mxu0 %v2265
    %2932 = vmatpush1.bf16.msra.mxu0 %v2264
    %2933 = vmatprep.subr.bf16.mxu0 %v2273
    %2934 = vmatpush1.bf16.msra.mxu0 %v2272
    %2935 = vmatprep.subr.bf16.mxu0 %v2281
    %2936 = vmatpush1.bf16.msra.mxu0 %v2280
    %2937 = vmatprep.subr.bf16.mxu0 %v2289
    %2938 = vmatpush1.bf16.msra.mxu0 %v2288
    %2939 = vmatprep.subr.bf16.mxu0 %v2297
    %2940 = vmatpush1.bf16.msra.mxu0 %v2296
    %2941 = vmatprep.subr.bf16.mxu0 %v2305
    %2942 = vmatpush1.bf16.msra.mxu0 %v2304
    %2943 = vmatprep.subr.bf16.mxu0 %v2313
    %2944 = vmatpush1.bf16.msra.mxu0 %v2312
    %2945 = vmatprep.subr.bf16.mxu0 %v2321
    %2946 = vmatpush1.bf16.msra.mxu0 %v2320
    %2947 = vmatprep.subr.bf16.mxu0 %v2329
    %2948 = vmatpush1.bf16.msra.mxu0 %v2328
    %2949 = vmatprep.subr.bf16.mxu0 %v2337
    %2950 = vmatpush1.bf16.msra.mxu0 %v2336
    %2951 = vmatprep.subr.bf16.mxu0 %v2345
    %2952 = vmatpush1.bf16.msra.mxu0 %v2344
    %2953 = vmatprep.subr.bf16.mxu0 %v2353
    %2954 = vmatpush1.bf16.msra.mxu0 %v2352
    %2955 = vmatprep.subr.bf16.mxu0 %v2361
    %2956 = vmatpush1.bf16.msra.mxu0 %v2360
    %2957 = vmatprep.subr.bf16.mxu0 %v2369
    %2958 = vmatpush1.bf16.msra.mxu0 %v2368
    %2959 = vmatprep.mubr.bf16.mxu0 %v1047
    %2960 = vmatmul.mubr.bf16.gmra.mrb[0].mxu0 %v1046
    %v2961 = vpop.f32.mrb[0].mxu0
    %v2962 = vadd.f32 %v2919, %v2961
    %v2963 = vpop.f32.mrb[0].mxu0
    %v2964 = vadd.f32 %v2921, %v2963
    %v2965 = vpop.f32.mrb[0].mxu0
    %v2966 = vadd.f32 %v2923, %v2965
    %v2967 = vpop.f32.mrb[0].mxu0
    %v2968 = vadd.f32 %v2925, %v2967
    %2969 = vdwg.mxu0
    %2970 = vst [vmem:[#allocation8] sm:$0xff] %v2704
    %2971 = vst [vmem:[#allocation8 + $0x8] sm:$0xff] %v2706
    %2972 = vst [vmem:[#allocation8 + $0x10] sm:$0xff] %v2790
    %2973 = vst [vmem:[#allocation8 + $0x18] sm:$0xff] %v2792
    %2974 = vst [vmem:[#allocation8 + $0x20] sm:$0xff] %v2876
    %2975 = vst [vmem:[#allocation8 + $0x28] sm:$0xff] %v2878
    %2976 = vst [vmem:[#allocation8 + $0x30] sm:$0xff] %v2962
    %2977 = vst [vmem:[#allocation8 + $0x38] sm:$0xff] %v2964
    %2978 = vst [vmem:[#allocation8 + $0x40] sm:$0xff] %v2708
    %2979 = vst [vmem:[#allocation8 + $0x48] sm:$0xff] %v2710
    %2980 = vst [vmem:[#allocation8 + $0x50] sm:$0xff] %v2794
    %2981 = vst [vmem:[#allocation8 + $0x58] sm:$0xff] %v2796
    %2982 = vst [vmem:[#allocation8 + $0x60] sm:$0xff] %v2880
    %2983 = vst [vmem:[#allocation8 + $0x68] sm:$0xff] %v2882
    %2984 = vst [vmem:[#allocation8 + $0x70] sm:$0xff] %v2966
    %2985 = vst [vmem:[#allocation8 + $0x78] sm:$0xff] %v2968
    // Predicated region
    $region34: #{tpu_custom_call.1} parent=1 // pred_check
      _
    $region35: #{tpu_custom_call.1} parent=1 // pred_check_branch
      %2987 = sbr.rel (0) target = $region37
    $region36: #{tpu_custom_call.1} parent=1 // pred_region
      %s2989 = ssub.s32 2048, 2048
      %2990 = vsyncadd [#allocation4], %s2989
      %s2991 = sshll.u32 [#allocation8], 4
      %s2992 = int_to_ptr.vmem [resolvable:$true] %s2991
      %2997 = dma.vmem_to_hbm [thread:$0]  %s2992, 2048, %s5, [#allocation4], 1024, 1024, 64
    $region37: #{tpu_custom_call.1} parent=1 // pred_fallthru
      _
    // Predicated region
    $region38: #{tpu_custom_call.1} parent=1 // pred_check
      _
    $region39: #{tpu_custom_call.1} parent=1 // pred_check_branch
      %2999 = sbr.rel (0) target = $region41
    $region40: #{tpu_custom_call.1} parent=1 // pred_region
      %3000 = dma.done [#allocation4], 2048
    $region41: #{tpu_custom_call.1} parent=1 // pred_fallthru
      _
    %3001 = vsyncpa [#allocation3], 1
    %3002 = vsyncpa [#allocation6], 1
    %3003 = vsyncpa [#allocation4], 1

// kernel: tpu_custom_call.1
$region0: #{tpu_custom_call.1}
  #allocation0 [shape = 'u32[]', space=smem, size = 0x4, offset = 0x4, fixed_abs, tag = 'smem constant byte address 0x4 - core index']
  #allocation1 [shape = 'u32[144,128]{1,0:T(1,128)}', space=vmem, size = 0x12000, scoped, tag = 'internal scratch']
  %s0 = inlined_call_operand.hbm [shape: f32[16,512], index: 0, kind: input, shape index: {}]
  %s1 = inlined_call_operand.hbm [shape: bf16[512,512], index: 1, kind: input, shape index: {}]
  %s2 = inlined_call_operand.vmem [shape: f32[1,512], index: 2, kind: input, shape index: {}]
  %s3 = inlined_call_operand.hbm [shape: bf16[512,1024], index: 3, kind: input, shape index: {}]
  %s4 = inlined_call_operand.vmem [shape: f32[1,1024], index: 4, kind: input, shape index: {}]
  %s5 = inlined_call_operand.hbm [shape: f32[16,1024], index: 5, kind: output, shape index: {}]
  %s6 = sld [smem:[#allocation0]]
  $region42: #{tpu_custom_call.1} parent=0
    _
  %s8 = ssub.s32 1, %s6
  %s9 = scalar_select 0, %s8, %s6
  $region1: #{tpu_custom_call.1} parent=0
    #allocation2 [shape = 'u8[32768]{0}', space=vmem, size = 0x8000, scoped, tag = 'input window, operand 0, single buffered']
    #allocation3 [shape = 's32[1]{0}', space=sflag, size = 0x4, scoped, tag = 'scoped memory for tpu_custom_call.1']
    #allocation4 [shape = 's32[1]{0}', space=sflag, size = 0x4, scoped, tag = 'scoped memory for tpu_custom_call.1']
    #allocation5 [shape = 'u8[524288]{0}', space=vmem, size = 0x80000, scoped, tag = 'input window, operand 1, single buffered']
    #allocation6 [shape = 's32[1]{0}', space=sflag, size = 0x4, scoped, tag = 'scoped memory for tpu_custom_call.1']
    #allocation7 [shape = 'u8[1048576]{0}', space=vmem, size = 0x100000, scoped, tag = 'input window, operand 3, single buffered']
    #allocation8 [shape = 'u8[65536]{0}', space=vmem, size = 0x10000, scoped, tag = 'output window, operand 0, single buffered']
    %10 = vsyncpa [#allocation3], 0
    %11 = vsyncpa [#allocation6], 0
    %12 = vsyncpa [#allocation4], 0
    // Predicated region
    $region2: #{tpu_custom_call.1} parent=1 // pred_check
      _
    $region3: #{tpu_custom_call.1} parent=1 // pred_check_branch
      %14 = sbr.rel (0) target = $region5
    $region4: #{tpu_custom_call.1} parent=1 // pred_region
      %s16 = ssub.s32 1024, 1024
      %17 = vsyncadd [#allocation3], %s16
      %s18 = sshll.u32 [#allocation2], 4
      %s19 = int_to_ptr.vmem [resolvable:$true] %s18
      %24 = dma.hbm_to_vmem [thread:$0]  %s0, 1024, %s19, [#allocation3], 512, 512, 32
    $region5: #{tpu_custom_call.1} parent=1 // pred_fallthru
      _
    // Predicated region
    $region6: #{tpu_custom_call.1} parent=1 // pred_check
      _
    $region7: #{tpu_custom_call.1} parent=1 // pred_check_branch
      %26 = sbr.rel (0) target = $region9
    $region8: #{tpu_custom_call.1} parent=1 // pred_region
      %s28 = ssub.s32 16384, 16384
      %29 = vsyncadd [#allocation6], %s28
      %s30 = sshll.u32 [#allocation5], 4
      %s31 = int_to_ptr.vmem [resolvable:$true] %s30
      %36 = dma.hbm_to_vmem [thread:$0]  %s1, 16384, %s31, [#allocation6], 256, 256, 16
    $region9: #{tpu_custom_call.1} parent=1 // pred_fallthru
      _
    // Predicated region
    $region10: #{tpu_custom_call.1} parent=1 // pred_check
      _
    $region11: #{tpu_custom_call.1} parent=1 // pred_check_branch
      %38 = sbr.rel (0) target = $region13
    $region12: #{tpu_custom_call.1} parent=1 // pred_region
      _
    $region13: #{tpu_custom_call.1} parent=1 // pred_fallthru
      _
    // Predicated region
    $region14: #{tpu_custom_call.1} parent=1 // pred_check
      _
    $region15: #{tpu_custom_call.1} parent=1 // pred_check_branch
      %40 = sbr.rel (0) target = $region17
    $region16: #{tpu_custom_call.1} parent=1 // pred_region
      %s42 = ssub.s32 32768, 32768
      %43 = vsyncadd [#allocation6], %s42
      %s44 = sshll.u32 [#allocation7], 4
      %s45 = int_to_ptr.vmem [resolvable:$true] %s44
      %50 = dma.hbm_to_vmem [thread:$0]  %s3, 32768, %s45, [#allocation6], 512, 512, 32
    $region17: #{tpu_custom_call.1} parent=1 // pred_fallthru
      _
    // Predicated region
    $region18: #{tpu_custom_call.1} parent=1 // pred_check
      _
    $region19: #{tpu_custom_call.1} parent=1 // pred_check_branch
      %52 = sbr.rel (0) target = $region21
    $region20: #{tpu_custom_call.1} parent=1 // pred_region
      _
    $region21: #{tpu_custom_call.1} parent=1 // pred_fallthru
      _
    // Predicated region
    $region22: #{tpu_custom_call.1} parent=1 // pred_check
      _
    $region23: #{tpu_custom_call.1} parent=1 // pred_check_branch
      %54 = sbr.rel (0) target = $region25
    $region24: #{tpu_custom_call.1} parent=1 // pred_region
      %55 = dma.done [#allocation3], 1024
    $region25: #{tpu_custom_call.1} parent=1 // pred_fallthru
      _
    // Predicated region
    $region26: #{tpu_custom_call.1} parent=1 // pred_check
      _
    $region27: #{tpu_custom_call.1} parent=1 // pred_check_branch
      %57 = sbr.rel (0) target = $region29
    $region28: #{tpu_custom_call.1} parent=1 // pred_region
      %58 = dma.done [#allocation6], 16384
    $region29: #{tpu_custom_call.1} parent=1 // pred_fallthru
      _
    // Predicated region
    $region30: #{tpu_custom_call.1} parent=1 // pred_check
      _
    $region31: #{tpu_custom_call.1} parent=1 // pred_check_branch
      %60 = sbr.rel (0) target = $region33
    $region32: #{tpu_custom_call.1} parent=1 // pred_region
      %61 = dma.done [#allocation6], 32768
    $region33: #{tpu_custom_call.1} parent=1 // pred_fallthru
      _
    %v62 = vld [vmem:[#allocation2] sm:$0xff]
    %v63 = vld [vmem:[#allocation2 + $0x8] sm:$0xff]
    %v64 = vld [vmem:[#allocation2 + $0x10] sm:$0xff]
    %v65 = vld [vmem:[#allocation2 + $0x18] sm:$0xff]
    %v66 = vld [vmem:[#allocation2 + $0x20] sm:$0xff]
    %v67 = vld [vmem:[#allocation2 + $0x28] sm:$0xff]
    %v68 = vld [vmem:[#allocation2 + $0x30] sm:$0xff]
    %v69 = vld [vmem:[#allocation2 + $0x38] sm:$0xff]
    %v70 = vpack.c.bf16 %v66, %v62
    %v71 = vpack.c.bf16 %v67, %v63
    %v72 = vpack.c.bf16 %v68, %v64
    %v73 = vpack.c.bf16 %v69, %v65
    %v74 = vld [vmem:[#allocation5] sm:$0xff]
    %v75 = vld [vmem:[#allocation5 + $0x8] sm:$0xff]
    %v76 = vld [vmem:[#allocation5 + $0x10] sm:$0xff]
    %v77 = vld [vmem:[#allocation5 + $0x18] sm:$0xff]
    %v78 = vld [vmem:[#allocation5 + $0x20] sm:$0xff]
    %v79 = vld [vmem:[#allocation5 + $0x28] sm:$0xff]
    %v80 = vld [vmem:[#allocation5 + $0x30] sm:$0xff]
    %v81 = vld [vmem:[#allocation5 + $0x38] sm:$0xff]
    %v82 = vld [vmem:[#allocation5 + $0x40] sm:$0xff]
    %v83 = vld [vmem:[#allocation5 + $0x48] sm:$0xff]
    %v84 = vld [vmem:[#allocation5 + $0x50] sm:$0xff]
    %v85 = vld [vmem:[#allocation5 + $0x58] sm:$0xff]
    %v86 = vld [vmem:[#allocation5 + $0x60] sm:$0xff]
    %v87 = vld [vmem:[#allocation5 + $0x68] sm:$0xff]
    %v88 = vld [vmem:[#allocation5 + $0x70] sm:$0xff]
    %v89 = vld [vmem:[#allocation5 + $0x78] sm:$0xff]
    %v90 = vld [vmem:[#allocation5 + $0x80] sm:$0xff]
    %v91 = vld [vmem:[#allocation5 + $0x88] sm:$0xff]
    %v92 = vld [vmem:[#allocation5 + $0x90] sm:$0xff]
    %v93 = vld [vmem:[#allocation5 + $0x98] sm:$0xff]
    %v94 = vld [vmem:[#allocation5 + $0xa0] sm:$0xff]
    %v95 = vld [vmem:[#allocation5 + $0xa8] sm:$0xff]
    %v96 = vld [vmem:[#allocation5 + $0xb0] sm:$0xff]
    %v97 = vld [vmem:[#allocation5 + $0xb8] sm:$0xff]
    %v98 = vld [vmem:[#allocation5 + $0xc0] sm:$0xff]
    %v99 = vld [vmem:[#allocation5 + $0xc8] sm:$0xff]
    %v100 = vld [vmem:[#allocation5 + $0xd0] sm:$0xff]
    %v101 = vld [vmem:[#allocation5 + $0xd8] sm:$0xff]
    %v102 = vld [vmem:[#allocation5 + $0xe0] sm:$0xff]
    %v103 = vld [vmem:[#allocation5 + $0xe8] sm:$0xff]
    %v104 = vld [vmem:[#allocation5 + $0xf0] sm:$0xff]
    %v105 = vld [vmem:[#allocation5 + $0xf8] sm:$0xff]
    %v106 = vld [vmem:[#allocation5 + $0x100] sm:$0xff]
    %v107 = vld [vmem:[#allocation5 + $0x108] sm:$0xff]
    %v108 = vld [vmem:[#allocation5 + $0x110] sm:$0xff]
    %v109 = vld [vmem:[#allocation5 + $0x118] sm:$0xff]
    %v110 = vld [vmem:[#allocation5 + $0x120] sm:$0xff]
    %v111 = vld [vmem:[#allocation5 + $0x128] sm:$0xff]
    %v112 = vld [vmem:[#allocation5 + $0x130] sm:$0xff]
    %v113 = vld [vmem:[#allocation5 + $0x138] sm:$0xff]
    %v114 = vld [vmem:[#allocation5 + $0x140] sm:$0xff]
    %v115 = vld [vmem:[#allocation5 + $0x148] sm:$0xff]
    %v116 = vld [vmem:[#allocation5 + $0x150] sm:$0xff]
    %v117 = vld [vmem:[#allocation5 + $0x158] sm:$0xff]
    %v118 = vld [vmem:[#allocation5 + $0x160] sm:$0xff]
    %v119 = vld [vmem:[#allocation5 + $0x168] sm:$0xff]
    %v120 = vld [vmem:[#allocation5 + $0x170] sm:$0xff]
    %v121 = vld [vmem:[#allocation5 + $0x178] sm:$0xff]
    %v122 = vld [vmem:[#allocation5 + $0x180] sm:$0xff]
    %v123 = vld [vmem:[#allocation5 + $0x188] sm:$0xff]
    %v124 = vld [vmem:[#allocation5 + $0x190] sm:$0xff]
    %v125 = vld [vmem:[#allocation5 + $0x198] sm:$0xff]
    %v126 = vld [vmem:[#allocation5 + $0x1a0] sm:$0xff]
    %v127 = vld [vmem:[#allocation5 + $0x1a8] sm:$0xff]
    %v128 = vld [vmem:[#allocation5 + $0x1b0] sm:$0xff]
    %v129 = vld [vmem:[#allocation5 + $0x1b8] sm:$0xff]
    %v130 = vld [vmem:[#allocation5 + $0x1c0] sm:$0xff]
    %v131 = vld [vmem:[#allocation5 + $0x1c8] sm:$0xff]
    %v132 = vld [vmem:[#allocation5 + $0x1d0] sm:$0xff]
    %v133 = vld [vmem:[#allocation5 + $0x1d8] sm:$0xff]
    %v134 = vld [vmem:[#allocation5 + $0x1e0] sm:$0xff]
    %v135 = vld [vmem:[#allocation5 + $0x1e8] sm:$0xff]
    %v136 = vld [vmem:[#allocation5 + $0x1f0] sm:$0xff]
    %v137 = vld [vmem:[#allocation5 + $0x1f8] sm:$0xff]
    %v138 = vld [vmem:[#allocation5 + $0x200] sm:$0xff]
    %v139 = vld [vmem:[#allocation5 + $0x208] sm:$0xff]
    %v140 = vld [vmem:[#allocation5 + $0x210] sm:$0xff]
    %v141 = vld [vmem:[#allocation5 + $0x218] sm:$0xff]
    %v142 = vld [vmem:[#allocation5 + $0x220] sm:$0xff]
    %v143 = vld [vmem:[#allocation5 + $0x228] sm:$0xff]
    %v144 = vld [vmem:[#allocation5 + $0x230] sm:$0xff]
    %v145 = vld [vmem:[#allocation5 + $0x238] sm:$0xff]
    %v146 = vld [vmem:[#allocation5 + $0x240] sm:$0xff]
    %v147 = vld [vmem:[#allocation5 + $0x248] sm:$0xff]
    %v148 = vld [vmem:[#allocation5 + $0x250] sm:$0xff]
    %v149 = vld [vmem:[#allocation5 + $0x258] sm:$0xff]
    %v150 = vld [vmem:[#allocation5 + $0x260] sm:$0xff]
    %v151 = vld [vmem:[#allocation5 + $0x268] sm:$0xff]
    %v152 = vld [vmem:[#allocation5 + $0x270] sm:$0xff]
    %v153 = vld [vmem:[#allocation5 + $0x278] sm:$0xff]
    %v154 = vld [vmem:[#allocation5 + $0x280] sm:$0xff]
    %v155 = vld [vmem:[#allocation5 + $0x288] sm:$0xff]
    %v156 = vld [vmem:[#allocation5 + $0x290] sm:$0xff]
    %v157 = vld [vmem:[#allocation5 + $0x298] sm:$0xff]
    %v158 = vld [vmem:[#allocation5 + $0x2a0] sm:$0xff]
    %v159 = vld [vmem:[#allocation5 + $0x2a8] sm:$0xff]
    %v160 = vld [vmem:[#allocation5 + $0x2b0] sm:$0xff]
    %v161 = vld [vmem:[#allocation5 + $0x2b8] sm:$0xff]
    %v162 = vld [vmem:[#allocation5 + $0x2c0] sm:$0xff]
    %v163 = vld [vmem:[#allocation5 + $0x2c8] sm:$0xff]
    %v164 = vld [vmem:[#allocation5 + $0x2d0] sm:$0xff]
    %v165 = vld [vmem:[#allocation5 + $0x2d8] sm:$0xff]
    %v166 = vld [vmem:[#allocation5 + $0x2e0] sm:$0xff]
    %v167 = vld [vmem:[#allocation5 + $0x2e8] sm:$0xff]
    %v168 = vld [vmem:[#allocation5 + $0x2f0] sm:$0xff]
    %v169 = vld [vmem:[#allocation5 + $0x2f8] sm:$0xff]
    %v170 = vld [vmem:[#allocation5 + $0x300] sm:$0xff]
    %v171 = vld [vmem:[#allocation5 + $0x308] sm:$0xff]
    %v172 = vld [vmem:[#allocation5 + $0x310] sm:$0xff]
    %v173 = vld [vmem:[#allocation5 + $0x318] sm:$0xff]
    %v174 = vld [vmem:[#allocation5 + $0x320] sm:$0xff]
    %v175 = vld [vmem:[#allocation5 + $0x328] sm:$0xff]
    %v176 = vld [vmem:[#allocation5 + $0x330] sm:$0xff]
    %v177 = vld [vmem:[#allocation5 + $0x338] sm:$0xff]
    %v178 = vld [vmem:[#allocation5 + $0x340] sm:$0xff]
    %v179 = vld [vmem:[#allocation5 + $0x348] sm:$0xff]
    %v180 = vld [vmem:[#allocation5 + $0x350] sm:$0xff]
    %v181 = vld [vmem:[#allocation5 + $0x358] sm:$0xff]
    %v182 = vld [vmem:[#allocation5 + $0x360] sm:$0xff]
    %v183 = vld [vmem:[#allocation5 + $0x368] sm:$0xff]
    %v184 = vld [vmem:[#allocation5 + $0x370] sm:$0xff]
    %v185 = vld [vmem:[#allocation5 + $0x378] sm:$0xff]
    %v186 = vld [vmem:[#allocation5 + $0x380] sm:$0xff]
    %v187 = vld [vmem:[#allocation5 + $0x388] sm:$0xff]
    %v188 = vld [vmem:[#allocation5 + $0x390] sm:$0xff]
    %v189 = vld [vmem:[#allocation5 + $0x398] sm:$0xff]
    %v190 = vld [vmem:[#allocation5 + $0x3a0] sm:$0xff]
    %v191 = vld [vmem:[#allocation5 + $0x3a8] sm:$0xff]
    %v192 = vld [vmem:[#allocation5 + $0x3b0] sm:$0xff]
    %v193 = vld [vmem:[#allocation5 + $0x3b8] sm:$0xff]
    %v194 = vld [vmem:[#allocation5 + $0x3c0] sm:$0xff]
    %v195 = vld [vmem:[#allocation5 + $0x3c8] sm:$0xff]
    %v196 = vld [vmem:[#allocation5 + $0x3d0] sm:$0xff]
    %v197 = vld [vmem:[#allocation5 + $0x3d8] sm:$0xff]
    %v198 = vld [vmem:[#allocation5 + $0x3e0] sm:$0xff]
    %v199 = vld [vmem:[#allocation5 + $0x3e8] sm:$0xff]
    %v200 = vld [vmem:[#allocation5 + $0x3f0] sm:$0xff]
    %v201 = vld [vmem:[#allocation5 + $0x3f8] sm:$0xff]
    %v202 = vld [vmem:[%s2] sm:$0xf]
    %v204 = vlaneseq
    %v205 = vshrl.u32 %v204, 7
    %v206 = vsub.s32 0, %v205
    %v207 = vrot.slane %v202, %v206
    %v208 = vlaneseq
    %v209 = vshrl.u32 %v208, 7
    %v210 = vsub.s32 1, %v209
    %v211 = vrot.slane %v202, %v210
    %v212 = vlaneseq
    %v213 = vshrl.u32 %v212, 7
    %v214 = vsub.s32 2, %v213
    %v215 = vrot.slane %v202, %v214
    %v216 = vlaneseq
    %v217 = vshrl.u32 %v216, 7
    %v218 = vsub.s32 3, %v217
    %v219 = vrot.slane %v202, %v218
    %v352 = vunpack.c.l.b16 %v74
    %v353 = vunpack.c.h.b16 %v74
    %v354 = vunpack.c.l.b16 %v75
    %v355 = vunpack.c.h.b16 %v75
    %v356 = vunpack.c.l.b16 %v76
    %v357 = vunpack.c.h.b16 %v76
    %v358 = vunpack.c.l.b16 %v77
    %v359 = vunpack.c.h.b16 %v77
    %v360 = vunpack.c.l.b16 %v78
    %v361 = vunpack.c.h.b16 %v78
    %v362 = vunpack.c.l.b16 %v79
    %v363 = vunpack.c.h.b16 %v79
    %v364 = vunpack.c.l.b16 %v80
    %v365 = vunpack.c.h.b16 %v80
    %v366 = vunpack.c.l.b16 %v81
    %v367 = vunpack.c.h.b16 %v81
    %v368 = vunpack.c.l.b16 %v82
    %v369 = vunpack.c.h.b16 %v82
    %v370 = vunpack.c.l.b16 %v83
    %v371 = vunpack.c.h.b16 %v83
    %v372 = vunpack.c.l.b16 %v84
    %v373 = vunpack.c.h.b16 %v84
    %v374 = vunpack.c.l.b16 %v85
    %v375 = vunpack.c.h.b16 %v85
    %v376 = vunpack.c.l.b16 %v86
    %v377 = vunpack.c.h.b16 %v86
    %v378 = vunpack.c.l.b16 %v87
    %v379 = vunpack.c.h.b16 %v87
    %v380 = vunpack.c.l.b16 %v88
    %v381 = vunpack.c.h.b16 %v88
    %v382 = vunpack.c.l.b16 %v89
    %v383 = vunpack.c.h.b16 %v89
    %v384 = vunpack.c.l.b16 %v90
    %v385 = vunpack.c.h.b16 %v90
    %v386 = vunpack.c.l.b16 %v91
    %v387 = vunpack.c.h.b16 %v91
    %v388 = vunpack.c.l.b16 %v92
    %v389 = vunpack.c.h.b16 %v92
    %v390 = vunpack.c.l.b16 %v93
    %v391 = vunpack.c.h.b16 %v93
    %v392 = vunpack.c.l.b16 %v94
    %v393 = vunpack.c.h.b16 %v94
    %v394 = vunpack.c.l.b16 %v95
    %v395 = vunpack.c.h.b16 %v95
    %v396 = vunpack.c.l.b16 %v96
    %v397 = vunpack.c.h.b16 %v96
    %v398 = vunpack.c.l.b16 %v97
    %v399 = vunpack.c.h.b16 %v97
    %v400 = vunpack.c.l.b16 %v98
    %v401 = vunpack.c.h.b16 %v98
    %v402 = vunpack.c.l.b16 %v99
    %v403 = vunpack.c.h.b16 %v99
    %v404 = vunpack.c.l.b16 %v100
    %v405 = vunpack.c.h.b16 %v100
    %v406 = vunpack.c.l.b16 %v101
    %v407 = vunpack.c.h.b16 %v101
    %v408 = vunpack.c.l.b16 %v102
    %v409 = vunpack.c.h.b16 %v102
    %v410 = vunpack.c.l.b16 %v103
    %v411 = vunpack.c.h.b16 %v103
    %v412 = vunpack.c.l.b16 %v104
    %v413 = vunpack.c.h.b16 %v104
    %v414 = vunpack.c.l.b16 %v105
    %v415 = vunpack.c.h.b16 %v105
    %v416 = vunpack.c.l.b16 %v106
    %v417 = vunpack.c.h.b16 %v106
    %v418 = vunpack.c.l.b16 %v107
    %v419 = vunpack.c.h.b16 %v107
    %v420 = vunpack.c.l.b16 %v108
    %v421 = vunpack.c.h.b16 %v108
    %v422 = vunpack.c.l.b16 %v109
    %v423 = vunpack.c.h.b16 %v109
    %v424 = vunpack.c.l.b16 %v110
    %v425 = vunpack.c.h.b16 %v110
    %v426 = vunpack.c.l.b16 %v111
    %v427 = vunpack.c.h.b16 %v111
    %v428 = vunpack.c.l.b16 %v112
    %v429 = vunpack.c.h.b16 %v112
    %v430 = vunpack.c.l.b16 %v113
    %v431 = vunpack.c.h.b16 %v113
    %v432 = vunpack.c.l.b16 %v114
    %v433 = vunpack.c.h.b16 %v114
    %v434 = vunpack.c.l.b16 %v115
    %v435 = vunpack.c.h.b16 %v115
    %v436 = vunpack.c.l.b16 %v116
    %v437 = vunpack.c.h.b16 %v116
    %v438 = vunpack.c.l.b16 %v117
    %v439 = vunpack.c.h.b16 %v117
    %v440 = vunpack.c.l.b16 %v118
    %v441 = vunpack.c.h.b16 %v118
    %v442 = vunpack.c.l.b16 %v119
    %v443 = vunpack.c.h.b16 %v119
    %v444 = vunpack.c.l.b16 %v120
    %v445 = vunpack.c.h.b16 %v120
    %v446 = vunpack.c.l.b16 %v121
    %v447 = vunpack.c.h.b16 %v121
    %v448 = vunpack.c.l.b16 %v122
    %v449 = vunpack.c.h.b16 %v122
    %v450 = vunpack.c.l.b16 %v123
    %v451 = vunpack.c.h.b16 %v123
    %v452 = vunpack.c.l.b16 %v124
    %v453 = vunpack.c.h.b16 %v124
    %v454 = vunpack.c.l.b16 %v125
    %v455 = vunpack.c.h.b16 %v125
    %v456 = vunpack.c.l.b16 %v126
    %v457 = vunpack.c.h.b16 %v126
    %v458 = vunpack.c.l.b16 %v127
    %v459 = vunpack.c.h.b16 %v127
    %v460 = vunpack.c.l.b16 %v128
    %v461 = vunpack.c.h.b16 %v128
    %v462 = vunpack.c.l.b16 %v129
    %v463 = vunpack.c.h.b16 %v129
    %v464 = vunpack.c.l.b16 %v130
    %v465 = vunpack.c.h.b16 %v130
    %v466 = vunpack.c.l.b16 %v131
    %v467 = vunpack.c.h.b16 %v131
    %v468 = vunpack.c.l.b16 %v132
    %v469 = vunpack.c.h.b16 %v132
    %v470 = vunpack.c.l.b16 %v133
    %v471 = vunpack.c.h.b16 %v133
    %v472 = vunpack.c.l.b16 %v134
    %v473 = vunpack.c.h.b16 %v134
    %v474 = vunpack.c.l.b16 %v135
    %v475 = vunpack.c.h.b16 %v135
    %v476 = vunpack.c.l.b16 %v136
    %v477 = vunpack.c.h.b16 %v136
    %v478 = vunpack.c.l.b16 %v137
    %v479 = vunpack.c.h.b16 %v137
    %v480 = vunpack.c.l.b16 %v138
    %v481 = vunpack.c.h.b16 %v138
    %v482 = vunpack.c.l.b16 %v139
    %v483 = vunpack.c.h.b16 %v139
    %v484 = vunpack.c.l.b16 %v140
    %v485 = vunpack.c.h.b16 %v140
    %v486 = vunpack.c.l.b16 %v141
    %v487 = vunpack.c.h.b16 %v141
    %v488 = vunpack.c.l.b16 %v142
    %v489 = vunpack.c.h.b16 %v142
    %v490 = vunpack.c.l.b16 %v143
    %v491 = vunpack.c.h.b16 %v143
    %v492 = vunpack.c.l.b16 %v144
    %v493 = vunpack.c.h.b16 %v144
    %v494 = vunpack.c.l.b16 %v145
    %v495 = vunpack.c.h.b16 %v145
    %v496 = vunpack.c.l.b16 %v146
    %v497 = vunpack.c.h.b16 %v146
    %v498 = vunpack.c.l.b16 %v147
    %v499 = vunpack.c.h.b16 %v147
    %v500 = vunpack.c.l.b16 %v148
    %v501 = vunpack.c.h.b16 %v148
    %v502 = vunpack.c.l.b16 %v149
    %v503 = vunpack.c.h.b16 %v149
    %v504 = vunpack.c.l.b16 %v150
    %v505 = vunpack.c.h.b16 %v150
    %v506 = vunpack.c.l.b16 %v151
    %v507 = vunpack.c.h.b16 %v151
    %v508 = vunpack.c.l.b16 %v152
    %v509 = vunpack.c.h.b16 %v152
    %v510 = vunpack.c.l.b16 %v153
    %v511 = vunpack.c.h.b16 %v153
    %v512 = vunpack.c.l.b16 %v154
    %v513 = vunpack.c.h.b16 %v154
    %v514 = vunpack.c.l.b16 %v155
    %v515 = vunpack.c.h.b16 %v155
    %v516 = vunpack.c.l.b16 %v156
    %v517 = vunpack.c.h.b16 %v156
    %v518 = vunpack.c.l.b16 %v157
    %v519 = vunpack.c.h.b16 %v157
    %v520 = vunpack.c.l.b16 %v158
    %v521 = vunpack.c.h.b16 %v158
    %v522 = vunpack.c.l.b16 %v159
    %v523 = vunpack.c.h.b16 %v159
    %v524 = vunpack.c.l.b16 %v160
    %v525 = vunpack.c.h.b16 %v160
    %v526 = vunpack.c.l.b16 %v161
    %v527 = vunpack.c.h.b16 %v161
    %v528 = vunpack.c.l.b16 %v162
    %v529 = vunpack.c.h.b16 %v162
    %v530 = vunpack.c.l.b16 %v163
    %v531 = vunpack.c.h.b16 %v163
    %v532 = vunpack.c.l.b16 %v164
    %v533 = vunpack.c.h.b16 %v164
    %v534 = vunpack.c.l.b16 %v165
    %v535 = vunpack.c.h.b16 %v165
    %v536 = vunpack.c.l.b16 %v166
    %v537 = vunpack.c.h.b16 %v166
    %v538 = vunpack.c.l.b16 %v167
    %v539 = vunpack.c.h.b16 %v167
    %v540 = vunpack.c.l.b16 %v168
    %v541 = vunpack.c.h.b16 %v168
    %v542 = vunpack.c.l.b16 %v169
    %v543 = vunpack.c.h.b16 %v169
    %v544 = vunpack.c.l.b16 %v170
    %v545 = vunpack.c.h.b16 %v170
    %v546 = vunpack.c.l.b16 %v171
    %v547 = vunpack.c.h.b16 %v171
    %v548 = vunpack.c.l.b16 %v172
    %v549 = vunpack.c.h.b16 %v172
    %v550 = vunpack.c.l.b16 %v173
    %v551 = vunpack.c.h.b16 %v173
    %v552 = vunpack.c.l.b16 %v174
    %v553 = vunpack.c.h.b16 %v174
    %v554 = vunpack.c.l.b16 %v175
    %v555 = vunpack.c.h.b16 %v175
    %v556 = vunpack.c.l.b16 %v176
    %v557 = vunpack.c.h.b16 %v176
    %v558 = vunpack.c.l.b16 %v177
    %v559 = vunpack.c.h.b16 %v177
    %v560 = vunpack.c.l.b16 %v178
    %v561 = vunpack.c.h.b16 %v178
    %v562 = vunpack.c.l.b16 %v179
    %v563 = vunpack.c.h.b16 %v179
    %v564 = vunpack.c.l.b16 %v180
    %v565 = vunpack.c.h.b16 %v180
    %v566 = vunpack.c.l.b16 %v181
    %v567 = vunpack.c.h.b16 %v181
    %v568 = vunpack.c.l.b16 %v182
    %v569 = vunpack.c.h.b16 %v182
    %v570 = vunpack.c.l.b16 %v183
    %v571 = vunpack.c.h.b16 %v183
    %v572 = vunpack.c.l.b16 %v184
    %v573 = vunpack.c.h.b16 %v184
    %v574 = vunpack.c.l.b16 %v185
    %v575 = vunpack.c.h.b16 %v185
    %v576 = vunpack.c.l.b16 %v186
    %v577 = vunpack.c.h.b16 %v186
    %v578 = vunpack.c.l.b16 %v187
    %v579 = vunpack.c.h.b16 %v187
    %v580 = vunpack.c.l.b16 %v188
    %v581 = vunpack.c.h.b16 %v188
    %v582 = vunpack.c.l.b16 %v189
    %v583 = vunpack.c.h.b16 %v189
    %v584 = vunpack.c.l.b16 %v190
    %v585 = vunpack.c.h.b16 %v190
    %v586 = vunpack.c.l.b16 %v191
    %v587 = vunpack.c.h.b16 %v191
    %v588 = vunpack.c.l.b16 %v192
    %v589 = vunpack.c.h.b16 %v192
    %v590 = vunpack.c.l.b16 %v193
    %v591 = vunpack.c.h.b16 %v193
    %v592 = vunpack.c.l.b16 %v194
    %v593 = vunpack.c.h.b16 %v194
    %v594 = vunpack.c.l.b16 %v195
    %v595 = vunpack.c.h.b16 %v195
    %v596 = vunpack.c.l.b16 %v196
    %v597 = vunpack.c.h.b16 %v196
    %v598 = vunpack.c.l.b16 %v197
    %v599 = vunpack.c.h.b16 %v197
    %v600 = vunpack.c.l.b16 %v198
    %v601 = vunpack.c.h.b16 %v198
    %v602 = vunpack.c.l.b16 %v199
    %v603 = vunpack.c.h.b16 %v199
    %v604 = vunpack.c.l.b16 %v200
    %v605 = vunpack.c.h.b16 %v200
    %v606 = vunpack.c.l.b16 %v201
    %v607 = vunpack.c.h.b16 %v201
    %v608 = vpack.c.b16 %v356, %v352
    %v609 = vpack.c.b16 %v357, %v353
    %v610 = vpack.c.b16 %v358, %v354
    %v611 = vpack.c.b16 %v359, %v355
    %v612 = vpack.c.b16 %v364, %v360
    %v613 = vpack.c.b16 %v365, %v361
    %v614 = vpack.c.b16 %v366, %v362
    %v615 = vpack.c.b16 %v367, %v363
    %v616 = vpack.c.b16 %v372, %v368
    %v617 = vpack.c.b16 %v373, %v369
    %v618 = vpack.c.b16 %v374, %v370
    %v619 = vpack.c.b16 %v375, %v371
    %v620 = vpack.c.b16 %v380, %v376
    %v621 = vpack.c.b16 %v381, %v377
    %v622 = vpack.c.b16 %v382, %v378
    %v623 = vpack.c.b16 %v383, %v379
    %v624 = vpack.c.b16 %v388, %v384
    %v625 = vpack.c.b16 %v389, %v385
    %v626 = vpack.c.b16 %v390, %v386
    %v627 = vpack.c.b16 %v391, %v387
    %v628 = vpack.c.b16 %v396, %v392
    %v629 = vpack.c.b16 %v397, %v393
    %v630 = vpack.c.b16 %v398, %v394
    %v631 = vpack.c.b16 %v399, %v395
    %v632 = vpack.c.b16 %v404, %v400
    %v633 = vpack.c.b16 %v405, %v401
    %v634 = vpack.c.b16 %v406, %v402
    %v635 = vpack.c.b16 %v407, %v403
    %v636 = vpack.c.b16 %v412, %v408
    %v637 = vpack.c.b16 %v413, %v409
    %v638 = vpack.c.b16 %v414, %v410
    %v639 = vpack.c.b16 %v415, %v411
    %v640 = vpack.c.b16 %v420, %v416
    %v641 = vpack.c.b16 %v421, %v417
    %v642 = vpack.c.b16 %v422, %v418
    %v643 = vpack.c.b16 %v423, %v419
    %v644 = vpack.c.b16 %v428, %v424
    %v645 = vpack.c.b16 %v429, %v425
    %v646 = vpack.c.b16 %v430, %v426
    %v647 = vpack.c.b16 %v431, %v427
    %v648 = vpack.c.b16 %v436, %v432
    %v649 = vpack.c.b16 %v437, %v433
    %v650 = vpack.c.b16 %v438, %v434
    %v651 = vpack.c.b16 %v439, %v435
    %v652 = vpack.c.b16 %v444, %v440
    %v653 = vpack.c.b16 %v445, %v441
    %v654 = vpack.c.b16 %v446, %v442
    %v655 = vpack.c.b16 %v447, %v443
    %v656 = vpack.c.b16 %v452, %v448
    %v657 = vpack.c.b16 %v453, %v449
    %v658 = vpack.c.b16 %v454, %v450
    %v659 = vpack.c.b16 %v455, %v451
    %v660 = vpack.c.b16 %v460, %v456
    %v661 = vpack.c.b16 %v461, %v457
    %v662 = vpack.c.b16 %v462, %v458
    %v663 = vpack.c.b16 %v463, %v459
    %v664 = vpack.c.b16 %v468, %v464
    %v665 = vpack.c.b16 %v469, %v465
    %v666 = vpack.c.b16 %v470, %v466
    %v667 = vpack.c.b16 %v471, %v467
    %v668 = vpack.c.b16 %v476, %v472
    %v669 = vpack.c.b16 %v477, %v473
    %v670 = vpack.c.b16 %v478, %v474
    %v671 = vpack.c.b16 %v479, %v475
    %v672 = vpack.c.b16 %v484, %v480
    %v673 = vpack.c.b16 %v485, %v481
    %v674 = vpack.c.b16 %v486, %v482
    %v675 = vpack.c.b16 %v487, %v483
    %v676 = vpack.c.b16 %v492, %v488
    %v677 = vpack.c.b16 %v493, %v489
    %v678 = vpack.c.b16 %v494, %v490
    %v679 = vpack.c.b16 %v495, %v491
    %v680 = vpack.c.b16 %v500, %v496
    %v681 = vpack.c.b16 %v501, %v497
    %v682 = vpack.c.b16 %v502, %v498
    %v683 = vpack.c.b16 %v503, %v499
    %v684 = vpack.c.b16 %v508, %v504
    %v685 = vpack.c.b16 %v509, %v505
    %v686 = vpack.c.b16 %v510, %v506
    %v687 = vpack.c.b16 %v511, %v507
    %v688 = vpack.c.b16 %v516, %v512
    %v689 = vpack.c.b16 %v517, %v513
    %v690 = vpack.c.b16 %v518, %v514
    %v691 = vpack.c.b16 %v519, %v515
    %v692 = vpack.c.b16 %v524, %v520
    %v693 = vpack.c.b16 %v525, %v521
    %v694 = vpack.c.b16 %v526, %v522
    %v695 = vpack.c.b16 %v527, %v523
    %v696 = vpack.c.b16 %v532, %v528
    %v697 = vpack.c.b16 %v533, %v529
    %v698 = vpack.c.b16 %v534, %v530
    %v699 = vpack.c.b16 %v535, %v531
    %v700 = vpack.c.b16 %v540, %v536
    %v701 = vpack.c.b16 %v541, %v537
    %v702 = vpack.c.b16 %v542, %v538
    %v703 = vpack.c.b16 %v543, %v539
    %v704 = vpack.c.b16 %v548, %v544
    %v705 = vpack.c.b16 %v549, %v545
    %v706 = vpack.c.b16 %v550, %v546
    %v707 = vpack.c.b16 %v551, %v547
    %v708 = vpack.c.b16 %v556, %v552
    %v709 = vpack.c.b16 %v557, %v553
    %v710 = vpack.c.b16 %v558, %v554
    %v711 = vpack.c.b16 %v559, %v555
    %v712 = vpack.c.b16 %v564, %v560
    %v713 = vpack.c.b16 %v565, %v561
    %v714 = vpack.c.b16 %v566, %v562
    %v715 = vpack.c.b16 %v567, %v563
    %v716 = vpack.c.b16 %v572, %v568
    %v717 = vpack.c.b16 %v573, %v569
    %v718 = vpack.c.b16 %v574, %v570
    %v719 = vpack.c.b16 %v575, %v571
    %v720 = vpack.c.b16 %v580, %v576
    %v721 = vpack.c.b16 %v581, %v577
    %v722 = vpack.c.b16 %v582, %v578
    %v723 = vpack.c.b16 %v583, %v579
    %v724 = vpack.c.b16 %v588, %v584
    %v725 = vpack.c.b16 %v589, %v585
    %v726 = vpack.c.b16 %v590, %v586
    %v727 = vpack.c.b16 %v591, %v587
    %v728 = vpack.c.b16 %v596, %v592
    %v729 = vpack.c.b16 %v597, %v593
    %v730 = vpack.c.b16 %v598, %v594
    %v731 = vpack.c.b16 %v599, %v595
    %v732 = vpack.c.b16 %v604, %v600
    %v733 = vpack.c.b16 %v605, %v601
    %v734 = vpack.c.b16 %v606, %v602
    %v735 = vpack.c.b16 %v607, %v603
    %864 = vmatprep.subr.bf16.mxu0 %v609
    %865 = vmatpush1.bf16.msra.mxu0 %v608
    %866 = vmatprep.subr.bf16.mxu0 %v613
    %867 = vmatpush1.bf16.msra.mxu0 %v612
    %868 = vmatprep.subr.bf16.mxu0 %v617
    %869 = vmatpush1.bf16.msra.mxu0 %v616
    %870 = vmatprep.subr.bf16.mxu0 %v621
    %871 = vmatpush1.bf16.msra.mxu0 %v620
    %872 = vmatprep.subr.bf16.mxu0 %v625
    %873 = vmatpush1.bf16.msra.mxu0 %v624
    %874 = vmatprep.subr.bf16.mxu0 %v629
    %875 = vmatpush1.bf16.msra.mxu0 %v628
    %876 = vmatprep.subr.bf16.mxu0 %v633
    %877 = vmatpush1.bf16.msra.mxu0 %v632
    %878 = vmatprep.subr.bf16.mxu0 %v637
    %879 = vmatpush1.bf16.msra.mxu0 %v636
    %880 = vmatprep.subr.bf16.mxu0 %v641
    %881 = vmatpush1.bf16.msra.mxu0 %v640
    %882 = vmatprep.subr.bf16.mxu0 %v645
    %883 = vmatpush1.bf16.msra.mxu0 %v644
    %884 = vmatprep.subr.bf16.mxu0 %v649
    %885 = vmatpush1.bf16.msra.mxu0 %v648
    %886 = vmatprep.subr.bf16.mxu0 %v653
    %887 = vmatpush1.bf16.msra.mxu0 %v652
    %888 = vmatprep.subr.bf16.mxu0 %v657
    %889 = vmatpush1.bf16.msra.mxu0 %v656
    %890 = vmatprep.subr.bf16.mxu0 %v661
    %891 = vmatpush1.bf16.msra.mxu0 %v660
    %892 = vmatprep.subr.bf16.mxu0 %v665
    %893 = vmatpush1.bf16.msra.mxu0 %v664
    %894 = vmatprep.subr.bf16.mxu0 %v669
    %895 = vmatpush1.bf16.msra.mxu0 %v668
    %896 = vmatprep.mubr.bf16.mxu0 %v71
    %897 = vmatmul.mubr.bf16.gmra.mrb[0].mxu0 %v70
    %v898 = vpop.f32.mrb[0].mxu0
    %v899 = vadd.f32 %v207, %v898
    %v900 = vpop.f32.mrb[0].mxu0
    %v901 = vadd.f32 %v211, %v900
    %v902 = vpop.f32.mrb[0].mxu0
    %v903 = vadd.f32 %v207, %v902
    %v904 = vpop.f32.mrb[0].mxu0
    %v905 = vadd.f32 %v211, %v904
    %906 = vdwg.mxu0
    %907 = vmatprep.subr.bf16.mxu0 %v673
    %908 = vmatpush1.bf16.msra.mxu0 %v672
    %909 = vmatprep.subr.bf16.mxu0 %v677
    %910 = vmatpush1.bf16.msra.mxu0 %v676
    %911 = vmatprep.subr.bf16.mxu0 %v681
    %912 = vmatpush1.bf16.msra.mxu0 %v680
    %913 = vmatprep.subr.bf16.mxu0 %v685
    %914 = vmatpush1.bf16.msra.mxu0 %v684
    %915 = vmatprep.subr.bf16.mxu0 %v689
    %916 = vmatpush1.bf16.msra.mxu0 %v688
    %917 = vmatprep.subr.bf16.mxu0 %v693
    %918 = vmatpush1.bf16.msra.mxu0 %v692
    %919 = vmatprep.subr.bf16.mxu0 %v697
    %920 = vmatpush1.bf16.msra.mxu0 %v696
    %921 = vmatprep.subr.bf16.mxu0 %v701
    %922 = vmatpush1.bf16.msra.mxu0 %v700
    %923 = vmatprep.subr.bf16.mxu0 %v705
    %924 = vmatpush1.bf16.msra.mxu0 %v704
    %925 = vmatprep.subr.bf16.mxu0 %v709
    %926 = vmatpush1.bf16.msra.mxu0 %v708
    %927 = vmatprep.subr.bf16.mxu0 %v713
    %928 = vmatpush1.bf16.msra.mxu0 %v712
    %929 = vmatprep.subr.bf16.mxu0 %v717
    %930 = vmatpush1.bf16.msra.mxu0 %v716
    %931 = vmatprep.subr.bf16.mxu0 %v721
    %932 = vmatpush1.bf16.msra.mxu0 %v720
    %933 = vmatprep.subr.bf16.mxu0 %v725
    %934 = vmatpush1.bf16.msra.mxu0 %v724
    %935 = vmatprep.subr.bf16.mxu0 %v729
    %936 = vmatpush1.bf16.msra.mxu0 %v728
    %937 = vmatprep.subr.bf16.mxu0 %v733
    %938 = vmatpush1.bf16.msra.mxu0 %v732
    %939 = vmatprep.mubr.bf16.mxu0 %v73
    %940 = vmatmul.mubr.bf16.gmra.mrb[0].mxu0 %v72
    %v941 = vpop.f32.mrb[0].mxu0
    %v942 = vadd.f32 %v899, %v941
    %v943 = vpop.f32.mrb[0].mxu0
    %v944 = vadd.f32 %v901, %v943
    %v945 = vpop.f32.mrb[0].mxu0
    %v946 = vadd.f32 %v903, %v945
    %v947 = vpop.f32.mrb[0].mxu0
    %v948 = vadd.f32 %v905, %v947
    %949 = vdwg.mxu0
    %950 = vmatprep.subr.bf16.mxu0 %v611
    %951 = vmatpush1.bf16.msra.mxu0 %v610
    %952 = vmatprep.subr.bf16.mxu0 %v615
    %953 = vmatpush1.bf16.msra.mxu0 %v614
    %954 = vmatprep.subr.bf16.mxu0 %v619
    %955 = vmatpush1.bf16.msra.mxu0 %v618
    %956 = vmatprep.subr.bf16.mxu0 %v623
    %957 = vmatpush1.bf16.msra.mxu0 %v622
    %958 = vmatprep.subr.bf16.mxu0 %v627
    %959 = vmatpush1.bf16.msra.mxu0 %v626
    %960 = vmatprep.subr.bf16.mxu0 %v631
    %961 = vmatpush1.bf16.msra.mxu0 %v630
    %962 = vmatprep.subr.bf16.mxu0 %v635
    %963 = vmatpush1.bf16.msra.mxu0 %v634
    %964 = vmatprep.subr.bf16.mxu0 %v639
    %965 = vmatpush1.bf16.msra.mxu0 %v638
    %966 = vmatprep.subr.bf16.mxu0 %v643
    %967 = vmatpush1.bf16.msra.mxu0 %v642
    %968 = vmatprep.subr.bf16.mxu0 %v647
    %969 = vmatpush1.bf16.msra.mxu0 %v646
    %970 = vmatprep.subr.bf16.mxu0 %v651
    %971 = vmatpush1.bf16.msra.mxu0 %v650
    %972 = vmatprep.subr.bf16.mxu0 %v655
    %973 = vmatpush1.bf16.msra.mxu0 %v654
    %974 = vmatprep.subr.bf16.mxu0 %v659
    %975 = vmatpush1.bf16.msra.mxu0 %v658
    %976 = vmatprep.subr.bf16.mxu0 %v663
    %977 = vmatpush1.bf16.msra.mxu0 %v662
    %978 = vmatprep.subr.bf16.mxu0 %v667
    %979 = vmatpush1.bf16.msra.mxu0 %v666
    %980 = vmatprep.subr.bf16.mxu0 %v671
    %981 = vmatpush1.bf16.msra.mxu0 %v670
    %982 = vmatprep.mubr.bf16.mxu0 %v71
    %983 = vmatmul.mubr.bf16.gmra.mrb[0].mxu0 %v70
    %v984 = vpop.f32.mrb[0].mxu0
    %v985 = vadd.f32 %v215, %v984
    %v986 = vpop.f32.mrb[0].mxu0
    %v987 = vadd.f32 %v219, %v986
    %v988 = vpop.f32.mrb[0].mxu0
    %v989 = vadd.f32 %v215, %v988
    %v990 = vpop.f32.mrb[0].mxu0
    %v991 = vadd.f32 %v219, %v990
    %992 = vdwg.mxu0
    %993 = vmatprep.subr.bf16.mxu0 %v675
    %994 = vmatpush1.bf16.msra.mxu0 %v674
    %995 = vmatprep.subr.bf16.mxu0 %v679
    %996 = vmatpush1.bf16.msra.mxu0 %v678
    %997 = vmatprep.subr.bf16.mxu0 %v683
    %998 = vmatpush1.bf16.msra.mxu0 %v682
    %999 = vmatprep.subr.bf16.mxu0 %v687
    %1000 = vmatpush1.bf16.msra.mxu0 %v686
    %1001 = vmatprep.subr.bf16.mxu0 %v691
    %1002 = vmatpush1.bf16.msra.mxu0 %v690
    %1003 = vmatprep.subr.bf16.mxu0 %v695
    %1004 = vmatpush1.bf16.msra.mxu0 %v694
    %1005 = vmatprep.subr.bf16.mxu0 %v699
    %1006 = vmatpush1.bf16.msra.mxu0 %v698
    %1007 = vmatprep.subr.bf16.mxu0 %v703
    %1008 = vmatpush1.bf16.msra.mxu0 %v702
    %1009 = vmatprep.subr.bf16.mxu0 %v707
    %1010 = vmatpush1.bf16.msra.mxu0 %v706
    %1011 = vmatprep.subr.bf16.mxu0 %v711
    %1012 = vmatpush1.bf16.msra.mxu0 %v710
    %1013 = vmatprep.subr.bf16.mxu0 %v715
    %1014 = vmatpush1.bf16.msra.mxu0 %v714
    %1015 = vmatprep.subr.bf16.mxu0 %v719
    %1016 = vmatpush1.bf16.msra.mxu0 %v718
    %1017 = vmatprep.subr.bf16.mxu0 %v723
    %1018 = vmatpush1.bf16.msra.mxu0 %v722
    %1019 = vmatprep.subr.bf16.mxu0 %v727
    %1020 = vmatpush1.bf16.msra.mxu0 %v726
    %1021 = vmatprep.subr.bf16.mxu0 %v731
    %1022 = vmatpush1.bf16.msra.mxu0 %v730
    %1023 = vmatprep.subr.bf16.mxu0 %v735
    %1024 = vmatpush1.bf16.msra.mxu0 %v734
    %1025 = vmatprep.mubr.bf16.mxu0 %v73
    %1026 = vmatmul.mubr.bf16.gmra.mrb[0].mxu0 %v72
    %v1027 = vpop.f32.mrb[0].mxu0
    %v1028 = vadd.f32 %v985, %v1027
    %v1029 = vpop.f32.mrb[0].mxu0
    %v1030 = vadd.f32 %v987, %v1029
    %v1031 = vpop.f32.mrb[0].mxu0
    %v1032 = vadd.f32 %v989, %v1031
    %v1033 = vpop.f32.mrb[0].mxu0
    %v1034 = vadd.f32 %v991, %v1033
    %1035 = vdwg.mxu0
    %v1036 = vmax.f32 %v942, 0.0
    %v1037 = vmax.f32 %v944, 0.0
    %v1038 = vmax.f32 %v1028, 0.0
    %v1039 = vmax.f32 %v1030, 0.0
    %v1040 = vmax.f32 %v946, 0.0
    %v1041 = vmax.f32 %v948, 0.0
    %v1042 = vmax.f32 %v1032, 0.0
    %v1043 = vmax.f32 %v1034, 0.0
    %v1044 = vpack.c.bf16 %v1040, %v1036
    %v1045 = vpack.c.bf16 %v1041, %v1037
    %v1046 = vpack.c.bf16 %v1042, %v1038
    %v1047 = vpack.c.bf16 %v1043, %v1039
    %v1048 = vld [vmem:[#allocation7] sm:$0xff]
    %v1049 = vld [vmem:[#allocation7 + $0x8] sm:$0xff]
    %v1050 = vld [vmem:[#allocation7 + $0x10] sm:$0xff]
    %v1051 = vld [vmem:[#allocation7 + $0x18] sm:$0xff]
    %v1052 = vld [vmem:[#allocation7 + $0x20] sm:$0xff]
    %v1053 = vld [vmem:[#allocation7 + $0x28] sm:$0xff]
    %v1054 = vld [vmem:[#allocation7 + $0x30] sm:$0xff]
    %v1055 = vld [vmem:[#allocation7 + $0x38] sm:$0xff]
    %v1056 = vld [vmem:[#allocation7 + $0x40] sm:$0xff]
    %v1057 = vld [vmem:[#allocation7 + $0x48] sm:$0xff]
    %v1058 = vld [vmem:[#allocation7 + $0x50] sm:$0xff]
    %v1059 = vld [vmem:[#allocation7 + $0x58] sm:$0xff]
    %v1060 = vld [vmem:[#allocation7 + $0x60] sm:$0xff]
    %v1061 = vld [vmem:[#allocation7 + $0x68] sm:$0xff]
    %v1062 = vld [vmem:[#allocation7 + $0x70] sm:$0xff]
    %v1063 = vld [vmem:[#allocation7 + $0x78] sm:$0xff]
    %v1064 = vld [vmem:[#allocation7 + $0x80] sm:$0xff]
    %v1065 = vld [vmem:[#allocation7 + $0x88] sm:$0xff]
    %v1066 = vld [vmem:[#allocation7 + $0x90] sm:$0xff]
    %v1067 = vld [vmem:[#allocation7 + $0x98] sm:$0xff]
    %v1068 = vld [vmem:[#allocation7 + $0xa0] sm:$0xff]
    %v1069 = vld [vmem:[#allocation7 + $0xa8] sm:$0xff]
    %v1070 = vld [vmem:[#allocation7 + $0xb0] sm:$0xff]
    %v1071 = vld [vmem:[#allocation7 + $0xb8] sm:$0xff]
    %v1072 = vld [vmem:[#allocation7 + $0xc0] sm:$0xff]
    %v1073 = vld [vmem:[#allocation7 + $0xc8] sm:$0xff]
    %v1074 = vld [vmem:[#allocation7 + $0xd0] sm:$0xff]
    %v1075 = vld [vmem:[#allocation7 + $0xd8] sm:$0xff]
    %v1076 = vld [vmem:[#allocation7 + $0xe0] sm:$0xff]
    %v1077 = vld [vmem:[#allocation7 + $0xe8] sm:$0xff]
    %v1078 = vld [vmem:[#allocation7 + $0xf0] sm:$0xff]
    %v1079 = vld [vmem:[#allocation7 + $0xf8] sm:$0xff]
    %v1080 = vld [vmem:[#allocation7 + $0x100] sm:$0xff]
    %v1081 = vld [vmem:[#allocation7 + $0x108] sm:$0xff]
    %v1082 = vld [vmem:[#allocation7 + $0x110] sm:$0xff]
    %v1083 = vld [vmem:[#allocation7 + $0x118] sm:$0xff]
    %v1084 = vld [vmem:[#allocation7 + $0x120] sm:$0xff]
    %v1085 = vld [vmem:[#allocation7 + $0x128] sm:$0xff]
    %v1086 = vld [vmem:[#allocation7 + $0x130] sm:$0xff]
    %v1087 = vld [vmem:[#allocation7 + $0x138] sm:$0xff]
    %v1088 = vld [vmem:[#allocation7 + $0x140] sm:$0xff]
    %v1089 = vld [vmem:[#allocation7 + $0x148] sm:$0xff]
    %v1090 = vld [vmem:[#allocation7 + $0x150] sm:$0xff]
    %v1091 = vld [vmem:[#allocation7 + $0x158] sm:$0xff]
    %v1092 = vld [vmem:[#allocation7 + $0x160] sm:$0xff]
    %v1093 = vld [vmem:[#allocation7 + $0x168] sm:$0xff]
    %v1094 = vld [vmem:[#allocation7 + $0x170] sm:$0xff]
    %v1095 = vld [vmem:[#allocation7 + $0x178] sm:$0xff]
    %v1096 = vld [vmem:[#allocation7 + $0x180] sm:$0xff]
    %v1097 = vld [vmem:[#allocation7 + $0x188] sm:$0xff]
    %v1098 = vld [vmem:[#allocation7 + $0x190] sm:$0xff]
    %v1099 = vld [vmem:[#allocation7 + $0x198] sm:$0xff]
    %v1100 = vld [vmem:[#allocation7 + $0x1a0] sm:$0xff]
    %v1101 = vld [vmem:[#allocation7 + $0x1a8] sm:$0xff]
    %v1102 = vld [vmem:[#allocation7 + $0x1b0] sm:$0xff]
    %v1103 = vld [vmem:[#allocation7 + $0x1b8] sm:$0xff]
    %v1104 = vld [vmem:[#allocation7 + $0x1c0] sm:$0xff]
    %v1105 = vld [vmem:[#allocation7 + $0x1c8] sm:$0xff]
    %v1106 = vld [vmem:[#allocation7 + $0x1d0] sm:$0xff]
    %v1107 = vld [vmem:[#allocation7 + $0x1d8] sm:$0xff]
    %v1108 = vld [vmem:[#allocation7 + $0x1e0] sm:$0xff]
    %v1109 = vld [vmem:[#allocation7 + $0x1e8] sm:$0xff]
    %v1110 = vld [vmem:[#allocation7 + $0x1f0] sm:$0xff]
    %v1111 = vld [vmem:[#allocation7 + $0x1f8] sm:$0xff]
    %v1112 = vld [vmem:[#allocation7 + $0x200] sm:$0xff]
    %v1113 = vld [vmem:[#allocation7 + $0x208] sm:$0xff]
    %v1114 = vld [vmem:[#allocation7 + $0x210] sm:$0xff]
    %v1115 = vld [vmem:[#allocation7 + $0x218] sm:$0xff]
    %v1116 = vld [vmem:[#allocation7 + $0x220] sm:$0xff]
    %v1117 = vld [vmem:[#allocation7 + $0x228] sm:$0xff]
    %v1118 = vld [vmem:[#allocation7 + $0x230] sm:$0xff]
    %v1119 = vld [vmem:[#allocation7 + $0x238] sm:$0xff]
    %v1120 = vld [vmem:[#allocation7 + $0x240] sm:$0xff]
    %v1121 = vld [vmem:[#allocation7 + $0x248] sm:$0xff]
    %v1122 = vld [vmem:[#allocation7 + $0x250] sm:$0xff]
    %v1123 = vld [vmem:[#allocation7 + $0x258] sm:$0xff]
    %v1124 = vld [vmem:[#allocation7 + $0x260] sm:$0xff]
    %v1125 = vld [vmem:[#allocation7 + $0x268] sm:$0xff]
    %v1126 = vld [vmem:[#allocation7 + $0x270] sm:$0xff]
    %v1127 = vld [vmem:[#allocation7 + $0x278] sm:$0xff]
    %v1128 = vld [vmem:[#allocation7 + $0x280] sm:$0xff]
    %v1129 = vld [vmem:[#allocation7 + $0x288] sm:$0xff]
    %v1130 = vld [vmem:[#allocation7 + $0x290] sm:$0xff]
    %v1131 = vld [vmem:[#allocation7 + $0x298] sm:$0xff]
    %v1132 = vld [vmem:[#allocation7 + $0x2a0] sm:$0xff]
    %v1133 = vld [vmem:[#allocation7 + $0x2a8] sm:$0xff]
    %v1134 = vld [vmem:[#allocation7 + $0x2b0] sm:$0xff]
    %v1135 = vld [vmem:[#allocation7 + $0x2b8] sm:$0xff]
    %v1136 = vld [vmem:[#allocation7 + $0x2c0] sm:$0xff]
    %v1137 = vld [vmem:[#allocation7 + $0x2c8] sm:$0xff]
    %v1138 = vld [vmem:[#allocation7 + $0x2d0] sm:$0xff]
    %v1139 = vld [vmem:[#allocation7 + $0x2d8] sm:$0xff]
    %v1140 = vld [vmem:[#allocation7 + $0x2e0] sm:$0xff]
    %v1141 = vld [vmem:[#allocation7 + $0x2e8] sm:$0xff]
    %v1142 = vld [vmem:[#allocation7 + $0x2f0] sm:$0xff]
    %v1143 = vld [vmem:[#allocation7 + $0x2f8] sm:$0xff]
    %v1144 = vld [vmem:[#allocation7 + $0x300] sm:$0xff]
    %v1145 = vld [vmem:[#allocation7 + $0x308] sm:$0xff]
    %v1146 = vld [vmem:[#allocation7 + $0x310] sm:$0xff]
    %v1147 = vld [vmem:[#allocation7 + $0x318] sm:$0xff]
    %v1148 = vld [vmem:[#allocation7 + $0x320] sm:$0xff]
    %v1149 = vld [vmem:[#allocation7 + $0x328] sm:$0xff]
    %v1150 = vld [vmem:[#allocation7 + $0x330] sm:$0xff]
    %v1151 = vld [vmem:[#allocation7 + $0x338] sm:$0xff]
    %v1152 = vld [vmem:[#allocation7 + $0x340] sm:$0xff]
    %v1153 = vld [vmem:[#allocation7 + $0x348] sm:$0xff]
    %v1154 = vld [vmem:[#allocation7 + $0x350] sm:$0xff]
    %v1155 = vld [vmem:[#allocation7 + $0x358] sm:$0xff]
    %v1156 = vld [vmem:[#allocation7 + $0x360] sm:$0xff]
    %v1157 = vld [vmem:[#allocation7 + $0x368] sm:$0xff]
    %v1158 = vld [vmem:[#allocation7 + $0x370] sm:$0xff]
    %v1159 = vld [vmem:[#allocation7 + $0x378] sm:$0xff]
    %v1160 = vld [vmem:[#allocation7 + $0x380] sm:$0xff]
    %v1161 = vld [vmem:[#allocation7 + $0x388] sm:$0xff]
    %v1162 = vld [vmem:[#allocation7 + $0x390] sm:$0xff]
    %v1163 = vld [vmem:[#allocation7 + $0x398] sm:$0xff]
    %v1164 = vld [vmem:[#allocation7 + $0x3a0] sm:$0xff]
    %v1165 = vld [vmem:[#allocation7 + $0x3a8] sm:$0xff]
    %v1166 = vld [vmem:[#allocation7 + $0x3b0] sm:$0xff]
    %v1167 = vld [vmem:[#allocation7 + $0x3b8] sm:$0xff]
    %v1168 = vld [vmem:[#allocation7 + $0x3c0] sm:$0xff]
    %v1169 = vld [vmem:[#allocation7 + $0x3c8] sm:$0xff]
    %v1170 = vld [vmem:[#allocation7 + $0x3d0] sm:$0xff]
    %v1171 = vld [vmem:[#allocation7 + $0x3d8] sm:$0xff]
    %v1172 = vld [vmem:[#allocation7 + $0x3e0] sm:$0xff]
    %v1173 = vld [vmem:[#allocation7 + $0x3e8] sm:$0xff]
    %v1174 = vld [vmem:[#allocation7 + $0x3f0] sm:$0xff]
    %v1175 = vld [vmem:[#allocation7 + $0x3f8] sm:$0xff]
    %v1176 = vld [vmem:[#allocation7 + $0x400] sm:$0xff]
    %v1177 = vld [vmem:[#allocation7 + $0x408] sm:$0xff]
    %v1178 = vld [vmem:[#allocation7 + $0x410] sm:$0xff]
    %v1179 = vld [vmem:[#allocation7 + $0x418] sm:$0xff]
    %v1180 = vld [vmem:[#allocation7 + $0x420] sm:$0xff]
    %v1181 = vld [vmem:[#allocation7 + $0x428] sm:$0xff]
    %v1182 = vld [vmem:[#allocation7 + $0x430] sm:$0xff]
    %v1183 = vld [vmem:[#allocation7 + $0x438] sm:$0xff]
    %v1184 = vld [vmem:[#allocation7 + $0x440] sm:$0xff]
    %v1185 = vld [vmem:[#allocation7 + $0x448] sm:$0xff]
    %v1186 = vld [vmem:[#allocation7 + $0x450] sm:$0xff]
    %v1187 = vld [vmem:[#allocation7 + $0x458] sm:$0xff]
    %v1188 = vld [vmem:[#allocation7 + $0x460] sm:$0xff]
    %v1189 = vld [vmem:[#allocation7 + $0x468] sm:$0xff]
    %v1190 = vld [vmem:[#allocation7 + $0x470] sm:$0xff]
    %v1191 = vld [vmem:[#allocation7 + $0x478] sm:$0xff]
    %v1192 = vld [vmem:[#allocation7 + $0x480] sm:$0xff]
    %v1193 = vld [vmem:[#allocation7 + $0x488] sm:$0xff]
    %v1194 = vld [vmem:[#allocation7 + $0x490] sm:$0xff]
    %v1195 = vld [vmem:[#allocation7 + $0x498] sm:$0xff]
    %v1196 = vld [vmem:[#allocation7 + $0x4a0] sm:$0xff]
    %v1197 = vld [vmem:[#allocation7 + $0x4a8] sm:$0xff]
    %v1198 = vld [vmem:[#allocation7 + $0x4b0] sm:$0xff]
    %v1199 = vld [vmem:[#allocation7 + $0x4b8] sm:$0xff]
    %v1200 = vld [vmem:[#allocation7 + $0x4c0] sm:$0xff]
    %v1201 = vld [vmem:[#allocation7 + $0x4c8] sm:$0xff]
    %v1202 = vld [vmem:[#allocation7 + $0x4d0] sm:$0xff]
    %v1203 = vld [vmem:[#allocation7 + $0x4d8] sm:$0xff]
    %v1204 = vld [vmem:[#allocation7 + $0x4e0] sm:$0xff]
    %v1205 = vld [vmem:[#allocation7 + $0x4e8] sm:$0xff]
    %v1206 = vld [vmem:[#allocation7 + $0x4f0] sm:$0xff]
    %v1207 = vld [vmem:[#allocation7 + $0x4f8] sm:$0xff]
    %v1208 = vld [vmem:[#allocation7 + $0x500] sm:$0xff]
    %v1209 = vld [vmem:[#allocation7 + $0x508] sm:$0xff]
    %v1210 = vld [vmem:[#allocation7 + $0x510] sm:$0xff]
    %v1211 = vld [vmem:[#allocation7 + $0x518] sm:$0xff]
    %v1212 = vld [vmem:[#allocation7 + $0x520] sm:$0xff]
    %v1213 = vld [vmem:[#allocation7 + $0x528] sm:$0xff]
    %v1214 = vld [vmem:[#allocation7 + $0x530] sm:$0xff]
    %v1215 = vld [vmem:[#allocation7 + $0x538] sm:$0xff]
    %v1216 = vld [vmem:[#allocation7 + $0x540] sm:$0xff]
    %v1217 = vld [vmem:[#allocation7 + $0x548] sm:$0xff]
    %v1218 = vld [vmem:[#allocation7 + $0x550] sm:$0xff]
    %v1219 = vld [vmem:[#allocation7 + $0x558] sm:$0xff]
    %v1220 = vld [vmem:[#allocation7 + $0x560] sm:$0xff]
    %v1221 = vld [vmem:[#allocation7 + $0x568] sm:$0xff]
    %v1222 = vld [vmem:[#allocation7 + $0x570] sm:$0xff]
    %v1223 = vld [vmem:[#allocation7 + $0x578] sm:$0xff]
    %v1224 = vld [vmem:[#allocation7 + $0x580] sm:$0xff]
    %v1225 = vld [vmem:[#allocation7 + $0x588] sm:$0xff]
    %v1226 = vld [vmem:[#allocation7 + $0x590] sm:$0xff]
    %v1227 = vld [vmem:[#allocation7 + $0x598] sm:$0xff]
    %v1228 = vld [vmem:[#allocation7 + $0x5a0] sm:$0xff]
    %v1229 = vld [vmem:[#allocation7 + $0x5a8] sm:$0xff]
    %v1230 = vld [vmem:[#allocation7 + $0x5b0] sm:$0xff]
    %v1231 = vld [vmem:[#allocation7 + $0x5b8] sm:$0xff]
    %v1232 = vld [vmem:[#allocation7 + $0x5c0] sm:$0xff]
    %v1233 = vld [vmem:[#allocation7 + $0x5c8] sm:$0xff]
    %v1234 = vld [vmem:[#allocation7 + $0x5d0] sm:$0xff]
    %v1235 = vld [vmem:[#allocation7 + $0x5d8] sm:$0xff]
    %v1236 = vld [vmem:[#allocation7 + $0x5e0] sm:$0xff]
    %v1237 = vld [vmem:[#allocation7 + $0x5e8] sm:$0xff]
    %v1238 = vld [vmem:[#allocation7 + $0x5f0] sm:$0xff]
    %v1239 = vld [vmem:[#allocation7 + $0x5f8] sm:$0xff]
    %v1240 = vld [vmem:[#allocation7 + $0x600] sm:$0xff]
    %v1241 = vld [vmem:[#allocation7 + $0x608] sm:$0xff]
    %v1242 = vld [vmem:[#allocation7 + $0x610] sm:$0xff]
    %v1243 = vld [vmem:[#allocation7 + $0x618] sm:$0xff]
    %v1244 = vld [vmem:[#allocation7 + $0x620] sm:$0xff]
    %v1245 = vld [vmem:[#allocation7 + $0x628] sm:$0xff]
    %v1246 = vld [vmem:[#allocation7 + $0x630] sm:$0xff]
    %v1247 = vld [vmem:[#allocation7 + $0x638] sm:$0xff]
    %v1248 = vld [vmem:[#allocation7 + $0x640] sm:$0xff]
    %v1249 = vld [vmem:[#allocation7 + $0x648] sm:$0xff]
    %v1250 = vld [vmem:[#allocation7 + $0x650] sm:$0xff]
    %v1251 = vld [vmem:[#allocation7 + $0x658] sm:$0xff]
    %v1252 = vld [vmem:[#allocation7 + $0x660] sm:$0xff]
    %v1253 = vld [vmem:[#allocation7 + $0x668] sm:$0xff]
    %v1254 = vld [vmem:[#allocation7 + $0x670] sm:$0xff]
    %v1255 = vld [vmem:[#allocation7 + $0x678] sm:$0xff]
    %v1256 = vld [vmem:[#allocation7 + $0x680] sm:$0xff]
    %v1257 = vld [vmem:[#allocation7 + $0x688] sm:$0xff]
    %v1258 = vld [vmem:[#allocation7 + $0x690] sm:$0xff]
    %v1259 = vld [vmem:[#allocation7 + $0x698] sm:$0xff]
    %v1260 = vld [vmem:[#allocation7 + $0x6a0] sm:$0xff]
    %v1261 = vld [vmem:[#allocation7 + $0x6a8] sm:$0xff]
    %v1262 = vld [vmem:[#allocation7 + $0x6b0] sm:$0xff]
    %v1263 = vld [vmem:[#allocation7 + $0x6b8] sm:$0xff]
    %v1264 = vld [vmem:[#allocation7 + $0x6c0] sm:$0xff]
    %v1265 = vld [vmem:[#allocation7 + $0x6c8] sm:$0xff]
    %v1266 = vld [vmem:[#allocation7 + $0x6d0] sm:$0xff]
    %v1267 = vld [vmem:[#allocation7 + $0x6d8] sm:$0xff]
    %v1268 = vld [vmem:[#allocation7 + $0x6e0] sm:$0xff]
    %v1269 = vld [vmem:[#allocation7 + $0x6e8] sm:$0xff]
    %v1270 = vld [vmem:[#allocation7 + $0x6f0] sm:$0xff]
    %v1271 = vld [vmem:[#allocation7 + $0x6f8] sm:$0xff]
    %v1272 = vld [vmem:[#allocation7 + $0x700] sm:$0xff]
    %v1273 = vld [vmem:[#allocation7 + $0x708] sm:$0xff]
    %v1274 = vld [vmem:[#allocation7 + $0x710] sm:$0xff]
    %v1275 = vld [vmem:[#allocation7 + $0x718] sm:$0xff]
    %v1276 = vld [vmem:[#allocation7 + $0x720] sm:$0xff]
    %v1277 = vld [vmem:[#allocation7 + $0x728] sm:$0xff]
    %v1278 = vld [vmem:[#allocation7 + $0x730] sm:$0xff]
    %v1279 = vld [vmem:[#allocation7 + $0x738] sm:$0xff]
    %v1280 = vld [vmem:[#allocation7 + $0x740] sm:$0xff]
    %v1281 = vld [vmem:[#allocation7 + $0x748] sm:$0xff]
    %v1282 = vld [vmem:[#allocation7 + $0x750] sm:$0xff]
    %v1283 = vld [vmem:[#allocation7 + $0x758] sm:$0xff]
    %v1284 = vld [vmem:[#allocation7 + $0x760] sm:$0xff]
    %v1285 = vld [vmem:[#allocation7 + $0x768] sm:$0xff]
    %v1286 = vld [vmem:[#allocation7 + $0x770] sm:$0xff]
    %v1287 = vld [vmem:[#allocation7 + $0x778] sm:$0xff]
    %v1288 = vld [vmem:[#allocation7 + $0x780] sm:$0xff]
    %v1289 = vld [vmem:[#allocation7 + $0x788] sm:$0xff]
    %v1290 = vld [vmem:[#allocation7 + $0x790] sm:$0xff]
    %v1291 = vld [vmem:[#allocation7 + $0x798] sm:$0xff]
    %v1292 = vld [vmem:[#allocation7 + $0x7a0] sm:$0xff]
    %v1293 = vld [vmem:[#allocation7 + $0x7a8] sm:$0xff]
    %v1294 = vld [vmem:[#allocation7 + $0x7b0] sm:$0xff]
    %v1295 = vld [vmem:[#allocation7 + $0x7b8] sm:$0xff]
    %v1296 = vld [vmem:[#allocation7 + $0x7c0] sm:$0xff]
    %v1297 = vld [vmem:[#allocation7 + $0x7c8] sm:$0xff]
    %v1298 = vld [vmem:[#allocation7 + $0x7d0] sm:$0xff]
    %v1299 = vld [vmem:[#allocation7 + $0x7d8] sm:$0xff]
    %v1300 = vld [vmem:[#allocation7 + $0x7e0] sm:$0xff]
    %v1301 = vld [vmem:[#allocation7 + $0x7e8] sm:$0xff]
    %v1302 = vld [vmem:[#allocation7 + $0x7f0] sm:$0xff]
    %v1303 = vld [vmem:[#allocation7 + $0x7f8] sm:$0xff]
    %v1304 = vld [vmem:[%s4] sm:$0xff]
    %v1306 = vlaneseq
    %v1307 = vshrl.u32 %v1306, 7
    %v1308 = vsub.s32 0, %v1307
    %v1309 = vrot.slane %v1304, %v1308
    %v1310 = vlaneseq
    %v1311 = vshrl.u32 %v1310, 7
    %v1312 = vsub.s32 1, %v1311
    %v1313 = vrot.slane %v1304, %v1312
    %v1314 = vlaneseq
    %v1315 = vshrl.u32 %v1314, 7
    %v1316 = vsub.s32 2, %v1315
    %v1317 = vrot.slane %v1304, %v1316
    %v1318 = vlaneseq
    %v1319 = vshrl.u32 %v1318, 7
    %v1320 = vsub.s32 3, %v1319
    %v1321 = vrot.slane %v1304, %v1320
    %v1322 = vlaneseq
    %v1323 = vshrl.u32 %v1322, 7
    %v1324 = vsub.s32 4, %v1323
    %v1325 = vrot.slane %v1304, %v1324
    %v1326 = vlaneseq
    %v1327 = vshrl.u32 %v1326, 7
    %v1328 = vsub.s32 5, %v1327
    %v1329 = vrot.slane %v1304, %v1328
    %v1330 = vlaneseq
    %v1331 = vshrl.u32 %v1330, 7
    %v1332 = vsub.s32 6, %v1331
    %v1333 = vrot.slane %v1304, %v1332
    %v1334 = vlaneseq
    %v1335 = vshrl.u32 %v1334, 7
    %v1336 = vsub.s32 7, %v1335
    %v1337 = vrot.slane %v1304, %v1336
    %v1602 = vunpack.c.l.b16 %v1048
    %v1603 = vunpack.c.h.b16 %v1048
    %v1604 = vunpack.c.l.b16 %v1049
    %v1605 = vunpack.c.h.b16 %v1049
    %v1606 = vunpack.c.l.b16 %v1050
    %v1607 = vunpack.c.h.b16 %v1050
    %v1608 = vunpack.c.l.b16 %v1051
    %v1609 = vunpack.c.h.b16 %v1051
    %v1610 = vunpack.c.l.b16 %v1052
    %v1611 = vunpack.c.h.b16 %v1052
    %v1612 = vunpack.c.l.b16 %v1053
    %v1613 = vunpack.c.h.b16 %v1053
    %v1614 = vunpack.c.l.b16 %v1054
    %v1615 = vunpack.c.h.b16 %v1054
    %v1616 = vunpack.c.l.b16 %v1055
    %v1617 = vunpack.c.h.b16 %v1055
    %v1618 = vunpack.c.l.b16 %v1056
    %v1619 = vunpack.c.h.b16 %v1056
    %v1620 = vunpack.c.l.b16 %v1057
    %v1621 = vunpack.c.h.b16 %v1057
    %v1622 = vunpack.c.l.b16 %v1058
    %v1623 = vunpack.c.h.b16 %v1058
    %v1624 = vunpack.c.l.b16 %v1059
    %v1625 = vunpack.c.h.b16 %v1059
    %v1626 = vunpack.c.l.b16 %v1060
    %v1627 = vunpack.c.h.b16 %v1060
    %v1628 = vunpack.c.l.b16 %v1061
    %v1629 = vunpack.c.h.b16 %v1061
    %v1630 = vunpack.c.l.b16 %v1062
    %v1631 = vunpack.c.h.b16 %v1062
    %v1632 = vunpack.c.l.b16 %v1063
    %v1633 = vunpack.c.h.b16 %v1063
    %v1634 = vunpack.c.l.b16 %v1064
    %v1635 = vunpack.c.h.b16 %v1064
    %v1636 = vunpack.c.l.b16 %v1065
    %v1637 = vunpack.c.h.b16 %v1065
    %v1638 = vunpack.c.l.b16 %v1066
    %v1639 = vunpack.c.h.b16 %v1066
    %v1640 = vunpack.c.l.b16 %v1067
    %v1641 = vunpack.c.h.b16 %v1067
    %v1642 = vunpack.c.l.b16 %v1068
    %v1643 = vunpack.c.h.b16 %v1068
    %v1644 = vunpack.c.l.b16 %v1069
    %v1645 = vunpack.c.h.b16 %v1069
    %v1646 = vunpack.c.l.b16 %v1070
    %v1647 = vunpack.c.h.b16 %v1070
    %v1648 = vunpack.c.l.b16 %v1071
    %v1649 = vunpack.c.h.b16 %v1071
    %v1650 = vunpack.c.l.b16 %v1072
    %v1651 = vunpack.c.h.b16 %v1072
    %v1652 = vunpack.c.l.b16 %v1073
    %v1653 = vunpack.c.h.b16 %v1073
    %v1654 = vunpack.c.l.b16 %v1074
    %v1655 = vunpack.c.h.b16 %v1074
    %v1656 = vunpack.c.l.b16 %v1075
    %v1657 = vunpack.c.h.b16 %v1075
    %v1658 = vunpack.c.l.b16 %v1076
    %v1659 = vunpack.c.h.b16 %v1076
    %v1660 = vunpack.c.l.b16 %v1077
    %v1661 = vunpack.c.h.b16 %v1077
    %v1662 = vunpack.c.l.b16 %v1078
    %v1663 = vunpack.c.h.b16 %v1078
    %v1664 = vunpack.c.l.b16 %v1079
    %v1665 = vunpack.c.h.b16 %v1079
    %v1666 = vunpack.c.l.b16 %v1080
    %v1667 = vunpack.c.h.b16 %v1080
    %v1668 = vunpack.c.l.b16 %v1081
    %v1669 = vunpack.c.h.b16 %v1081
    %v1670 = vunpack.c.l.b16 %v1082
    %v1671 = vunpack.c.h.b16 %v1082
    %v1672 = vunpack.c.l.b16 %v1083
    %v1673 = vunpack.c.h.b16 %v1083
    %v1674 = vunpack.c.l.b16 %v1084
    %v1675 = vunpack.c.h.b16 %v1084
    %v1676 = vunpack.c.l.b16 %v1085
    %v1677 = vunpack.c.h.b16 %v1085
    %v1678 = vunpack.c.l.b16 %v1086
    %v1679 = vunpack.c.h.b16 %v1086
    %v1680 = vunpack.c.l.b16 %v1087
    %v1681 = vunpack.c.h.b16 %v1087
    %v1682 = vunpack.c.l.b16 %v1088
    %v1683 = vunpack.c.h.b16 %v1088
    %v1684 = vunpack.c.l.b16 %v1089
    %v1685 = vunpack.c.h.b16 %v1089
    %v1686 = vunpack.c.l.b16 %v1090
    %v1687 = vunpack.c.h.b16 %v1090
    %v1688 = vunpack.c.l.b16 %v1091
    %v1689 = vunpack.c.h.b16 %v1091
    %v1690 = vunpack.c.l.b16 %v1092
    %v1691 = vunpack.c.h.b16 %v1092
    %v1692 = vunpack.c.l.b16 %v1093
    %v1693 = vunpack.c.h.b16 %v1093
    %v1694 = vunpack.c.l.b16 %v1094
    %v1695 = vunpack.c.h.b16 %v1094
    %v1696 = vunpack.c.l.b16 %v1095
    %v1697 = vunpack.c.h.b16 %v1095
    %v1698 = vunpack.c.l.b16 %v1096
    %v1699 = vunpack.c.h.b16 %v1096
    %v1700 = vunpack.c.l.b16 %v1097
    %v1701 = vunpack.c.h.b16 %v1097
    %v1702 = vunpack.c.l.b16 %v1098
    %v1703 = vunpack.c.h.b16 %v1098
    %v1704 = vunpack.c.l.b16 %v1099
    %v1705 = vunpack.c.h.b16 %v1099
    %v1706 = vunpack.c.l.b16 %v1100
    %v1707 = vunpack.c.h.b16 %v1100
    %v1708 = vunpack.c.l.b16 %v1101
    %v1709 = vunpack.c.h.b16 %v1101
    %v1710 = vunpack.c.l.b16 %v1102
    %v1711 = vunpack.c.h.b16 %v1102
    %v1712 = vunpack.c.l.b16 %v1103
    %v1713 = vunpack.c.h.b16 %v1103
    %v1714 = vunpack.c.l.b16 %v1104
    %v1715 = vunpack.c.h.b16 %v1104
    %v1716 = vunpack.c.l.b16 %v1105
    %v1717 = vunpack.c.h.b16 %v1105
    %v1718 = vunpack.c.l.b16 %v1106
    %v1719 = vunpack.c.h.b16 %v1106
    %v1720 = vunpack.c.l.b16 %v1107
    %v1721 = vunpack.c.h.b16 %v1107
    %v1722 = vunpack.c.l.b16 %v1108
    %v1723 = vunpack.c.h.b16 %v1108
    %v1724 = vunpack.c.l.b16 %v1109
    %v1725 = vunpack.c.h.b16 %v1109
    %v1726 = vunpack.c.l.b16 %v1110
    %v1727 = vunpack.c.h.b16 %v1110
    %v1728 = vunpack.c.l.b16 %v1111
    %v1729 = vunpack.c.h.b16 %v1111
    %v1730 = vunpack.c.l.b16 %v1112
    %v1731 = vunpack.c.h.b16 %v1112
    %v1732 = vunpack.c.l.b16 %v1113
    %v1733 = vunpack.c.h.b16 %v1113
    %v1734 = vunpack.c.l.b16 %v1114
    %v1735 = vunpack.c.h.b16 %v1114
    %v1736 = vunpack.c.l.b16 %v1115
    %v1737 = vunpack.c.h.b16 %v1115
    %v1738 = vunpack.c.l.b16 %v1116
    %v1739 = vunpack.c.h.b16 %v1116
    %v1740 = vunpack.c.l.b16 %v1117
    %v1741 = vunpack.c.h.b16 %v1117
    %v1742 = vunpack.c.l.b16 %v1118
    %v1743 = vunpack.c.h.b16 %v1118
    %v1744 = vunpack.c.l.b16 %v1119
    %v1745 = vunpack.c.h.b16 %v1119
    %v1746 = vunpack.c.l.b16 %v1120
    %v1747 = vunpack.c.h.b16 %v1120
    %v1748 = vunpack.c.l.b16 %v1121
    %v1749 = vunpack.c.h.b16 %v1121
    %v1750 = vunpack.c.l.b16 %v1122
    %v1751 = vunpack.c.h.b16 %v1122
    %v1752 = vunpack.c.l.b16 %v1123
    %v1753 = vunpack.c.h.b16 %v1123
    %v1754 = vunpack.c.l.b16 %v1124
    %v1755 = vunpack.c.h.b16 %v1124
    %v1756 = vunpack.c.l.b16 %v1125
    %v1757 = vunpack.c.h.b16 %v1125
    %v1758 = vunpack.c.l.b16 %v1126
    %v1759 = vunpack.c.h.b16 %v1126
    %v1760 = vunpack.c.l.b16 %v1127
    %v1761 = vunpack.c.h.b16 %v1127
    %v1762 = vunpack.c.l.b16 %v1128
    %v1763 = vunpack.c.h.b16 %v1128
    %v1764 = vunpack.c.l.b16 %v1129
    %v1765 = vunpack.c.h.b16 %v1129
    %v1766 = vunpack.c.l.b16 %v1130
    %v1767 = vunpack.c.h.b16 %v1130
    %v1768 = vunpack.c.l.b16 %v1131
    %v1769 = vunpack.c.h.b16 %v1131
    %v1770 = vunpack.c.l.b16 %v1132
    %v1771 = vunpack.c.h.b16 %v1132
    %v1772 = vunpack.c.l.b16 %v1133
    %v1773 = vunpack.c.h.b16 %v1133
    %v1774 = vunpack.c.l.b16 %v1134
    %v1775 = vunpack.c.h.b16 %v1134
    %v1776 = vunpack.c.l.b16 %v1135
    %v1777 = vunpack.c.h.b16 %v1135
    %v1778 = vunpack.c.l.b16 %v1136
    %v1779 = vunpack.c.h.b16 %v1136
    %v1780 = vunpack.c.l.b16 %v1137
    %v1781 = vunpack.c.h.b16 %v1137
    %v1782 = vunpack.c.l.b16 %v1138
    %v1783 = vunpack.c.h.b16 %v1138
    %v1784 = vunpack.c.l.b16 %v1139
    %v1785 = vunpack.c.h.b16 %v1139
    %v1786 = vunpack.c.l.b16 %v1140
    %v1787 = vunpack.c.h.b16 %v1140
    %v1788 = vunpack.c.l.b16 %v1141
    %v1789 = vunpack.c.h.b16 %v1141
    %v1790 = vunpack.c.l.b16 %v1142
    %v1791 = vunpack.c.h.b16 %v1142
    %v1792 = vunpack.c.l.b16 %v1143
    %v1793 = vunpack.c.h.b16 %v1143
    %v1794 = vunpack.c.l.b16 %v1144
    %v1795 = vunpack.c.h.b16 %v1144
    %v1796 = vunpack.c.l.b16 %v1145
    %v1797 = vunpack.c.h.b16 %v1145
    %v1798 = vunpack.c.l.b16 %v1146
    %v1799 = vunpack.c.h.b16 %v1146
    %v1800 = vunpack.c.l.b16 %v1147
    %v1801 = vunpack.c.h.b16 %v1147
    %v1802 = vunpack.c.l.b16 %v1148
    %v1803 = vunpack.c.h.b16 %v1148
    %v1804 = vunpack.c.l.b16 %v1149
    %v1805 = vunpack.c.h.b16 %v1149
    %v1806 = vunpack.c.l.b16 %v1150
    %v1807 = vunpack.c.h.b16 %v1150
    %v1808 = vunpack.c.l.b16 %v1151
    %v1809 = vunpack.c.h.b16 %v1151
    %v1810 = vunpack.c.l.b16 %v1152
    %v1811 = vunpack.c.h.b16 %v1152
    %v1812 = vunpack.c.l.b16 %v1153
    %v1813 = vunpack.c.h.b16 %v1153
    %v1814 = vunpack.c.l.b16 %v1154
    %v1815 = vunpack.c.h.b16 %v1154
    %v1816 = vunpack.c.l.b16 %v1155
    %v1817 = vunpack.c.h.b16 %v1155
    %v1818 = vunpack.c.l.b16 %v1156
    %v1819 = vunpack.c.h.b16 %v1156
    %v1820 = vunpack.c.l.b16 %v1157
    %v1821 = vunpack.c.h.b16 %v1157
    %v1822 = vunpack.c.l.b16 %v1158
    %v1823 = vunpack.c.h.b16 %v1158
    %v1824 = vunpack.c.l.b16 %v1159
    %v1825 = vunpack.c.h.b16 %v1159
    %v1826 = vunpack.c.l.b16 %v1160
    %v1827 = vunpack.c.h.b16 %v1160
    %v1828 = vunpack.c.l.b16 %v1161
    %v1829 = vunpack.c.h.b16 %v1161
    %v1830 = vunpack.c.l.b16 %v1162
    %v1831 = vunpack.c.h.b16 %v1162
    %v1832 = vunpack.c.l.b16 %v1163
    %v1833 = vunpack.c.h.b16 %v1163
    %v1834 = vunpack.c.l.b16 %v1164
    %v1835 = vunpack.c.h.b16 %v1164
    %v1836 = vunpack.c.l.b16 %v1165
    %v1837 = vunpack.c.h.b16 %v1165
    %v1838 = vunpack.c.l.b16 %v1166
    %v1839 = vunpack.c.h.b16 %v1166
    %v1840 = vunpack.c.l.b16 %v1167
    %v1841 = vunpack.c.h.b16 %v1167
    %v1842 = vunpack.c.l.b16 %v1168
    %v1843 = vunpack.c.h.b16 %v1168
    %v1844 = vunpack.c.l.b16 %v1169
    %v1845 = vunpack.c.h.b16 %v1169
    %v1846 = vunpack.c.l.b16 %v1170
    %v1847 = vunpack.c.h.b16 %v1170
    %v1848 = vunpack.c.l.b16 %v1171
    %v1849 = vunpack.c.h.b16 %v1171
    %v1850 = vunpack.c.l.b16 %v1172
    %v1851 = vunpack.c.h.b16 %v1172
    %v1852 = vunpack.c.l.b16 %v1173
    %v1853 = vunpack.c.h.b16 %v1173
    %v1854 = vunpack.c.l.b16 %v1174
    %v1855 = vunpack.c.h.b16 %v1174
    %v1856 = vunpack.c.l.b16 %v1175
    %v1857 = vunpack.c.h.b16 %v1175
    %v1858 = vunpack.c.l.b16 %v1176
    %v1859 = vunpack.c.h.b16 %v1176
    %v1860 = vunpack.c.l.b16 %v1177
    %v1861 = vunpack.c.h.b16 %v1177
    %v1862 = vunpack.c.l.b16 %v1178
    %v1863 = vunpack.c.h.b16 %v1178
    %v1864 = vunpack.c.l.b16 %v1179
    %v1865 = vunpack.c.h.b16 %v1179
    %v1866 = vunpack.c.l.b16 %v1180
    %v1867 = vunpack.c.h.b16 %v1180
    %v1868 = vunpack.c.l.b16 %v1181
    %v1869 = vunpack.c.h.b16 %v1181
    %v1870 = vunpack.c.l.b16 %v1182
    %v1871 = vunpack.c.h.b16 %v1182
    %v1872 = vunpack.c.l.b16 %v1183
    %v1873 = vunpack.c.h.b16 %v1183
    %v1874 = vunpack.c.l.b16 %v1184
    %v1875 = vunpack.c.h.b16 %v1184
    %v1876 = vunpack.c.l.b16 %v1185
    %v1877 = vunpack.c.h.b16 %v1185
    %v1878 = vunpack.c.l.b16 %v1186
    %v1879 = vunpack.c.h.b16 %v1186
    %v1880 = vunpack.c.l.b16 %v1187
    %v1881 = vunpack.c.h.b16 %v1187
    %v1882 = vunpack.c.l.b16 %v1188
    %v1883 = vunpack.c.h.b16 %v1188
    %v1884 = vunpack.c.l.b16 %v1189
    %v1885 = vunpack.c.h.b16 %v1189
    %v1886 = vunpack.c.l.b16 %v1190
    %v1887 = vunpack.c.h.b16 %v1190
    %v1888 = vunpack.c.l.b16 %v1191
    %v1889 = vunpack.c.h.b16 %v1191
    %v1890 = vunpack.c.l.b16 %v1192
    %v1891 = vunpack.c.h.b16 %v1192
    %v1892 = vunpack.c.l.b16 %v1193
    %v1893 = vunpack.c.h.b16 %v1193
    %v1894 = vunpack.c.l.b16 %v1194
    %v1895 = vunpack.c.h.b16 %v1194
    %v1896 = vunpack.c.l.b16 %v1195
    %v1897 = vunpack.c.h.b16 %v1195
    %v1898 = vunpack.c.l.b16 %v1196
    %v1899 = vunpack.c.h.b16 %v1196
    %v1900 = vunpack.c.l.b16 %v1197
    %v1901 = vunpack.c.h.b16 %v1197
    %v1902 = vunpack.c.l.b16 %v1198
    %v1903 = vunpack.c.h.b16 %v1198
    %v1904 = vunpack.c.l.b16 %v1199
    %v1905 = vunpack.c.h.b16 %v1199
    %v1906 = vunpack.c.l.b16 %v1200
    %v1907 = vunpack.c.h.b16 %v1200
    %v1908 = vunpack.c.l.b16 %v1201
    %v1909 = vunpack.c.h.b16 %v1201
    %v1910 = vunpack.c.l.b16 %v1202
    %v1911 = vunpack.c.h.b16 %v1202
    %v1912 = vunpack.c.l.b16 %v1203
    %v1913 = vunpack.c.h.b16 %v1203
    %v1914 = vunpack.c.l.b16 %v1204
    %v1915 = vunpack.c.h.b16 %v1204
    %v1916 = vunpack.c.l.b16 %v1205
    %v1917 = vunpack.c.h.b16 %v1205
    %v1918 = vunpack.c.l.b16 %v1206
    %v1919 = vunpack.c.h.b16 %v1206
    %v1920 = vunpack.c.l.b16 %v1207
    %v1921 = vunpack.c.h.b16 %v1207
    %v1922 = vunpack.c.l.b16 %v1208
    %v1923 = vunpack.c.h.b16 %v1208
    %v1924 = vunpack.c.l.b16 %v1209
    %v1925 = vunpack.c.h.b16 %v1209
    %v1926 = vunpack.c.l.b16 %v1210
    %v1927 = vunpack.c.h.b16 %v1210
    %v1928 = vunpack.c.l.b16 %v1211
    %v1929 = vunpack.c.h.b16 %v1211
    %v1930 = vunpack.c.l.b16 %v1212
    %v1931 = vunpack.c.h.b16 %v1212
    %v1932 = vunpack.c.l.b16 %v1213
    %v1933 = vunpack.c.h.b16 %v1213
    %v1934 = vunpack.c.l.b16 %v1214
    %v1935 = vunpack.c.h.b16 %v1214
    %v1936 = vunpack.c.l.b16 %v1215
    %v1937 = vunpack.c.h.b16 %v1215
    %v1938 = vunpack.c.l.b16 %v1216
    %v1939 = vunpack.c.h.b16 %v1216
    %v1940 = vunpack.c.l.b16 %v1217
    %v1941 = vunpack.c.h.b16 %v1217
    %v1942 = vunpack.c.l.b16 %v1218
    %v1943 = vunpack.c.h.b16 %v1218
    %v1944 = vunpack.c.l.b16 %v1219
    %v1945 = vunpack.c.h.b16 %v1219
    %v1946 = vunpack.c.l.b16 %v1220
    %v1947 = vunpack.c.h.b16 %v1220
    %v1948 = vunpack.c.l.b16 %v1221
    %v1949 = vunpack.c.h.b16 %v1221
    %v1950 = vunpack.c.l.b16 %v1222
    %v1951 = vunpack.c.h.b16 %v1222
    %v1952 = vunpack.c.l.b16 %v1223
    %v1953 = vunpack.c.h.b16 %v1223
    %v1954 = vunpack.c.l.b16 %v1224
    %v1955 = vunpack.c.h.b16 %v1224
    %v1956 = vunpack.c.l.b16 %v1225
    %v1957 = vunpack.c.h.b16 %v1225
    %v1958 = vunpack.c.l.b16 %v1226
    %v1959 = vunpack.c.h.b16 %v1226
    %v1960 = vunpack.c.l.b16 %v1227
    %v1961 = vunpack.c.h.b16 %v1227
    %v1962 = vunpack.c.l.b16 %v1228
    %v1963 = vunpack.c.h.b16 %v1228
    %v1964 = vunpack.c.l.b16 %v1229
    %v1965 = vunpack.c.h.b16 %v1229
    %v1966 = vunpack.c.l.b16 %v1230
    %v1967 = vunpack.c.h.b16 %v1230
    %v1968 = vunpack.c.l.b16 %v1231
    %v1969 = vunpack.c.h.b16 %v1231
    %v1970 = vunpack.c.l.b16 %v1232
    %v1971 = vunpack.c.h.b16 %v1232
    %v1972 = vunpack.c.l.b16 %v1233
    %v1973 = vunpack.c.h.b16 %v1233
    %v1974 = vunpack.c.l.b16 %v1234
    %v1975 = vunpack.c.h.b16 %v1234
    %v1976 = vunpack.c.l.b16 %v1235
    %v1977 = vunpack.c.h.b16 %v1235
    %v1978 = vunpack.c.l.b16 %v1236
    %v1979 = vunpack.c.h.b16 %v1236
    %v1980 = vunpack.c.l.b16 %v1237
    %v1981 = vunpack.c.h.b16 %v1237
    %v1982 = vunpack.c.l.b16 %v1238
    %v1983 = vunpack.c.h.b16 %v1238
    %v1984 = vunpack.c.l.b16 %v1239
    %v1985 = vunpack.c.h.b16 %v1239
    %v1986 = vunpack.c.l.b16 %v1240
    %v1987 = vunpack.c.h.b16 %v1240
    %v1988 = vunpack.c.l.b16 %v1241
    %v1989 = vunpack.c.h.b16 %v1241
    %v1990 = vunpack.c.l.b16 %v1242
    %v1991 = vunpack.c.h.b16 %v1242
    %v1992 = vunpack.c.l.b16 %v1243
    %v1993 = vunpack.c.h.b16 %v1243
    %v1994 = vunpack.c.l.b16 %v1244
    %v1995 = vunpack.c.h.b16 %v1244
    %v1996 = vunpack.c.l.b16 %v1245
    %v1997 = vunpack.c.h.b16 %v1245
    %v1998 = vunpack.c.l.b16 %v1246
    %v1999 = vunpack.c.h.b16 %v1246
    %v2000 = vunpack.c.l.b16 %v1247
    %v2001 = vunpack.c.h.b16 %v1247
    %v2002 = vunpack.c.l.b16 %v1248
    %v2003 = vunpack.c.h.b16 %v1248
    %v2004 = vunpack.c.l.b16 %v1249
    %v2005 = vunpack.c.h.b16 %v1249
    %v2006 = vunpack.c.l.b16 %v1250
    %v2007 = vunpack.c.h.b16 %v1250
    %v2008 = vunpack.c.l.b16 %v1251
    %v2009 = vunpack.c.h.b16 %v1251
    %v2010 = vunpack.c.l.b16 %v1252
    %v2011 = vunpack.c.h.b16 %v1252
    %v2012 = vunpack.c.l.b16 %v1253
    %v2013 = vunpack.c.h.b16 %v1253
    %v2014 = vunpack.c.l.b16 %v1254
    %v2015 = vunpack.c.h.b16 %v1254
    %v2016 = vunpack.c.l.b16 %v1255
    %v2017 = vunpack.c.h.b16 %v1255
    %v2018 = vunpack.c.l.b16 %v1256
    %v2019 = vunpack.c.h.b16 %v1256
    %v2020 = vunpack.c.l.b16 %v1257
    %v2021 = vunpack.c.h.b16 %v1257
    %v2022 = vunpack.c.l.b16 %v1258
    %v2023 = vunpack.c.h.b16 %v1258
    %v2024 = vunpack.c.l.b16 %v1259
    %v2025 = vunpack.c.h.b16 %v1259
    %v2026 = vunpack.c.l.b16 %v1260
    %v2027 = vunpack.c.h.b16 %v1260
    %v2028 = vunpack.c.l.b16 %v1261
    %v2029 = vunpack.c.h.b16 %v1261
    %v2030 = vunpack.c.l.b16 %v1262
    %v2031 = vunpack.c.h.b16 %v1262
    %v2032 = vunpack.c.l.b16 %v1263
    %v2033 = vunpack.c.h.b16 %v1263
    %v2034 = vunpack.c.l.b16 %v1264
    %v2035 = vunpack.c.h.b16 %v1264
    %v2036 = vunpack.c.l.b16 %v1265
    %v2037 = vunpack.c.h.b16 %v1265
    %v2038 = vunpack.c.l.b16 %v1266
    %v2039 = vunpack.c.h.b16 %v1266
    %v2040 = vunpack.c.l.b16 %v1267
    %v2041 = vunpack.c.h.b16 %v1267
    %v2042 = vunpack.c.l.b16 %v1268
    %v2043 = vunpack.c.h.b16 %v1268
    %v2044 = vunpack.c.l.b16 %v1269
    %v2045 = vunpack.c.h.b16 %v1269
    %v2046 = vunpack.c.l.b16 %v1270
    %v2047 = vunpack.c.h.b16 %v1270
    %v2048 = vunpack.c.l.b16 %v1271
    %v2049 = vunpack.c.h.b16 %v1271
    %v2050 = vunpack.c.l.b16 %v1272
    %v2051 = vunpack.c.h.b16 %v1272
    %v2052 = vunpack.c.l.b16 %v1273
    %v2053 = vunpack.c.h.b16 %v1273
    %v2054 = vunpack.c.l.b16 %v1274
    %v2055 = vunpack.c.h.b16 %v1274
    %v2056 = vunpack.c.l.b16 %v1275
    %v2057 = vunpack.c.h.b16 %v1275
    %v2058 = vunpack.c.l.b16 %v1276
    %v2059 = vunpack.c.h.b16 %v1276
    %v2060 = vunpack.c.l.b16 %v1277
    %v2061 = vunpack.c.h.b16 %v1277
    %v2062 = vunpack.c.l.b16 %v1278
    %v2063 = vunpack.c.h.b16 %v1278
    %v2064 = vunpack.c.l.b16 %v1279
    %v2065 = vunpack.c.h.b16 %v1279
    %v2066 = vunpack.c.l.b16 %v1280
    %v2067 = vunpack.c.h.b16 %v1280
    %v2068 = vunpack.c.l.b16 %v1281
    %v2069 = vunpack.c.h.b16 %v1281
    %v2070 = vunpack.c.l.b16 %v1282
    %v2071 = vunpack.c.h.b16 %v1282
    %v2072 = vunpack.c.l.b16 %v1283
    %v2073 = vunpack.c.h.b16 %v1283
    %v2074 = vunpack.c.l.b16 %v1284
    %v2075 = vunpack.c.h.b16 %v1284
    %v2076 = vunpack.c.l.b16 %v1285
    %v2077 = vunpack.c.h.b16 %v1285
    %v2078 = vunpack.c.l.b16 %v1286
    %v2079 = vunpack.c.h.b16 %v1286
    %v2080 = vunpack.c.l.b16 %v1287
    %v2081 = vunpack.c.h.b16 %v1287
    %v2082 = vunpack.c.l.b16 %v1288
    %v2083 = vunpack.c.h.b16 %v1288
    %v2084 = vunpack.c.l.b16 %v1289
    %v2085 = vunpack.c.h.b16 %v1289
    %v2086 = vunpack.c.l.b16 %v1290
    %v2087 = vunpack.c.h.b16 %v1290
    %v2088 = vunpack.c.l.b16 %v1291
    %v2089 = vunpack.c.h.b16 %v1291
    %v2090 = vunpack.c.l.b16 %v1292
    %v2091 = vunpack.c.h.b16 %v1292
    %v2092 = vunpack.c.l.b16 %v1293
    %v2093 = vunpack.c.h.b16 %v1293
    %v2094 = vunpack.c.l.b16 %v1294
    %v2095 = vunpack.c.h.b16 %v1294
    %v2096 = vunpack.c.l.b16 %v1295
    %v2097 = vunpack.c.h.b16 %v1295
    %v2098 = vunpack.c.l.b16 %v1296
    %v2099 = vunpack.c.h.b16 %v1296
    %v2100 = vunpack.c.l.b16 %v1297
    %v2101 = vunpack.c.h.b16 %v1297
    %v2102 = vunpack.c.l.b16 %v1298
    %v2103 = vunpack.c.h.b16 %v1298
    %v2104 = vunpack.c.l.b16 %v1299
    %v2105 = vunpack.c.h.b16 %v1299
    %v2106 = vunpack.c.l.b16 %v1300
    %v2107 = vunpack.c.h.b16 %v1300
    %v2108 = vunpack.c.l.b16 %v1301
    %v2109 = vunpack.c.h.b16 %v1301
    %v2110 = vunpack.c.l.b16 %v1302
    %v2111 = vunpack.c.h.b16 %v1302
    %v2112 = vunpack.c.l.b16 %v1303
    %v2113 = vunpack.c.h.b16 %v1303
    %v2114 = vpack.c.b16 %v1610, %v1602
    %v2115 = vpack.c.b16 %v1611, %v1603
    %v2116 = vpack.c.b16 %v1612, %v1604
    %v2117 = vpack.c.b16 %v1613, %v1605
    %v2118 = vpack.c.b16 %v1614, %v1606
    %v2119 = vpack.c.b16 %v1615, %v1607
    %v2120 = vpack.c.b16 %v1616, %v1608
    %v2121 = vpack.c.b16 %v1617, %v1609
    %v2122 = vpack.c.b16 %v1626, %v1618
    %v2123 = vpack.c.b16 %v1627, %v1619
    %v2124 = vpack.c.b16 %v1628, %v1620
    %v2125 = vpack.c.b16 %v1629, %v1621
    %v2126 = vpack.c.b16 %v1630, %v1622
    %v2127 = vpack.c.b16 %v1631, %v1623
    %v2128 = vpack.c.b16 %v1632, %v1624
    %v2129 = vpack.c.b16 %v1633, %v1625
    %v2130 = vpack.c.b16 %v1642, %v1634
    %v2131 = vpack.c.b16 %v1643, %v1635
    %v2132 = vpack.c.b16 %v1644, %v1636
    %v2133 = vpack.c.b16 %v1645, %v1637
    %v2134 = vpack.c.b16 %v1646, %v1638
    %v2135 = vpack.c.b16 %v1647, %v1639
    %v2136 = vpack.c.b16 %v1648, %v1640
    %v2137 = vpack.c.b16 %v1649, %v1641
    %v2138 = vpack.c.b16 %v1658, %v1650
    %v2139 = vpack.c.b16 %v1659, %v1651
    %v2140 = vpack.c.b16 %v1660, %v1652
    %v2141 = vpack.c.b16 %v1661, %v1653
    %v2142 = vpack.c.b16 %v1662, %v1654
    %v2143 = vpack.c.b16 %v1663, %v1655
    %v2144 = vpack.c.b16 %v1664, %v1656
    %v2145 = vpack.c.b16 %v1665, %v1657
    %v2146 = vpack.c.b16 %v1674, %v1666
    %v2147 = vpack.c.b16 %v1675, %v1667
    %v2148 = vpack.c.b16 %v1676, %v1668
    %v2149 = vpack.c.b16 %v1677, %v1669
    %v2150 = vpack.c.b16 %v1678, %v1670
    %v2151 = vpack.c.b16 %v1679, %v1671
    %v2152 = vpack.c.b16 %v1680, %v1672
    %v2153 = vpack.c.b16 %v1681, %v1673
    %v2154 = vpack.c.b16 %v1690, %v1682
    %v2155 = vpack.c.b16 %v1691, %v1683
    %v2156 = vpack.c.b16 %v1692, %v1684
    %v2157 = vpack.c.b16 %v1693, %v1685
    %v2158 = vpack.c.b16 %v1694, %v1686
    %v2159 = vpack.c.b16 %v1695, %v1687
    %v2160 = vpack.c.b16 %v1696, %v1688
    %v2161 = vpack.c.b16 %v1697, %v1689
    %v2162 = vpack.c.b16 %v1706, %v1698
    %v2163 = vpack.c.b16 %v1707, %v1699
    %v2164 = vpack.c.b16 %v1708, %v1700
    %v2165 = vpack.c.b16 %v1709, %v1701
    %v2166 = vpack.c.b16 %v1710, %v1702
    %v2167 = vpack.c.b16 %v1711, %v1703
    %v2168 = vpack.c.b16 %v1712, %v1704
    %v2169 = vpack.c.b16 %v1713, %v1705
    %v2170 = vpack.c.b16 %v1722, %v1714
    %v2171 = vpack.c.b16 %v1723, %v1715
    %v2172 = vpack.c.b16 %v1724, %v1716
    %v2173 = vpack.c.b16 %v1725, %v1717
    %v2174 = vpack.c.b16 %v1726, %v1718
    %v2175 = vpack.c.b16 %v1727, %v1719
    %v2176 = vpack.c.b16 %v1728, %v1720
    %v2177 = vpack.c.b16 %v1729, %v1721
    %v2178 = vpack.c.b16 %v1738, %v1730
    %v2179 = vpack.c.b16 %v1739, %v1731
    %v2180 = vpack.c.b16 %v1740, %v1732
    %v2181 = vpack.c.b16 %v1741, %v1733
    %v2182 = vpack.c.b16 %v1742, %v1734
    %v2183 = vpack.c.b16 %v1743, %v1735
    %v2184 = vpack.c.b16 %v1744, %v1736
    %v2185 = vpack.c.b16 %v1745, %v1737
    %v2186 = vpack.c.b16 %v1754, %v1746
    %v2187 = vpack.c.b16 %v1755, %v1747
    %v2188 = vpack.c.b16 %v1756, %v1748
    %v2189 = vpack.c.b16 %v1757, %v1749
    %v2190 = vpack.c.b16 %v1758, %v1750
    %v2191 = vpack.c.b16 %v1759, %v1751
    %v2192 = vpack.c.b16 %v1760, %v1752
    %v2193 = vpack.c.b16 %v1761, %v1753
    %v2194 = vpack.c.b16 %v1770, %v1762
    %v2195 = vpack.c.b16 %v1771, %v1763
    %v2196 = vpack.c.b16 %v1772, %v1764
    %v2197 = vpack.c.b16 %v1773, %v1765
    %v2198 = vpack.c.b16 %v1774, %v1766
    %v2199 = vpack.c.b16 %v1775, %v1767
    %v2200 = vpack.c.b16 %v1776, %v1768
    %v2201 = vpack.c.b16 %v1777, %v1769
    %v2202 = vpack.c.b16 %v1786, %v1778
    %v2203 = vpack.c.b16 %v1787, %v1779
    %v2204 = vpack.c.b16 %v1788, %v1780
    %v2205 = vpack.c.b16 %v1789, %v1781
    %v2206 = vpack.c.b16 %v1790, %v1782
    %v2207 = vpack.c.b16 %v1791, %v1783
    %v2208 = vpack.c.b16 %v1792, %v1784
    %v2209 = vpack.c.b16 %v1793, %v1785
    %v2210 = vpack.c.b16 %v1802, %v1794
    %v2211 = vpack.c.b16 %v1803, %v1795
    %v2212 = vpack.c.b16 %v1804, %v1796
    %v2213 = vpack.c.b16 %v1805, %v1797
    %v2214 = vpack.c.b16 %v1806, %v1798
    %v2215 = vpack.c.b16 %v1807, %v1799
    %v2216 = vpack.c.b16 %v1808, %v1800
    %v2217 = vpack.c.b16 %v1809, %v1801
    %v2218 = vpack.c.b16 %v1818, %v1810
    %v2219 = vpack.c.b16 %v1819, %v1811
    %v2220 = vpack.c.b16 %v1820, %v1812
    %v2221 = vpack.c.b16 %v1821, %v1813
    %v2222 = vpack.c.b16 %v1822, %v1814
    %v2223 = vpack.c.b16 %v1823, %v1815
    %v2224 = vpack.c.b16 %v1824, %v1816
    %v2225 = vpack.c.b16 %v1825, %v1817
    %v2226 = vpack.c.b16 %v1834, %v1826
    %v2227 = vpack.c.b16 %v1835, %v1827
    %v2228 = vpack.c.b16 %v1836, %v1828
    %v2229 = vpack.c.b16 %v1837, %v1829
    %v2230 = vpack.c.b16 %v1838, %v1830
    %v2231 = vpack.c.b16 %v1839, %v1831
    %v2232 = vpack.c.b16 %v1840, %v1832
    %v2233 = vpack.c.b16 %v1841, %v1833
    %v2234 = vpack.c.b16 %v1850, %v1842
    %v2235 = vpack.c.b16 %v1851, %v1843
    %v2236 = vpack.c.b16 %v1852, %v1844
    %v2237 = vpack.c.b16 %v1853, %v1845
    %v2238 = vpack.c.b16 %v1854, %v1846
    %v2239 = vpack.c.b16 %v1855, %v1847
    %v2240 = vpack.c.b16 %v1856, %v1848
    %v2241 = vpack.c.b16 %v1857, %v1849
    %v2242 = vpack.c.b16 %v1866, %v1858
    %v2243 = vpack.c.b16 %v1867, %v1859
    %v2244 = vpack.c.b16 %v1868, %v1860
    %v2245 = vpack.c.b16 %v1869, %v1861
    %v2246 = vpack.c.b16 %v1870, %v1862
    %v2247 = vpack.c.b16 %v1871, %v1863
    %v2248 = vpack.c.b16 %v1872, %v1864
    %v2249 = vpack.c.b16 %v1873, %v1865
    %v2250 = vpack.c.b16 %v1882, %v1874
    %v2251 = vpack.c.b16 %v1883, %v1875
    %v2252 = vpack.c.b16 %v1884, %v1876
    %v2253 = vpack.c.b16 %v1885, %v1877
    %v2254 = vpack.c.b16 %v1886, %v1878
    %v2255 = vpack.c.b16 %v1887, %v1879
    %v2256 = vpack.c.b16 %v1888, %v1880
    %v2257 = vpack.c.b16 %v1889, %v1881
    %v2258 = vpack.c.b16 %v1898, %v1890
    %v2259 = vpack.c.b16 %v1899, %v1891
    %v2260 = vpack.c.b16 %v1900, %v1892
    %v2261 = vpack.c.b16 %v1901, %v1893
    %v2262 = vpack.c.b16 %v1902, %v1894
    %v2263 = vpack.c.b16 %v1903, %v1895
    %v2264 = vpack.c.b16 %v1904, %v1896
    %v2265 = vpack.c.b16 %v1905, %v1897
    %v2266 = vpack.c.b16 %v1914, %v1906
    %v2267 = vpack.c.b16 %v1915, %v1907
    %v2268 = vpack.c.b16 %v1916, %v1908
    %v2269 = vpack.c.b16 %v1917, %v1909
    %v2270 = vpack.c.b16 %v1918, %v1910
    %v2271 = vpack.c.b16 %v1919, %v1911
    %v2272 = vpack.c.b16 %v1920, %v1912
    %v2273 = vpack.c.b16 %v1921, %v1913
    %v2274 = vpack.c.b16 %v1930, %v1922
    %v2275 = vpack.c.b16 %v1931, %v1923
    %v2276 = vpack.c.b16 %v1932, %v1924
    %v2277 = vpack.c.b16 %v1933, %v1925
    %v2278 = vpack.c.b16 %v1934, %v1926
    %v2279 = vpack.c.b16 %v1935, %v1927
    %v2280 = vpack.c.b16 %v1936, %v1928
    %v2281 = vpack.c.b16 %v1937, %v1929
    %v2282 = vpack.c.b16 %v1946, %v1938
    %v2283 = vpack.c.b16 %v1947, %v1939
    %v2284 = vpack.c.b16 %v1948, %v1940
    %v2285 = vpack.c.b16 %v1949, %v1941
    %v2286 = vpack.c.b16 %v1950, %v1942
    %v2287 = vpack.c.b16 %v1951, %v1943
    %v2288 = vpack.c.b16 %v1952, %v1944
    %v2289 = vpack.c.b16 %v1953, %v1945
    %v2290 = vpack.c.b16 %v1962, %v1954
    %v2291 = vpack.c.b16 %v1963, %v1955
    %v2292 = vpack.c.b16 %v1964, %v1956
    %v2293 = vpack.c.b16 %v1965, %v1957
    %v2294 = vpack.c.b16 %v1966, %v1958
    %v2295 = vpack.c.b16 %v1967, %v1959
    %v2296 = vpack.c.b16 %v1968, %v1960
    %v2297 = vpack.c.b16 %v1969, %v1961
    %v2298 = vpack.c.b16 %v1978, %v1970
    %v2299 = vpack.c.b16 %v1979, %v1971
    %v2300 = vpack.c.b16 %v1980, %v1972
    %v2301 = vpack.c.b16 %v1981, %v1973
    %v2302 = vpack.c.b16 %v1982, %v1974
    %v2303 = vpack.c.b16 %v1983, %v1975
    %v2304 = vpack.c.b16 %v1984, %v1976
    %v2305 = vpack.c.b16 %v1985, %v1977
    %v2306 = vpack.c.b16 %v1994, %v1986
    %v2307 = vpack.c.b16 %v1995, %v1987
    %v2308 = vpack.c.b16 %v1996, %v1988
    %v2309 = vpack.c.b16 %v1997, %v1989
    %v2310 = vpack.c.b16 %v1998, %v1990
    %v2311 = vpack.c.b16 %v1999, %v1991
    %v2312 = vpack.c.b16 %v2000, %v1992
    %v2313 = vpack.c.b16 %v2001, %v1993
    %v2314 = vpack.c.b16 %v2010, %v2002
    %v2315 = vpack.c.b16 %v2011, %v2003
    %v2316 = vpack.c.b16 %v2012, %v2004
    %v2317 = vpack.c.b16 %v2013, %v2005
    %v2318 = vpack.c.b16 %v2014, %v2006
    %v2319 = vpack.c.b16 %v2015, %v2007
    %v2320 = vpack.c.b16 %v2016, %v2008
    %v2321 = vpack.c.b16 %v2017, %v2009
    %v2322 = vpack.c.b16 %v2026, %v2018
    %v2323 = vpack.c.b16 %v2027, %v2019
    %v2324 = vpack.c.b16 %v2028, %v2020
    %v2325 = vpack.c.b16 %v2029, %v2021
    %v2326 = vpack.c.b16 %v2030, %v2022
    %v2327 = vpack.c.b16 %v2031, %v2023
    %v2328 = vpack.c.b16 %v2032, %v2024
    %v2329 = vpack.c.b16 %v2033, %v2025
    %v2330 = vpack.c.b16 %v2042, %v2034
    %v2331 = vpack.c.b16 %v2043, %v2035
    %v2332 = vpack.c.b16 %v2044, %v2036
    %v2333 = vpack.c.b16 %v2045, %v2037
    %v2334 = vpack.c.b16 %v2046, %v2038
    %v2335 = vpack.c.b16 %v2047, %v2039
    %v2336 = vpack.c.b16 %v2048, %v2040
    %v2337 = vpack.c.b16 %v2049, %v2041
    %v2338 = vpack.c.b16 %v2058, %v2050
    %v2339 = vpack.c.b16 %v2059, %v2051
    %v2340 = vpack.c.b16 %v2060, %v2052
    %v2341 = vpack.c.b16 %v2061, %v2053
    %v2342 = vpack.c.b16 %v2062, %v2054
    %v2343 = vpack.c.b16 %v2063, %v2055
    %v2344 = vpack.c.b16 %v2064, %v2056
    %v2345 = vpack.c.b16 %v2065, %v2057
    %v2346 = vpack.c.b16 %v2074, %v2066
    %v2347 = vpack.c.b16 %v2075, %v2067
    %v2348 = vpack.c.b16 %v2076, %v2068
    %v2349 = vpack.c.b16 %v2077, %v2069
    %v2350 = vpack.c.b16 %v2078, %v2070
    %v2351 = vpack.c.b16 %v2079, %v2071
    %v2352 = vpack.c.b16 %v2080, %v2072
    %v2353 = vpack.c.b16 %v2081, %v2073
    %v2354 = vpack.c.b16 %v2090, %v2082
    %v2355 = vpack.c.b16 %v2091, %v2083
    %v2356 = vpack.c.b16 %v2092, %v2084
    %v2357 = vpack.c.b16 %v2093, %v2085
    %v2358 = vpack.c.b16 %v2094, %v2086
    %v2359 = vpack.c.b16 %v2095, %v2087
    %v2360 = vpack.c.b16 %v2096, %v2088
    %v2361 = vpack.c.b16 %v2097, %v2089
    %v2362 = vpack.c.b16 %v2106, %v2098
    %v2363 = vpack.c.b16 %v2107, %v2099
    %v2364 = vpack.c.b16 %v2108, %v2100
    %v2365 = vpack.c.b16 %v2109, %v2101
    %v2366 = vpack.c.b16 %v2110, %v2102
    %v2367 = vpack.c.b16 %v2111, %v2103
    %v2368 = vpack.c.b16 %v2112, %v2104
    %v2369 = vpack.c.b16 %v2113, %v2105
    %2626 = vmatprep.subr.bf16.mxu0 %v2115
    %2627 = vmatpush1.bf16.msra.mxu0 %v2114
    %2628 = vmatprep.subr.bf16.mxu0 %v2123
    %2629 = vmatpush1.bf16.msra.mxu0 %v2122
    %2630 = vmatprep.subr.bf16.mxu0 %v2131
    %2631 = vmatpush1.bf16.msra.mxu0 %v2130
    %2632 = vmatprep.subr.bf16.mxu0 %v2139
    %2633 = vmatpush1.bf16.msra.mxu0 %v2138
    %2634 = vmatprep.subr.bf16.mxu0 %v2147
    %2635 = vmatpush1.bf16.msra.mxu0 %v2146
    %2636 = vmatprep.subr.bf16.mxu0 %v2155
    %2637 = vmatpush1.bf16.msra.mxu0 %v2154
    %2638 = vmatprep.subr.bf16.mxu0 %v2163
    %2639 = vmatpush1.bf16.msra.mxu0 %v2162
    %2640 = vmatprep.subr.bf16.mxu0 %v2171
    %2641 = vmatpush1.bf16.msra.mxu0 %v2170
    %2642 = vmatprep.subr.bf16.mxu0 %v2179
    %2643 = vmatpush1.bf16.msra.mxu0 %v2178
    %2644 = vmatprep.subr.bf16.mxu0 %v2187
    %2645 = vmatpush1.bf16.msra.mxu0 %v2186
    %2646 = vmatprep.subr.bf16.mxu0 %v2195
    %2647 = vmatpush1.bf16.msra.mxu0 %v2194
    %2648 = vmatprep.subr.bf16.mxu0 %v2203
    %2649 = vmatpush1.bf16.msra.mxu0 %v2202
    %2650 = vmatprep.subr.bf16.mxu0 %v2211
    %2651 = vmatpush1.bf16.msra.mxu0 %v2210
    %2652 = vmatprep.subr.bf16.mxu0 %v2219
    %2653 = vmatpush1.bf16.msra.mxu0 %v2218
    %2654 = vmatprep.subr.bf16.mxu0 %v2227
    %2655 = vmatpush1.bf16.msra.mxu0 %v2226
    %2656 = vmatprep.subr.bf16.mxu0 %v2235
    %2657 = vmatpush1.bf16.msra.mxu0 %v2234
    %2658 = vmatprep.mubr.bf16.mxu0 %v1045
    %2659 = vmatmul.mubr.bf16.gmra.mrb[0].mxu0 %v1044
    %v2660 = vpop.f32.mrb[0].mxu0
    %v2661 = vadd.f32 %v1309, %v2660
    %v2662 = vpop.f32.mrb[0].mxu0
    %v2663 = vadd.f32 %v1313, %v2662
    %v2664 = vpop.f32.mrb[0].mxu0
    %v2665 = vadd.f32 %v1309, %v2664
    %v2666 = vpop.f32.mrb[0].mxu0
    %v2667 = vadd.f32 %v1313, %v2666
    %2668 = vdwg.mxu0
    %2669 = vmatprep.subr.bf16.mxu0 %v2243
    %2670 = vmatpush1.bf16.msra.mxu0 %v2242
    %2671 = vmatprep.subr.bf16.mxu0 %v2251
    %2672 = vmatpush1.bf16.msra.mxu0 %v2250
    %2673 = vmatprep.subr.bf16.mxu0 %v2259
    %2674 = vmatpush1.bf16.msra.mxu0 %v2258
    %2675 = vmatprep.subr.bf16.mxu0 %v2267
    %2676 = vmatpush1.bf16.msra.mxu0 %v2266
    %2677 = vmatprep.subr.bf16.mxu0 %v2275
    %2678 = vmatpush1.bf16.msra.mxu0 %v2274
    %2679 = vmatprep.subr.bf16.mxu0 %v2283
    %2680 = vmatpush1.bf16.msra.mxu0 %v2282
    %2681 = vmatprep.subr.bf16.mxu0 %v2291
    %2682 = vmatpush1.bf16.msra.mxu0 %v2290
    %2683 = vmatprep.subr.bf16.mxu0 %v2299
    %2684 = vmatpush1.bf16.msra.mxu0 %v2298
    %2685 = vmatprep.subr.bf16.mxu0 %v2307
    %2686 = vmatpush1.bf16.msra.mxu0 %v2306
    %2687 = vmatprep.subr.bf16.mxu0 %v2315
    %2688 = vmatpush1.bf16.msra.mxu0 %v2314
    %2689 = vmatprep.subr.bf16.mxu0 %v2323
    %2690 = vmatpush1.bf16.msra.mxu0 %v2322
    %2691 = vmatprep.subr.bf16.mxu0 %v2331
    %2692 = vmatpush1.bf16.msra.mxu0 %v2330
    %2693 = vmatprep.subr.bf16.mxu0 %v2339
    %2694 = vmatpush1.bf16.msra.mxu0 %v2338
    %2695 = vmatprep.subr.bf16.mxu0 %v2347
    %2696 = vmatpush1.bf16.msra.mxu0 %v2346
    %2697 = vmatprep.subr.bf16.mxu0 %v2355
    %2698 = vmatpush1.bf16.msra.mxu0 %v2354
    %2699 = vmatprep.subr.bf16.mxu0 %v2363
    %2700 = vmatpush1.bf16.msra.mxu0 %v2362
    %2701 = vmatprep.mubr.bf16.mxu0 %v1047
    %2702 = vmatmul.mubr.bf16.gmra.mrb[0].mxu0 %v1046
    %v2703 = vpop.f32.mrb[0].mxu0
    %v2704 = vadd.f32 %v2661, %v2703
    %v2705 = vpop.f32.mrb[0].mxu0
    %v2706 = vadd.f32 %v2663, %v2705
    %v2707 = vpop.f32.mrb[0].mxu0
    %v2708 = vadd.f32 %v2665, %v2707
    %v2709 = vpop.f32.mrb[0].mxu0
    %v2710 = vadd.f32 %v2667, %v2709
    %2711 = vdwg.mxu0
    %2712 = vmatprep.subr.bf16.mxu0 %v2117
    %2713 = vmatpush1.bf16.msra.mxu0 %v2116
    %2714 = vmatprep.subr.bf16.mxu0 %v2125
    %2715 = vmatpush1.bf16.msra.mxu0 %v2124
    %2716 = vmatprep.subr.bf16.mxu0 %v2133
    %2717 = vmatpush1.bf16.msra.mxu0 %v2132
    %2718 = vmatprep.subr.bf16.mxu0 %v2141
    %2719 = vmatpush1.bf16.msra.mxu0 %v2140
    %2720 = vmatprep.subr.bf16.mxu0 %v2149
    %2721 = vmatpush1.bf16.msra.mxu0 %v2148
    %2722 = vmatprep.subr.bf16.mxu0 %v2157
    %2723 = vmatpush1.bf16.msra.mxu0 %v2156
    %2724 = vmatprep.subr.bf16.mxu0 %v2165
    %2725 = vmatpush1.bf16.msra.mxu0 %v2164
    %2726 = vmatprep.subr.bf16.mxu0 %v2173
    %2727 = vmatpush1.bf16.msra.mxu0 %v2172
    %2728 = vmatprep.subr.bf16.mxu0 %v2181
    %2729 = vmatpush1.bf16.msra.mxu0 %v2180
    %2730 = vmatprep.subr.bf16.mxu0 %v2189
    %2731 = vmatpush1.bf16.msra.mxu0 %v2188
    %2732 = vmatprep.subr.bf16.mxu0 %v2197
    %2733 = vmatpush1.bf16.msra.mxu0 %v2196
    %2734 = vmatprep.subr.bf16.mxu0 %v2205
    %2735 = vmatpush1.bf16.msra.mxu0 %v2204
    %2736 = vmatprep.subr.bf16.mxu0 %v2213
    %2737 = vmatpush1.bf16.msra.mxu0 %v2212
    %2738 = vmatprep.subr.bf16.mxu0 %v2221
    %2739 = vmatpush1.bf16.msra.mxu0 %v2220
    %2740 = vmatprep.subr.bf16.mxu0 %v2229
    %2741 = vmatpush1.bf16.msra.mxu0 %v2228
    %2742 = vmatprep.subr.bf16.mxu0 %v2237
    %2743 = vmatpush1.bf16.msra.mxu0 %v2236
    %2744 = vmatprep.mubr.bf16.mxu0 %v1045
    %2745 = vmatmul.mubr.bf16.gmra.mrb[0].mxu0 %v1044
    %v2746 = vpop.f32.mrb[0].mxu0
    %v2747 = vadd.f32 %v1317, %v2746
    %v2748 = vpop.f32.mrb[0].mxu0
    %v2749 = vadd.f32 %v1321, %v2748
    %v2750 = vpop.f32.mrb[0].mxu0
    %v2751 = vadd.f32 %v1317, %v2750
    %v2752 = vpop.f32.mrb[0].mxu0
    %v2753 = vadd.f32 %v1321, %v2752
    %2754 = vdwg.mxu0
    %2755 = vmatprep.subr.bf16.mxu0 %v2245
    %2756 = vmatpush1.bf16.msra.mxu0 %v2244
    %2757 = vmatprep.subr.bf16.mxu0 %v2253
    %2758 = vmatpush1.bf16.msra.mxu0 %v2252
    %2759 = vmatprep.subr.bf16.mxu0 %v2261
    %2760 = vmatpush1.bf16.msra.mxu0 %v2260
    %2761 = vmatprep.subr.bf16.mxu0 %v2269
    %2762 = vmatpush1.bf16.msra.mxu0 %v2268
    %2763 = vmatprep.subr.bf16.mxu0 %v2277
    %2764 = vmatpush1.bf16.msra.mxu0 %v2276
    %2765 = vmatprep.subr.bf16.mxu0 %v2285
    %2766 = vmatpush1.bf16.msra.mxu0 %v2284
    %2767 = vmatprep.subr.bf16.mxu0 %v2293
    %2768 = vmatpush1.bf16.msra.mxu0 %v2292
    %2769 = vmatprep.subr.bf16.mxu0 %v2301
    %2770 = vmatpush1.bf16.msra.mxu0 %v2300
    %2771 = vmatprep.subr.bf16.mxu0 %v2309
    %2772 = vmatpush1.bf16.msra.mxu0 %v2308
    %2773 = vmatprep.subr.bf16.mxu0 %v2317
    %2774 = vmatpush1.bf16.msra.mxu0 %v2316
    %2775 = vmatprep.subr.bf16.mxu0 %v2325
    %2776 = vmatpush1.bf16.msra.mxu0 %v2324
    %2777 = vmatprep.subr.bf16.mxu0 %v2333
    %2778 = vmatpush1.bf16.msra.mxu0 %v2332
    %2779 = vmatprep.subr.bf16.mxu0 %v2341
    %2780 = vmatpush1.bf16.msra.mxu0 %v2340
    %2781 = vmatprep.subr.bf16.mxu0 %v2349
    %2782 = vmatpush1.bf16.msra.mxu0 %v2348
    %2783 = vmatprep.subr.bf16.mxu0 %v2357
    %2784 = vmatpush1.bf16.msra.mxu0 %v2356
    %2785 = vmatprep.subr.bf16.mxu0 %v2365
    %2786 = vmatpush1.bf16.msra.mxu0 %v2364
    %2787 = vmatprep.mubr.bf16.mxu0 %v1047
    %2788 = vmatmul.mubr.bf16.gmra.mrb[0].mxu0 %v1046
    %v2789 = vpop.f32.mrb[0].mxu0
    %v2790 = vadd.f32 %v2747, %v2789
    %v2791 = vpop.f32.mrb[0].mxu0
    %v2792 = vadd.f32 %v2749, %v2791
    %v2793 = vpop.f32.mrb[0].mxu0
    %v2794 = vadd.f32 %v2751, %v2793
    %v2795 = vpop.f32.mrb[0].mxu0
    %v2796 = vadd.f32 %v2753, %v2795
    %2797 = vdwg.mxu0
    %2798 = vmatprep.subr.bf16.mxu0 %v2119
    %2799 = vmatpush1.bf16.msra.mxu0 %v2118
    %2800 = vmatprep.subr.bf16.mxu0 %v2127
    %2801 = vmatpush1.bf16.msra.mxu0 %v2126
    %2802 = vmatprep.subr.bf16.mxu0 %v2135
    %2803 = vmatpush1.bf16.msra.mxu0 %v2134
    %2804 = vmatprep.subr.bf16.mxu0 %v2143
    %2805 = vmatpush1.bf16.msra.mxu0 %v2142
    %2806 = vmatprep.subr.bf16.mxu0 %v2151
    %2807 = vmatpush1.bf16.msra.mxu0 %v2150
    %2808 = vmatprep.subr.bf16.mxu0 %v2159
    %2809 = vmatpush1.bf16.msra.mxu0 %v2158
    %2810 = vmatprep.subr.bf16.mxu0 %v2167
    %2811 = vmatpush1.bf16.msra.mxu0 %v2166
    %2812 = vmatprep.subr.bf16.mxu0 %v2175
    %2813 = vmatpush1.bf16.msra.mxu0 %v2174
    %2814 = vmatprep.subr.bf16.mxu0 %v2183
    %2815 = vmatpush1.bf16.msra.mxu0 %v2182
    %2816 = vmatprep.subr.bf16.mxu0 %v2191
    %2817 = vmatpush1.bf16.msra.mxu0 %v2190
    %2818 = vmatprep.subr.bf16.mxu0 %v2199
    %2819 = vmatpush1.bf16.msra.mxu0 %v2198
    %2820 = vmatprep.subr.bf16.mxu0 %v2207
    %2821 = vmatpush1.bf16.msra.mxu0 %v2206
    %2822 = vmatprep.subr.bf16.mxu0 %v2215
    %2823 = vmatpush1.bf16.msra.mxu0 %v2214
    %2824 = vmatprep.subr.bf16.mxu0 %v2223
    %2825 = vmatpush1.bf16.msra.mxu0 %v2222
    %2826 = vmatprep.subr.bf16.mxu0 %v2231
    %2827 = vmatpush1.bf16.msra.mxu0 %v2230
    %2828 = vmatprep.subr.bf16.mxu0 %v2239
    %2829 = vmatpush1.bf16.msra.mxu0 %v2238
    %2830 = vmatprep.mubr.bf16.mxu0 %v1045
    %2831 = vmatmul.mubr.bf16.gmra.mrb[0].mxu0 %v1044
    %v2832 = vpop.f32.mrb[0].mxu0
    %v2833 = vadd.f32 %v1325, %v2832
    %v2834 = vpop.f32.mrb[0].mxu0
    %v2835 = vadd.f32 %v1329, %v2834
    %v2836 = vpop.f32.mrb[0].mxu0
    %v2837 = vadd.f32 %v1325, %v2836
    %v2838 = vpop.f32.mrb[0].mxu0
    %v2839 = vadd.f32 %v1329, %v2838
    %2840 = vdwg.mxu0
    %2841 = vmatprep.subr.bf16.mxu0 %v2247
    %2842 = vmatpush1.bf16.msra.mxu0 %v2246
    %2843 = vmatprep.subr.bf16.mxu0 %v2255
    %2844 = vmatpush1.bf16.msra.mxu0 %v2254
    %2845 = vmatprep.subr.bf16.mxu0 %v2263
    %2846 = vmatpush1.bf16.msra.mxu0 %v2262
    %2847 = vmatprep.subr.bf16.mxu0 %v2271
    %2848 = vmatpush1.bf16.msra.mxu0 %v2270
    %2849 = vmatprep.subr.bf16.mxu0 %v2279
    %2850 = vmatpush1.bf16.msra.mxu0 %v2278
    %2851 = vmatprep.subr.bf16.mxu0 %v2287
    %2852 = vmatpush1.bf16.msra.mxu0 %v2286
    %2853 = vmatprep.subr.bf16.mxu0 %v2295
    %2854 = vmatpush1.bf16.msra.mxu0 %v2294
    %2855 = vmatprep.subr.bf16.mxu0 %v2303
    %2856 = vmatpush1.bf16.msra.mxu0 %v2302
    %2857 = vmatprep.subr.bf16.mxu0 %v2311
    %2858 = vmatpush1.bf16.msra.mxu0 %v2310
    %2859 = vmatprep.subr.bf16.mxu0 %v2319
    %2860 = vmatpush1.bf16.msra.mxu0 %v2318
    %2861 = vmatprep.subr.bf16.mxu0 %v2327
    %2862 = vmatpush1.bf16.msra.mxu0 %v2326
    %2863 = vmatprep.subr.bf16.mxu0 %v2335
    %2864 = vmatpush1.bf16.msra.mxu0 %v2334
    %2865 = vmatprep.subr.bf16.mxu0 %v2343
    %2866 = vmatpush1.bf16.msra.mxu0 %v2342
    %2867 = vmatprep.subr.bf16.mxu0 %v2351
    %2868 = vmatpush1.bf16.msra.mxu0 %v2350
    %2869 = vmatprep.subr.bf16.mxu0 %v2359
    %2870 = vmatpush1.bf16.msra.mxu0 %v2358
    %2871 = vmatprep.subr.bf16.mxu0 %v2367
    %2872 = vmatpush1.bf16.msra.mxu0 %v2366
    %2873 = vmatprep.mubr.bf16.mxu0 %v1047
    %2874 = vmatmul.mubr.bf16.gmra.mrb[0].mxu0 %v1046
    %v2875 = vpop.f32.mrb[0].mxu0
    %v2876 = vadd.f32 %v2833, %v2875
    %v2877 = vpop.f32.mrb[0].mxu0
    %v2878 = vadd.f32 %v2835, %v2877
    %v2879 = vpop.f32.mrb[0].mxu0
    %v2880 = vadd.f32 %v2837, %v2879
    %v2881 = vpop.f32.mrb[0].mxu0
    %v2882 = vadd.f32 %v2839, %v2881
    %2883 = vdwg.mxu0
    %2884 = vmatprep.subr.bf16.mxu0 %v2121
    %2885 = vmatpush1.bf16.msra.mxu0 %v2120
    %2886 = vmatprep.subr.bf16.mxu0 %v2129
    %2887 = vmatpush1.bf16.msra.mxu0 %v2128
    %2888 = vmatprep.subr.bf16.mxu0 %v2137
    %2889 = vmatpush1.bf16.msra.mxu0 %v2136
    %2890 = vmatprep.subr.bf16.mxu0 %v2145
    %2891 = vmatpush1.bf16.msra.mxu0 %v2144
    %2892 = vmatprep.subr.bf16.mxu0 %v2153
    %2893 = vmatpush1.bf16.msra.mxu0 %v2152
    %2894 = vmatprep.subr.bf16.mxu0 %v2161
    %2895 = vmatpush1.bf16.msra.mxu0 %v2160
    %2896 = vmatprep.subr.bf16.mxu0 %v2169
    %2897 = vmatpush1.bf16.msra.mxu0 %v2168
    %2898 = vmatprep.subr.bf16.mxu0 %v2177
    %2899 = vmatpush1.bf16.msra.mxu0 %v2176
    %2900 = vmatprep.subr.bf16.mxu0 %v2185
    %2901 = vmatpush1.bf16.msra.mxu0 %v2184
    %2902 = vmatprep.subr.bf16.mxu0 %v2193
    %2903 = vmatpush1.bf16.msra.mxu0 %v2192
    %2904 = vmatprep.subr.bf16.mxu0 %v2201
    %2905 = vmatpush1.bf16.msra.mxu0 %v2200
    %2906 = vmatprep.subr.bf16.mxu0 %v2209
    %2907 = vmatpush1.bf16.msra.mxu0 %v2208
    %2908 = vmatprep.subr.bf16.mxu0 %v2217
    %2909 = vmatpush1.bf16.msra.mxu0 %v2216
    %2910 = vmatprep.subr.bf16.mxu0 %v2225
    %2911 = vmatpush1.bf16.msra.mxu0 %v2224
    %2912 = vmatprep.subr.bf16.mxu0 %v2233
    %2913 = vmatpush1.bf16.msra.mxu0 %v2232
    %2914 = vmatprep.subr.bf16.mxu0 %v2241
    %2915 = vmatpush1.bf16.msra.mxu0 %v2240
    %2916 = vmatprep.mubr.bf16.mxu0 %v1045
    %2917 = vmatmul.mubr.bf16.gmra.mrb[0].mxu0 %v1044
    %v2918 = vpop.f32.mrb[0].mxu0
    %v2919 = vadd.f32 %v1333, %v2918
    %v2920 = vpop.f32.mrb[0].mxu0
    %v2921 = vadd.f32 %v1337, %v2920
    %v2922 = vpop.f32.mrb[0].mxu0
    %v2923 = vadd.f32 %v1333, %v2922
    %v2924 = vpop.f32.mrb[0].mxu0
    %v2925 = vadd.f32 %v1337, %v2924
    %2926 = vdwg.mxu0
    %2927 = vmatprep.subr.bf16.mxu0 %v2249
    %2928 = vmatpush1.bf16.msra.mxu0 %v2248
    %2929 = vmatprep.subr.bf16.mxu0 %v2257
    %2930 = vmatpush1.bf16.msra.mxu0 %v2256
    %2931 = vmatprep.subr.bf16.mxu0 %v2265
    %2932 = vmatpush1.bf16.msra.mxu0 %v2264
    %2933 = vmatprep.subr.bf16.mxu0 %v2273
    %2934 = vmatpush1.bf16.msra.mxu0 %v2272
    %2935 = vmatprep.subr.bf16.mxu0 %v2281
    %2936 = vmatpush1.bf16.msra.mxu0 %v2280
    %2937 = vmatprep.subr.bf16.mxu0 %v2289
    %2938 = vmatpush1.bf16.msra.mxu0 %v2288
    %2939 = vmatprep.subr.bf16.mxu0 %v2297
    %2940 = vmatpush1.bf16.msra.mxu0 %v2296
    %2941 = vmatprep.subr.bf16.mxu0 %v2305
    %2942 = vmatpush1.bf16.msra.mxu0 %v2304
    %2943 = vmatprep.subr.bf16.mxu0 %v2313
    %2944 = vmatpush1.bf16.msra.mxu0 %v2312
    %2945 = vmatprep.subr.bf16.mxu0 %v2321
    %2946 = vmatpush1.bf16.msra.mxu0 %v2320
    %2947 = vmatprep.subr.bf16.mxu0 %v2329
    %2948 = vmatpush1.bf16.msra.mxu0 %v2328
    %2949 = vmatprep.subr.bf16.mxu0 %v2337
    %2950 = vmatpush1.bf16.msra.mxu0 %v2336
    %2951 = vmatprep.subr.bf16.mxu0 %v2345
    %2952 = vmatpush1.bf16.msra.mxu0 %v2344
    %2953 = vmatprep.subr.bf16.mxu0 %v2353
    %2954 = vmatpush1.bf16.msra.mxu0 %v2352
    %2955 = vmatprep.subr.bf16.mxu0 %v2361
    %2956 = vmatpush1.bf16.msra.mxu0 %v2360
    %2957 = vmatprep.subr.bf16.mxu0 %v2369
    %2958 = vmatpush1.bf16.msra.mxu0 %v2368
    %2959 = vmatprep.mubr.bf16.mxu0 %v1047
    %2960 = vmatmul.mubr.bf16.gmra.mrb[0].mxu0 %v1046
    %v2961 = vpop.f32.mrb[0].mxu0
    %v2962 = vadd.f32 %v2919, %v2961
    %v2963 = vpop.f32.mrb[0].mxu0
    %v2964 = vadd.f32 %v2921, %v2963
    %v2965 = vpop.f32.mrb[0].mxu0
    %v2966 = vadd.f32 %v2923, %v2965
    %v2967 = vpop.f32.mrb[0].mxu0
    %v2968 = vadd.f32 %v2925, %v2967
    %2969 = vdwg.mxu0
    %2970 = vst [vmem:[#allocation8] sm:$0xff] %v2704
    %2971 = vst [vmem:[#allocation8 + $0x8] sm:$0xff] %v2706
    %2972 = vst [vmem:[#allocation8 + $0x10] sm:$0xff] %v2790
    %2973 = vst [vmem:[#allocation8 + $0x18] sm:$0xff] %v2792
    %2974 = vst [vmem:[#allocation8 + $0x20] sm:$0xff] %v2876
    %2975 = vst [vmem:[#allocation8 + $0x28] sm:$0xff] %v2878
    %2976 = vst [vmem:[#allocation8 + $0x30] sm:$0xff] %v2962
    %2977 = vst [vmem:[#allocation8 + $0x38] sm:$0xff] %v2964
    %2978 = vst [vmem:[#allocation8 + $0x40] sm:$0xff] %v2708
    %2979 = vst [vmem:[#allocation8 + $0x48] sm:$0xff] %v2710
    %2980 = vst [vmem:[#allocation8 + $0x50] sm:$0xff] %v2794
    %2981 = vst [vmem:[#allocation8 + $0x58] sm:$0xff] %v2796
    %2982 = vst [vmem:[#allocation8 + $0x60] sm:$0xff] %v2880
    %2983 = vst [vmem:[#allocation8 + $0x68] sm:$0xff] %v2882
    %2984 = vst [vmem:[#allocation8 + $0x70] sm:$0xff] %v2966
    %2985 = vst [vmem:[#allocation8 + $0x78] sm:$0xff] %v2968
    // Predicated region
    $region34: #{tpu_custom_call.1} parent=1 // pred_check
      _
    $region35: #{tpu_custom_call.1} parent=1 // pred_check_branch
      %2987 = sbr.rel (0) target = $region37
    $region36: #{tpu_custom_call.1} parent=1 // pred_region
      %s2989 = ssub.s32 2048, 2048
      %2990 = vsyncadd [#allocation4], %s2989
      %s2991 = sshll.u32 [#allocation8], 4
      %s2992 = int_to_ptr.vmem [resolvable:$true] %s2991
      %2997 = dma.vmem_to_hbm [thread:$0]  %s2992, 2048, %s5, [#allocation4], 1024, 1024, 64
    $region37: #{tpu_custom_call.1} parent=1 // pred_fallthru
      _
    // Predicated region
    $region38: #{tpu_custom_call.1} parent=1 // pred_check
      _
    $region39: #{tpu_custom_call.1} parent=1 // pred_check_branch
      %2999 = sbr.rel (0) target = $region41
    $region40: #{tpu_custom_call.1} parent=1 // pred_region
      %3000 = dma.done [#allocation4], 2048
    $region41: #{tpu_custom_call.1} parent=1 // pred_fallthru
      _
    %3001 = vsyncpa [#allocation3], 1
    %3002 = vsyncpa [#allocation6], 1
    %3003 = vsyncpa [#allocation4], 1

</llo_original>
